<compile_context>
chip_gen: v5e
topology: v5e:2x2
jax: 0.10.0
libtpu: 0.0.40
codegen_flags: <defaults>
</compile_context>

<pallas_src>
import jax
import jax.numpy as jnp
from jax import lax
from jax.experimental import pallas as pl
from jax.experimental.pallas import tpu as pltpu

# ---- model hyper-parameters (L=256 is forced by LayerNorm(256) in the module) ----
B = 2              # batch
L = 256            # sequence length
D_IN = 32          # input_size
FILTERS = 16       # filters (conv channels)
KSIZE = 3
DILATIONS = (1, 1, 2)   # self.layers
NUM_BLOCK = 4
EPS = 1e-6


def _segments_per_step() -> int:
    """Number of length-L batch segments handled per grid step.

    Multi-TensorCore chips (v7x, v5p, v4 megacore): 1 segment/step so a
    `parallel` grid over batch shards the serial conv/LN chain across cores.
    Single-TC chips (v5e / v6e) or unknown backends: fold the whole batch into
    one wide grid step (grid-less equivalent, no per-step overhead).
    """
    try:
        kind = jax.devices()[0].device_kind.lower()
    except Exception:
        return B
    if any(tag in kind for tag in ("v7", "7x", "v5p", "v4")):
        return 1
    return B


def _make_kernel(seg: int):
    W = seg * L
    F = FILTERS

    def kernel(x_ref, wlin_ref, blin_ref, wcf_ref, bc_ref,
               ln1a_ref, ln1b_ref, ln2a_ref, ln2b_ref, o_ref, hs_ref):
        # ---- hoisted loads / constants (outside the 4x-unrolled blocks) ----
        x = x_ref[...]                       # (D_IN, W)
        wlin = wlin_ref[...]                 # (F, D_IN)
        blin = blin_ref[...]                 # (F, 1)
        ln1a, ln1b = ln1a_ref[...], ln1b_ref[...]   # (1, W)
        ln2a, ln2b = ln2a_ref[...], ln2b_ref[...]   # (1, W)
        layer_w = [wcf_ref[i] for i in range(len(DILATIONS))]   # (F, 3F) fused taps
        layer_b = [bc_ref[i] for i in range(len(DILATIONS))]    # (F, 1)

        # Lane bookkeeping: position within the owning length-L segment, and
        # (1, W) f32 0/1 validity masks for the +-d shifted taps.  They both
        # implement Conv1d's per-sequence zero padding and stop a shifted read
        # from bleeding into the neighbouring folded batch segment.
        assert L & (L - 1) == 0  # power of two -> cheap bitwise mask instead of %
        q = lax.broadcasted_iota(jnp.int32, (1, W), 1) & (L - 1)
        dil = sorted(set(DILATIONS))
        m_neg = {d: (q >= d).astype(jnp.float32) for d in dil}        # read p-d valid
        m_pos = {d: (q < (L - d)).astype(jnp.float32) for d in dil}   # read p+d valid

        def shifted(h, d, sign):
            # sign=-1: y[:, p] = h[:, p-d] ; sign=+1: y[:, p] = h[:, p+d]
            if sign < 0:
                return pltpu.roll(h, d, axis=1) * m_neg[d]            # XLU rotate
            return pltpu.roll(h, W - d, axis=1) * m_pos[d]

        def conv1d(h, wf, bias, d):
            # Conv1d(k=3, dilation=d, padding=d) as ONE (F, 3F) @ (3F, W) MXU
            # matmul.  The stacked [h(p-d); h(p); h(p+d)] operand is assembled
            # with static, sublane-aligned stores into a persistent VMEM
            # scratch instead of a jnp.concatenate (no 24-vreg temporary on
            # the serial critical path).
            hs_ref[0 * F:1 * F, :] = shifted(h, d, -1)
            hs_ref[1 * F:2 * F, :] = h
            hs_ref[2 * F:3 * F, :] = shifted(h, d, +1)
            return jnp.dot(wf, hs_ref[...],
                           preferred_element_type=jnp.float32) + bias

        def layernorm(h, a, b):
            # PyTorch-style LayerNorm over the sequence axis of each length-L
            # segment: unbiased std (N-1), eps added to std, EXACT reciprocal.
            outs = []
            for s in range(seg):                  # seg is 1 or 2 (static slices)
                hs = h[:, s * L:(s + 1) * L]
                mean = jnp.mean(hs, axis=-1, keepdims=True)
                c = hs - mean
                var = jnp.sum(c * c, axis=-1, keepdims=True) * (1.0 / (L - 1))
                outs.append(c * (1.0 / (jnp.sqrt(var) + EPS)))
            n = outs[0] if seg == 1 else jnp.concatenate(outs, axis=1)
            return a * n + b

        def block(h):
            # net: layer0 -> ReLU -> LayerNorm(norms_1[2]) -> layer1 -> layer2
            for li, d in enumerate(DILATIONS):
                h = conv1d(h, layer_w[li], layer_b[li], d)
                if li == 0:
                    h = jnp.maximum(h, 0.0)
                    h = layernorm(h, ln1a, ln1b)
            return h

        # Linear on the folded layout: (F, D_IN) @ (D_IN, W)
        h = jnp.dot(wlin, x, preferred_element_type=jnp.float32) + blin

        # idcnn: block0 -> ReLU -> LayerNorm(norms_2[3]) -> block1 -> block2 -> block3
        # (all four blocks share the same conv weights, exactly as in PyTorch)
        h = block(h)
        h = jnp.maximum(h, 0.0)
        h = layernorm(h, ln2a, ln2b)
        h = block(h)
        h = block(h)
        h = block(h)

        o_ref[...] = h.astype(o_ref.dtype)

    return kernel


def idcnn_forward(embeddings, length, params):
    """embeddings: (B, L, D_IN) float32 ; `length` is unused (as in the PyTorch forward)."""
    del length
    (w_lin, b_lin, conv_w, conv_b, ln1_a, ln1_b, ln2_a, ln2_b) = params

    seg = _segments_per_step()
    W = seg * L
    grid = (B // seg,)

    # Fold batch into the lane axis: (B, L, D_IN) -> (D_IN, B*L)   (lane-dense)
    x2d = jnp.transpose(embeddings, (2, 0, 1)).reshape(D_IN, B * L)

    b_lin2 = b_lin.reshape(FILTERS, 1)
    # Fuse the 3 taps per layer: (layer, tap, out, in) -> (layer, out, 3*in) so
    # stacked-activation row tap*F + in pairs with fused-weight column tap*F + in.
    conv_wf = jnp.transpose(conv_w, (0, 2, 1, 3)).reshape(3, FILTERS, 3 * FILTERS)
    conv_b2 = conv_b.reshape(3, FILTERS, 1)
    # LayerNorm affine params tiled across the `seg` segments of one grid step.
    ln1_a2 = jnp.tile(ln1_a, (seg,)).reshape(1, W)
    ln1_b2 = jnp.tile(ln1_b, (seg,)).reshape(1, W)
    ln2_a2 = jnp.tile(ln2_a, (seg,)).reshape(1, W)
    ln2_b2 = jnp.tile(ln2_b, (seg,)).reshape(1, W)

    def replicated(*shape):
        return pl.BlockSpec(shape, lambda g: (0,) * len(shape))

    out2d = pl.pallas_call(
        _make_kernel(seg),
        out_shape=jax.ShapeDtypeStruct((FILTERS, B * L), jnp.float32),
        grid=grid,
        in_specs=[
            pl.BlockSpec((D_IN, W), lambda g: (0, g)),      # x2d, sliced per step
            replicated(FILTERS, D_IN),                      # linear weight
            replicated(FILTERS, 1),                         # linear bias
            replicated(3, FILTERS, 3 * FILTERS),            # fused conv weights
            replicated(3, FILTERS, 1),                      # conv biases
            replicated(1, W), replicated(1, W),             # LN1 a / b
            replicated(1, W), replicated(1, W),             # LN2 a / b
        ],
        out_specs=pl.BlockSpec((FILTERS, W), lambda g: (0, g)),
        scratch_shapes=[pltpu.VMEM((3 * FILTERS, W), jnp.float32)],
        compiler_params=pltpu.CompilerParams(
            dimension_semantics=("parallel",)),
    )(x2d, w_lin, b_lin2, conv_wf, conv_b2, ln1_a2, ln1_b2, ln2_a2, ln2_b2)

    # Kernel output is the lane-dense (F, B*L) slab; transpose back to the
    # module's (B, L, F) only for API fidelity (downstream consumers that can
    # take (B, F, L) / (F, B*L) should skip this lane-sparse relayout).
    return jnp.transpose(out2d.reshape(FILTERS, B, L), (1, 2, 0))


def idcnn_reference(embeddings, params):
    """Pure-JAX reference with identical semantics, evaluated at full f32
    matmul precision (on TPU the default einsum precision rounds operands to
    bf16 and would pollute the ground truth)."""
    (w_lin, b_lin, conv_w, conv_b, ln1_a, ln1_b, ln2_a, ln2_b) = params
    hi = jax.lax.Precision.HIGHEST
    h = jnp.einsum("bld,fd->bfl", embeddings, w_lin, precision=hi) + b_lin[None, :, None]

    def shift(h, s):
        if s == 0:
            return h
        if s > 0:
            return jnp.pad(h[..., s:], ((0, 0), (0, 0), (0, s)))
        return jnp.pad(h[..., :s], ((0, 0), (0, 0), (-s, 0)))

    def conv(h, w, b, d):
        out = jnp.einsum("oi,bil->bol", w[0], shift(h, -d), precision=hi)
        out = out + jnp.einsum("oi,bil->bol", w[1], h, precision=hi)
        out = out + jnp.einsum("oi,bil->bol", w[2], shift(h, d), precision=hi)
        return out + b[None, :, None]

    def layernorm(h, a, b):
        mean = jnp.mean(h, axis=-1, keepdims=True)
        c = h - mean
        var = jnp.sum(c * c, axis=-1, keepdims=True) / (h.shape[-1] - 1)
        return a * c / (jnp.sqrt(var) + EPS) + b

    def block(h):
        for li, d in enumerate(DILATIONS):
            h = conv(h, conv_w[li], conv_b[li], d)
            if li == 0:
                h = jnp.maximum(h, 0.0)
                h = layernorm(h, ln1_a, ln1_b)
        return h

    h = block(h)
    h = jnp.maximum(h, 0.0)
    h = layernorm(h, ln2_a, ln2_b)
    h = block(h)
    h = block(h)
    h = block(h)
    return jnp.transpose(h, (0, 2, 1))


def init_params(key):
    ks = jax.random.split(key, 4)
    w_lin = 0.1 * jax.random.normal(ks[0], (FILTERS, D_IN), jnp.float32)   # nn.Linear (out, in)
    b_lin = 0.1 * jax.random.normal(ks[1], (FILTERS,), jnp.float32)
    # conv weights: (layer, tap, out_ch, in_ch); PyTorch layout is (out, in, tap) -- reordered here.
    conv_w = 0.1 * jax.random.normal(ks[2], (3, KSIZE, FILTERS, FILTERS), jnp.float32)
    conv_b = 0.1 * jax.random.normal(ks[3], (3, FILTERS), jnp.float32)
    # LayerNorm params: module default init (ones / zeros); only norms_1[2] and norms_2[3] are used.
    ln1_a = jnp.ones((L,), jnp.float32)
    ln1_b = jnp.zeros((L,), jnp.float32)
    ln2_a = jnp.ones((L,), jnp.float32)
    ln2_b = jnp.zeros((L,), jnp.float32)
    return (w_lin, b_lin, conv_w, conv_b, ln1_a, ln1_b, ln2_a, ln2_b)


if __name__ == "__main__":
    key = jax.random.PRNGKey(0)
    k_x, k_p = jax.random.split(key)
    embeddings = jax.random.normal(k_x, (B, L, D_IN), jnp.float32)
    length = jnp.full((B,), L, dtype=jnp.int32)   # unused, mirrors the PyTorch signature
    params = init_params(k_p)

    out = idcnn_forward(embeddings, length, params)
    out = jax.block_until_ready(out)

    assert out.shape == (B, L, FILTERS), out.shape
    assert bool(jnp.all(jnp.isfinite(out)))

    # Correctness guard vs. the full-precision pure-JAX reference.
    ref = idcnn_reference(embeddings, params)
    max_err = float(jnp.max(jnp.abs(out - ref)))
    assert max_err < 2e-3, f"max abs err {max_err}"

    print("KERNEL_OK")
</pallas_src>

<mosaic_0001>
module attributes {stable_mosaic.version = 11 : i64} {
  func.func @kernel(%arg0: i32, %arg1: memref<32x512xf32, #tpu.memory_space<vmem>>, %arg2: memref<16x32xf32, #tpu.memory_space<vmem>>, %arg3: memref<16x1xf32, #tpu.memory_space<vmem>>, %arg4: memref<3x16x48xf32, #tpu.memory_space<vmem>>, %arg5: memref<3x16x1xf32, #tpu.memory_space<vmem>>, %arg6: memref<1x512xf32, #tpu.memory_space<vmem>>, %arg7: memref<1x512xf32, #tpu.memory_space<vmem>>, %arg8: memref<1x512xf32, #tpu.memory_space<vmem>>, %arg9: memref<1x512xf32, #tpu.memory_space<vmem>>, %arg10: memref<16x512xf32, #tpu.memory_space<vmem>>, %arg11: memref<48x512xf32, #tpu.memory_space<vmem>>) attributes {dimension_semantics = [#tpu.dimension_semantics<parallel>], iteration_bounds = array<i64: 1>, scalar_prefetch = 0 : i64, scratch_operands = 1 : i64, tpu.core_type = #tpu.core_type<tc>, window_params = [{transform_indices = @transform_0, window_bounds = array<i64: 32, 512>}, {pipeline_mode = #tpu.pipeline_mode<synchronous>, transform_indices = @transform_1, window_bounds = array<i64: 16, 32>}, {pipeline_mode = #tpu.pipeline_mode<synchronous>, transform_indices = @transform_2, window_bounds = array<i64: 16, 1>}, {pipeline_mode = #tpu.pipeline_mode<synchronous>, transform_indices = @transform_3, window_bounds = array<i64: 3, 16, 48>}, {pipeline_mode = #tpu.pipeline_mode<synchronous>, transform_indices = @transform_4, window_bounds = array<i64: 3, 16, 1>}, {pipeline_mode = #tpu.pipeline_mode<synchronous>, transform_indices = @transform_5, window_bounds = array<i64: 1, 512>}, {pipeline_mode = #tpu.pipeline_mode<synchronous>, transform_indices = @transform_6, window_bounds = array<i64: 1, 512>}, {pipeline_mode = #tpu.pipeline_mode<synchronous>, transform_indices = @transform_7, window_bounds = array<i64: 1, 512>}, {pipeline_mode = #tpu.pipeline_mode<synchronous>, transform_indices = @transform_8, window_bounds = array<i64: 1, 512>}, {transform_indices = @transform_9, window_bounds = array<i64: 16, 512>}]} {
    %c0 = arith.constant 0 : index
    %c0_0 = arith.constant 0 : index
    %0 = vector.load %arg1[%c0, %c0_0] : memref<32x512xf32, #tpu.memory_space<vmem>>, vector<32x512xf32>
    %c0_1 = arith.constant 0 : index
    %c0_2 = arith.constant 0 : index
    %1 = vector.load %arg2[%c0_1, %c0_2] : memref<16x32xf32, #tpu.memory_space<vmem>>, vector<16x32xf32>
    %c0_3 = arith.constant 0 : index
    %c0_4 = arith.constant 0 : index
    %2 = vector.load %arg3[%c0_3, %c0_4] : memref<16x1xf32, #tpu.memory_space<vmem>>, vector<16x1xf32>
    %c0_5 = arith.constant 0 : index
    %c0_6 = arith.constant 0 : index
    %3 = vector.load %arg6[%c0_5, %c0_6] : memref<1x512xf32, #tpu.memory_space<vmem>>, vector<1x512xf32>
    %c0_7 = arith.constant 0 : index
    %c0_8 = arith.constant 0 : index
    %4 = vector.load %arg7[%c0_7, %c0_8] : memref<1x512xf32, #tpu.memory_space<vmem>>, vector<1x512xf32>
    %c0_9 = arith.constant 0 : index
    %c0_10 = arith.constant 0 : index
    %5 = vector.load %arg8[%c0_9, %c0_10] : memref<1x512xf32, #tpu.memory_space<vmem>>, vector<1x512xf32>
    %c0_11 = arith.constant 0 : index
    %c0_12 = arith.constant 0 : index
    %6 = vector.load %arg9[%c0_11, %c0_12] : memref<1x512xf32, #tpu.memory_space<vmem>>, vector<1x512xf32>
    %c0_13 = arith.constant 0 : index
    %c0_14 = arith.constant 0 : index
    %c0_15 = arith.constant 0 : index
    %7 = vector.load %arg4[%c0_13, %c0_14, %c0_15] : memref<3x16x48xf32, #tpu.memory_space<vmem>>, vector<1x16x48xf32>
    %8 = vector.shape_cast %7 : vector<1x16x48xf32> to vector<16x48xf32>
    %c1 = arith.constant 1 : index
    %c0_16 = arith.constant 0 : index
    %c0_17 = arith.constant 0 : index
    %9 = vector.load %arg4[%c1, %c0_16, %c0_17] : memref<3x16x48xf32, #tpu.memory_space<vmem>>, vector<1x16x48xf32>
    %10 = vector.shape_cast %9 : vector<1x16x48xf32> to vector<16x48xf32>
    %c2 = arith.constant 2 : index
    %c0_18 = arith.constant 0 : index
    %c0_19 = arith.constant 0 : index
    %11 = vector.load %arg4[%c2, %c0_18, %c0_19] : memref<3x16x48xf32, #tpu.memory_space<vmem>>, vector<1x16x48xf32>
    %12 = vector.shape_cast %11 : vector<1x16x48xf32> to vector<16x48xf32>
    %c0_20 = arith.constant 0 : index
    %c0_21 = arith.constant 0 : index
    %c0_22 = arith.constant 0 : index
    %13 = vector.load %arg5[%c0_20, %c0_21, %c0_22] : memref<3x16x1xf32, #tpu.memory_space<vmem>>, vector<1x16x1xf32>
    %14 = vector.shape_cast %13 : vector<1x16x1xf32> to vector<16x1xf32>
    %c1_23 = arith.constant 1 : index
    %c0_24 = arith.constant 0 : index
    %c0_25 = arith.constant 0 : index
    %15 = vector.load %arg5[%c1_23, %c0_24, %c0_25] : memref<3x16x1xf32, #tpu.memory_space<vmem>>, vector<1x16x1xf32>
    %16 = vector.shape_cast %15 : vector<1x16x1xf32> to vector<16x1xf32>
    %c2_26 = arith.constant 2 : index
    %c0_27 = arith.constant 0 : index
    %c0_28 = arith.constant 0 : index
    %17 = vector.load %arg5[%c2_26, %c0_27, %c0_28] : memref<3x16x1xf32, #tpu.memory_space<vmem>>, vector<1x16x1xf32>
    %18 = vector.shape_cast %17 : vector<1x16x1xf32> to vector<16x1xf32>
    %19 = tpu.iota {dimensions = array<i32: 1>} : vector<1x512xi32>
    %c255_i32 = arith.constant 255 : i32
    %20 = vector.broadcast %c255_i32 : i32 to vector<1x512xi32>
    %21 = arith.andi %19, %20 : vector<1x512xi32>
    %c1_i32 = arith.constant 1 : i32
    %22 = vector.broadcast %c1_i32 : i32 to vector<1x512xi32>
    %23 = arith.cmpi sge, %21, %22 : vector<1x512xi32>
    %24 = arith.extui %23 : vector<1x512xi1> to vector<1x512xi32>
    %25 = arith.sitofp %24 : vector<1x512xi32> to vector<1x512xf32>
    %c2_i32 = arith.constant 2 : i32
    %26 = vector.broadcast %c2_i32 : i32 to vector<1x512xi32>
    %27 = arith.cmpi sge, %21, %26 : vector<1x512xi32>
    %28 = arith.extui %27 : vector<1x512xi1> to vector<1x512xi32>
    %29 = arith.sitofp %28 : vector<1x512xi32> to vector<1x512xf32>
    %c255_i32_29 = arith.constant 255 : i32
    %30 = vector.broadcast %c255_i32_29 : i32 to vector<1x512xi32>
    %31 = arith.cmpi slt, %21, %30 : vector<1x512xi32>
    %32 = arith.extui %31 : vector<1x512xi1> to vector<1x512xi32>
    %33 = arith.sitofp %32 : vector<1x512xi32> to vector<1x512xf32>
    %c254_i32 = arith.constant 254 : i32
    %34 = vector.broadcast %c254_i32 : i32 to vector<1x512xi32>
    %35 = arith.cmpi slt, %21, %34 : vector<1x512xi32>
    %36 = arith.extui %35 : vector<1x512xi1> to vector<1x512xi32>
    %37 = arith.sitofp %36 : vector<1x512xi32> to vector<1x512xf32>
    %cst = arith.constant dense<0.000000e+00> : vector<16x512xf32>
    %38 = tpu.matmul %1, %0, %cst {dimension_numbers = #tpu.dot_dimension_numbers<[1], [0], [0], [1], [0, 0, 1, 1], [], []>} : vector<16x32xf32>, vector<32x512xf32>, vector<16x512xf32> -> vector<16x512xf32>
    %39 = vector.broadcast %2 : vector<16x1xf32> to vector<16x512xf32>
    %40 = arith.addf %38, %39 : vector<16x512xf32>
    %c1_i32_30 = arith.constant 1 : i32
    %41 = tpu.dynamic_rotate %40 by %c1_i32_30 dim 1 : vector<16x512xf32>, i32 -> vector<16x512xf32>
    %42 = vector.broadcast %25 : vector<1x512xf32> to vector<16x512xf32>
    %43 = arith.mulf %41, %42 : vector<16x512xf32>
    %c0_31 = arith.constant 0 : index
    %c0_32 = arith.constant 0 : index
    %44 = vector.load %arg11[%c0_31, %c0_32] : memref<48x512xf32, #tpu.memory_space<vmem>>, vector<16x512xf32>
    tpu.vector_store %arg11[%c0_31, %c0_32], %43 {strides = array<i32>} : memref<48x512xf32, #tpu.memory_space<vmem>>, vector<16x512xf32>,
    %c16 = arith.constant 16 : index
    %c0_33 = arith.constant 0 : index
    %45 = vector.load %arg11[%c16, %c0_33] : memref<48x512xf32, #tpu.memory_space<vmem>>, vector<16x512xf32>
    tpu.vector_store %arg11[%c16, %c0_33], %40 {strides = array<i32>} : memref<48x512xf32, #tpu.memory_space<vmem>>, vector<16x512xf32>,
    %c511_i32 = arith.constant 511 : i32
    %46 = tpu.dynamic_rotate %40 by %c511_i32 dim 1 : vector<16x512xf32>, i32 -> vector<16x512xf32>
    %47 = vector.broadcast %33 : vector<1x512xf32> to vector<16x512xf32>
    %48 = arith.mulf %46, %47 : vector<16x512xf32>
    %c32 = arith.constant 32 : index
    %c0_34 = arith.constant 0 : index
    %49 = vector.load %arg11[%c32, %c0_34] : memref<48x512xf32, #tpu.memory_space<vmem>>, vector<16x512xf32>
    tpu.vector_store %arg11[%c32, %c0_34], %48 {strides = array<i32>} : memref<48x512xf32, #tpu.memory_space<vmem>>, vector<16x512xf32>,
    %c0_35 = arith.constant 0 : index
    %c0_36 = arith.constant 0 : index
    %50 = vector.load %arg11[%c0_35, %c0_36] : memref<48x512xf32, #tpu.memory_space<vmem>>, vector<48x512xf32>
    %cst_37 = arith.constant dense<0.000000e+00> : vector<16x512xf32>
    %51 = tpu.matmul %8, %50, %cst_37 {dimension_numbers = #tpu.dot_dimension_numbers<[1], [0], [0], [1], [0, 0, 1, 1], [], []>} : vector<16x48xf32>, vector<48x512xf32>, vector<16x512xf32> -> vector<16x512xf32>
    %52 = vector.broadcast %14 : vector<16x1xf32> to vector<16x512xf32>
    %53 = arith.addf %51, %52 : vector<16x512xf32>
    %cst_38 = arith.constant 0.000000e+00 : f32
    %54 = vector.broadcast %cst_38 : f32 to vector<16x512xf32>
    %55 = arith.maximumf %53, %54 : vector<16x512xf32>
    %56 = vector.extract_strided_slice %55 {offsets = [0, 0], sizes = [16, 256], strides = [1, 1]} : vector<16x512xf32> to vector<16x256xf32>
    %cst_39 = arith.constant dense<0.000000e+00> : vector<16xf32>
    %57 = vector.multi_reduction <add>, %56, %cst_39 [1] : vector<16x256xf32> to vector<16xf32>
    %58 = vector.shape_cast %57 : vector<16xf32> to vector<16x1xf32>
    %cst_40 = arith.constant 2.560000e+02 : f32
    %59 = vector.broadcast %cst_40 : f32 to vector<16x1xf32>
    %60 = arith.divf %58, %59 : vector<16x1xf32>
    %61 = vector.broadcast %60 : vector<16x1xf32> to vector<16x256xf32>
    %62 = arith.subf %56, %61 : vector<16x256xf32>
    %63 = arith.mulf %62, %62 : vector<16x256xf32>
    %cst_41 = arith.constant dense<0.000000e+00> : vector<16xf32>
    %64 = vector.multi_reduction <add>, %63, %cst_41 [1] : vector<16x256xf32> to vector<16xf32>
    %65 = vector.shape_cast %64 : vector<16xf32> to vector<16x1xf32>
    %cst_42 = arith.constant 0.00392156886 : f32
    %66 = vector.broadcast %cst_42 : f32 to vector<16x1xf32>
    %67 = arith.mulf %65, %66 : vector<16x1xf32>
    %68 = math.sqrt %67 : vector<16x1xf32>
    %cst_43 = arith.constant 9.99999997E-7 : f32
    %69 = vector.broadcast %cst_43 : f32 to vector<16x1xf32>
    %70 = arith.addf %68, %69 : vector<16x1xf32>
    %cst_44 = arith.constant 1.000000e+00 : f32
    %71 = vector.broadcast %cst_44 : f32 to vector<16x1xf32>
    %72 = arith.divf %71, %70 : vector<16x1xf32>
    %73 = vector.broadcast %72 : vector<16x1xf32> to vector<16x256xf32>
    %74 = arith.mulf %62, %73 : vector<16x256xf32>
    %75 = vector.extract_strided_slice %55 {offsets = [0, 256], sizes = [16, 256], strides = [1, 1]} : vector<16x512xf32> to vector<16x256xf32>
    %cst_45 = arith.constant dense<0.000000e+00> : vector<16xf32>
    %76 = vector.multi_reduction <add>, %75, %cst_45 [1] : vector<16x256xf32> to vector<16xf32>
    %77 = vector.shape_cast %76 : vector<16xf32> to vector<16x1xf32>
    %cst_46 = arith.constant 2.560000e+02 : f32
    %78 = vector.broadcast %cst_46 : f32 to vector<16x1xf32>
    %79 = arith.divf %77, %78 : vector<16x1xf32>
    %80 = vector.broadcast %79 : vector<16x1xf32> to vector<16x256xf32>
    %81 = arith.subf %75, %80 : vector<16x256xf32>
    %82 = arith.mulf %81, %81 : vector<16x256xf32>
    %cst_47 = arith.constant dense<0.000000e+00> : vector<16xf32>
    %83 = vector.multi_reduction <add>, %82, %cst_47 [1] : vector<16x256xf32> to vector<16xf32>
    %84 = vector.shape_cast %83 : vector<16xf32> to vector<16x1xf32>
    %cst_48 = arith.constant 0.00392156886 : f32
    %85 = vector.broadcast %cst_48 : f32 to vector<16x1xf32>
    %86 = arith.mulf %84, %85 : vector<16x1xf32>
    %87 = math.sqrt %86 : vector<16x1xf32>
    %cst_49 = arith.constant 9.99999997E-7 : f32
    %88 = vector.broadcast %cst_49 : f32 to vector<16x1xf32>
    %89 = arith.addf %87, %88 : vector<16x1xf32>
    %cst_50 = arith.constant 1.000000e+00 : f32
    %90 = vector.broadcast %cst_50 : f32 to vector<16x1xf32>
    %91 = arith.divf %90, %89 : vector<16x1xf32>
    %92 = vector.broadcast %91 : vector<16x1xf32> to vector<16x256xf32>
    %93 = arith.mulf %81, %92 : vector<16x256xf32>
    %94 = tpu.concatenate %74, %93 in 1 : vector<16x256xf32>, vector<16x256xf32> -> vector<16x512xf32>
    %95 = vector.broadcast %3 : vector<1x512xf32> to vector<16x512xf32>
    %96 = arith.mulf %95, %94 : vector<16x512xf32>
    %97 = vector.broadcast %4 : vector<1x512xf32> to vector<16x512xf32>
    %98 = arith.addf %96, %97 : vector<16x512xf32>
    %c1_i32_51 = arith.constant 1 : i32
    %99 = tpu.dynamic_rotate %98 by %c1_i32_51 dim 1 : vector<16x512xf32>, i32 -> vector<16x512xf32>
    %100 = vector.broadcast %25 : vector<1x512xf32> to vector<16x512xf32>
    %101 = arith.mulf %99, %100 : vector<16x512xf32>
    %c0_52 = arith.constant 0 : index
    %c0_53 = arith.constant 0 : index
    %102 = vector.load %arg11[%c0_52, %c0_53] : memref<48x512xf32, #tpu.memory_space<vmem>>, vector<16x512xf32>
    tpu.vector_store %arg11[%c0_52, %c0_53], %101 {strides = array<i32>} : memref<48x512xf32, #tpu.memory_space<vmem>>, vector<16x512xf32>,
    %c16_54 = arith.constant 16 : index
    %c0_55 = arith.constant 0 : index
    %103 = vector.load %arg11[%c16_54, %c0_55] : memref<48x512xf32, #tpu.memory_space<vmem>>, vector<16x512xf32>
    tpu.vector_store %arg11[%c16_54, %c0_55], %98 {strides = array<i32>} : memref<48x512xf32, #tpu.memory_space<vmem>>, vector<16x512xf32>,
    %c511_i32_56 = arith.constant 511 : i32
    %104 = tpu.dynamic_rotate %98 by %c511_i32_56 dim 1 : vector<16x512xf32>, i32 -> vector<16x512xf32>
    %105 = vector.broadcast %33 : vector<1x512xf32> to vector<16x512xf32>
    %106 = arith.mulf %104, %105 : vector<16x512xf32>
    %c32_57 = arith.constant 32 : index
    %c0_58 = arith.constant 0 : index
    %107 = vector.load %arg11[%c32_57, %c0_58] : memref<48x512xf32, #tpu.memory_space<vmem>>, vector<16x512xf32>
    tpu.vector_store %arg11[%c32_57, %c0_58], %106 {strides = array<i32>} : memref<48x512xf32, #tpu.memory_space<vmem>>, vector<16x512xf32>,
    %c0_59 = arith.constant 0 : index
    %c0_60 = arith.constant 0 : index
    %108 = vector.load %arg11[%c0_59, %c0_60] : memref<48x512xf32, #tpu.memory_space<vmem>>, vector<48x512xf32>
    %cst_61 = arith.constant dense<0.000000e+00> : vector<16x512xf32>
    %109 = tpu.matmul %10, %108, %cst_61 {dimension_numbers = #tpu.dot_dimension_numbers<[1], [0], [0], [1], [0, 0, 1, 1], [], []>} : vector<16x48xf32>, vector<48x512xf32>, vector<16x512xf32> -> vector<16x512xf32>
    %110 = vector.broadcast %16 : vector<16x1xf32> to vector<16x512xf32>
    %111 = arith.addf %109, %110 : vector<16x512xf32>
    %c2_i32_62 = arith.constant 2 : i32
    %112 = tpu.dynamic_rotate %111 by %c2_i32_62 dim 1 : vector<16x512xf32>, i32 -> vector<16x512xf32>
    %113 = vector.broadcast %29 : vector<1x512xf32> to vector<16x512xf32>
    %114 = arith.mulf %112, %113 : vector<16x512xf32>
    %c0_63 = arith.constant 0 : index
    %c0_64 = arith.constant 0 : index
    %115 = vector.load %arg11[%c0_63, %c0_64] : memref<48x512xf32, #tpu.memory_space<vmem>>, vector<16x512xf32>
    tpu.vector_store %arg11[%c0_63, %c0_64], %114 {strides = array<i32>} : memref<48x512xf32, #tpu.memory_space<vmem>>, vector<16x512xf32>,
    %c16_65 = arith.constant 16 : index
    %c0_66 = arith.constant 0 : index
    %116 = vector.load %arg11[%c16_65, %c0_66] : memref<48x512xf32, #tpu.memory_space<vmem>>, vector<16x512xf32>
    tpu.vector_store %arg11[%c16_65, %c0_66], %111 {strides = array<i32>} : memref<48x512xf32, #tpu.memory_space<vmem>>, vector<16x512xf32>,
    %c510_i32 = arith.constant 510 : i32
    %117 = tpu.dynamic_rotate %111 by %c510_i32 dim 1 : vector<16x512xf32>, i32 -> vector<16x512xf32>
    %118 = vector.broadcast %37 : vector<1x512xf32> to vector<16x512xf32>
    %119 = arith.mulf %117, %118 : vector<16x512xf32>
    %c32_67 = arith.constant 32 : index
    %c0_68 = arith.constant 0 : index
    %120 = vector.load %arg11[%c32_67, %c0_68] : memref<48x512xf32, #tpu.memory_space<vmem>>, vector<16x512xf32>
    tpu.vector_store %arg11[%c32_67, %c0_68], %119 {strides = array<i32>} : memref<48x512xf32, #tpu.memory_space<vmem>>, vector<16x512xf32>,
    %c0_69 = arith.constant 0 : index
    %c0_70 = arith.constant 0 : index
    %121 = vector.load %arg11[%c0_69, %c0_70] : memref<48x512xf32, #tpu.memory_space<vmem>>, vector<48x512xf32>
    %cst_71 = arith.constant dense<0.000000e+00> : vector<16x512xf32>
    %122 = tpu.matmul %12, %121, %cst_71 {dimension_numbers = #tpu.dot_dimension_numbers<[1], [0], [0], [1], [0, 0, 1, 1], [], []>} : vector<16x48xf32>, vector<48x512xf32>, vector<16x512xf32> -> vector<16x512xf32>
    %123 = vector.broadcast %18 : vector<16x1xf32> to vector<16x512xf32>
    %124 = arith.addf %122, %123 : vector<16x512xf32>
    %cst_72 = arith.constant 0.000000e+00 : f32
    %125 = vector.broadcast %cst_72 : f32 to vector<16x512xf32>
    %126 = arith.maximumf %124, %125 : vector<16x512xf32>
    %127 = vector.extract_strided_slice %126 {offsets = [0, 0], sizes = [16, 256], strides = [1, 1]} : vector<16x512xf32> to vector<16x256xf32>
    %cst_73 = arith.constant dense<0.000000e+00> : vector<16xf32>
    %128 = vector.multi_reduction <add>, %127, %cst_73 [1] : vector<16x256xf32> to vector<16xf32>
    %129 = vector.shape_cast %128 : vector<16xf32> to vector<16x1xf32>
    %cst_74 = arith.constant 2.560000e+02 : f32
    %130 = vector.broadcast %cst_74 : f32 to vector<16x1xf32>
    %131 = arith.divf %129, %130 : vector<16x1xf32>
    %132 = vector.broadcast %131 : vector<16x1xf32> to vector<16x256xf32>
    %133 = arith.subf %127, %132 : vector<16x256xf32>
    %134 = arith.mulf %133, %133 : vector<16x256xf32>
    %cst_75 = arith.constant dense<0.000000e+00> : vector<16xf32>
    %135 = vector.multi_reduction <add>, %134, %cst_75 [1] : vector<16x256xf32> to vector<16xf32>
    %136 = vector.shape_cast %135 : vector<16xf32> to vector<16x1xf32>
    %cst_76 = arith.constant 0.00392156886 : f32
    %137 = vector.broadcast %cst_76 : f32 to vector<16x1xf32>
    %138 = arith.mulf %136, %137 : vector<16x1xf32>
    %139 = math.sqrt %138 : vector<16x1xf32>
    %cst_77 = arith.constant 9.99999997E-7 : f32
    %140 = vector.broadcast %cst_77 : f32 to vector<16x1xf32>
    %141 = arith.addf %139, %140 : vector<16x1xf32>
    %cst_78 = arith.constant 1.000000e+00 : f32
    %142 = vector.broadcast %cst_78 : f32 to vector<16x1xf32>
    %143 = arith.divf %142, %141 : vector<16x1xf32>
    %144 = vector.broadcast %143 : vector<16x1xf32> to vector<16x256xf32>
    %145 = arith.mulf %133, %144 : vector<16x256xf32>
    %146 = vector.extract_strided_slice %126 {offsets = [0, 256], sizes = [16, 256], strides = [1, 1]} : vector<16x512xf32> to vector<16x256xf32>
    %cst_79 = arith.constant dense<0.000000e+00> : vector<16xf32>
    %147 = vector.multi_reduction <add>, %146, %cst_79 [1] : vector<16x256xf32> to vector<16xf32>
    %148 = vector.shape_cast %147 : vector<16xf32> to vector<16x1xf32>
    %cst_80 = arith.constant 2.560000e+02 : f32
    %149 = vector.broadcast %cst_80 : f32 to vector<16x1xf32>
    %150 = arith.divf %148, %149 : vector<16x1xf32>
    %151 = vector.broadcast %150 : vector<16x1xf32> to vector<16x256xf32>
    %152 = arith.subf %146, %151 : vector<16x256xf32>
    %153 = arith.mulf %152, %152 : vector<16x256xf32>
    %cst_81 = arith.constant dense<0.000000e+00> : vector<16xf32>
    %154 = vector.multi_reduction <add>, %153, %cst_81 [1] : vector<16x256xf32> to vector<16xf32>
    %155 = vector.shape_cast %154 : vector<16xf32> to vector<16x1xf32>
    %cst_82 = arith.constant 0.00392156886 : f32
    %156 = vector.broadcast %cst_82 : f32 to vector<16x1xf32>
    %157 = arith.mulf %155, %156 : vector<16x1xf32>
    %158 = math.sqrt %157 : vector<16x1xf32>
    %cst_83 = arith.constant 9.99999997E-7 : f32
    %159 = vector.broadcast %cst_83 : f32 to vector<16x1xf32>
    %160 = arith.addf %158, %159 : vector<16x1xf32>
    %cst_84 = arith.constant 1.000000e+00 : f32
    %161 = vector.broadcast %cst_84 : f32 to vector<16x1xf32>
    %162 = arith.divf %161, %160 : vector<16x1xf32>
    %163 = vector.broadcast %162 : vector<16x1xf32> to vector<16x256xf32>
    %164 = arith.mulf %152, %163 : vector<16x256xf32>
    %165 = tpu.concatenate %145, %164 in 1 : vector<16x256xf32>, vector<16x256xf32> -> vector<16x512xf32>
    %166 = vector.broadcast %5 : vector<1x512xf32> to vector<16x512xf32>
    %167 = arith.mulf %166, %165 : vector<16x512xf32>
    %168 = vector.broadcast %6 : vector<1x512xf32> to vector<16x512xf32>
    %169 = arith.addf %167, %168 : vector<16x512xf32>
    %c1_i32_85 = arith.constant 1 : i32
    %170 = tpu.dynamic_rotate %169 by %c1_i32_85 dim 1 : vector<16x512xf32>, i32 -> vector<16x512xf32>
    %171 = vector.broadcast %25 : vector<1x512xf32> to vector<16x512xf32>
    %172 = arith.mulf %170, %171 : vector<16x512xf32>
    %c0_86 = arith.constant 0 : index
    %c0_87 = arith.constant 0 : index
    %173 = vector.load %arg11[%c0_86, %c0_87] : memref<48x512xf32, #tpu.memory_space<vmem>>, vector<16x512xf32>
    tpu.vector_store %arg11[%c0_86, %c0_87], %172 {strides = array<i32>} : memref<48x512xf32, #tpu.memory_space<vmem>>, vector<16x512xf32>,
    %c16_88 = arith.constant 16 : index
    %c0_89 = arith.constant 0 : index
    %174 = vector.load %arg11[%c16_88, %c0_89] : memref<48x512xf32, #tpu.memory_space<vmem>>, vector<16x512xf32>
    tpu.vector_store %arg11[%c16_88, %c0_89], %169 {strides = array<i32>} : memref<48x512xf32, #tpu.memory_space<vmem>>, vector<16x512xf32>,
    %c511_i32_90 = arith.constant 511 : i32
    %175 = tpu.dynamic_rotate %169 by %c511_i32_90 dim 1 : vector<16x512xf32>, i32 -> vector<16x512xf32>
    %176 = vector.broadcast %33 : vector<1x512xf32> to vector<16x512xf32>
    %177 = arith.mulf %175, %176 : vector<16x512xf32>
    %c32_91 = arith.constant 32 : index
    %c0_92 = arith.constant 0 : index
    %178 = vector.load %arg11[%c32_91, %c0_92] : memref<48x512xf32, #tpu.memory_space<vmem>>, vector<16x512xf32>
    tpu.vector_store %arg11[%c32_91, %c0_92], %177 {strides = array<i32>} : memref<48x512xf32, #tpu.memory_space<vmem>>, vector<16x512xf32>,
    %c0_93 = arith.constant 0 : index
    %c0_94 = arith.constant 0 : index
    %179 = vector.load %arg11[%c0_93, %c0_94] : memref<48x512xf32, #tpu.memory_space<vmem>>, vector<48x512xf32>
    %cst_95 = arith.constant dense<0.000000e+00> : vector<16x512xf32>
    %180 = tpu.matmul %8, %179, %cst_95 {dimension_numbers = #tpu.dot_dimension_numbers<[1], [0], [0], [1], [0, 0, 1, 1], [], []>} : vector<16x48xf32>, vector<48x512xf32>, vector<16x512xf32> -> vector<16x512xf32>
    %181 = vector.broadcast %14 : vector<16x1xf32> to vector<16x512xf32>
    %182 = arith.addf %180, %181 : vector<16x512xf32>
    %cst_96 = arith.constant 0.000000e+00 : f32
    %183 = vector.broadcast %cst_96 : f32 to vector<16x512xf32>
    %184 = arith.maximumf %182, %183 : vector<16x512xf32>
    %185 = vector.extract_strided_slice %184 {offsets = [0, 0], sizes = [16, 256], strides = [1, 1]} : vector<16x512xf32> to vector<16x256xf32>
    %cst_97 = arith.constant dense<0.000000e+00> : vector<16xf32>
    %186 = vector.multi_reduction <add>, %185, %cst_97 [1] : vector<16x256xf32> to vector<16xf32>
    %187 = vector.shape_cast %186 : vector<16xf32> to vector<16x1xf32>
    %cst_98 = arith.constant 2.560000e+02 : f32
    %188 = vector.broadcast %cst_98 : f32 to vector<16x1xf32>
    %189 = arith.divf %187, %188 : vector<16x1xf32>
    %190 = vector.broadcast %189 : vector<16x1xf32> to vector<16x256xf32>
    %191 = arith.subf %185, %190 : vector<16x256xf32>
    %192 = arith.mulf %191, %191 : vector<16x256xf32>
    %cst_99 = arith.constant dense<0.000000e+00> : vector<16xf32>
    %193 = vector.multi_reduction <add>, %192, %cst_99 [1] : vector<16x256xf32> to vector<16xf32>
    %194 = vector.shape_cast %193 : vector<16xf32> to vector<16x1xf32>
    %cst_100 = arith.constant 0.00392156886 : f32
    %195 = vector.broadcast %cst_100 : f32 to vector<16x1xf32>
    %196 = arith.mulf %194, %195 : vector<16x1xf32>
    %197 = math.sqrt %196 : vector<16x1xf32>
    %cst_101 = arith.constant 9.99999997E-7 : f32
    %198 = vector.broadcast %cst_101 : f32 to vector<16x1xf32>
    %199 = arith.addf %197, %198 : vector<16x1xf32>
    %cst_102 = arith.constant 1.000000e+00 : f32
    %200 = vector.broadcast %cst_102 : f32 to vector<16x1xf32>
    %201 = arith.divf %200, %199 : vector<16x1xf32>
    %202 = vector.broadcast %201 : vector<16x1xf32> to vector<16x256xf32>
    %203 = arith.mulf %191, %202 : vector<16x256xf32>
    %204 = vector.extract_strided_slice %184 {offsets = [0, 256], sizes = [16, 256], strides = [1, 1]} : vector<16x512xf32> to vector<16x256xf32>
    %cst_103 = arith.constant dense<0.000000e+00> : vector<16xf32>
    %205 = vector.multi_reduction <add>, %204, %cst_103 [1] : vector<16x256xf32> to vector<16xf32>
    %206 = vector.shape_cast %205 : vector<16xf32> to vector<16x1xf32>
    %cst_104 = arith.constant 2.560000e+02 : f32
    %207 = vector.broadcast %cst_104 : f32 to vector<16x1xf32>
    %208 = arith.divf %206, %207 : vector<16x1xf32>
    %209 = vector.broadcast %208 : vector<16x1xf32> to vector<16x256xf32>
    %210 = arith.subf %204, %209 : vector<16x256xf32>
    %211 = arith.mulf %210, %210 : vector<16x256xf32>
    %cst_105 = arith.constant dense<0.000000e+00> : vector<16xf32>
    %212 = vector.multi_reduction <add>, %211, %cst_105 [1] : vector<16x256xf32> to vector<16xf32>
    %213 = vector.shape_cast %212 : vector<16xf32> to vector<16x1xf32>
    %cst_106 = arith.constant 0.00392156886 : f32
    %214 = vector.broadcast %cst_106 : f32 to vector<16x1xf32>
    %215 = arith.mulf %213, %214 : vector<16x1xf32>
    %216 = math.sqrt %215 : vector<16x1xf32>
    %cst_107 = arith.constant 9.99999997E-7 : f32
    %217 = vector.broadcast %cst_107 : f32 to vector<16x1xf32>
    %218 = arith.addf %216, %217 : vector<16x1xf32>
    %cst_108 = arith.constant 1.000000e+00 : f32
    %219 = vector.broadcast %cst_108 : f32 to vector<16x1xf32>
    %220 = arith.divf %219, %218 : vector<16x1xf32>
    %221 = vector.broadcast %220 : vector<16x1xf32> to vector<16x256xf32>
    %222 = arith.mulf %210, %221 : vector<16x256xf32>
    %223 = tpu.concatenate %203, %222 in 1 : vector<16x256xf32>, vector<16x256xf32> -> vector<16x512xf32>
    %224 = vector.broadcast %3 : vector<1x512xf32> to vector<16x512xf32>
    %225 = arith.mulf %224, %223 : vector<16x512xf32>
    %226 = vector.broadcast %4 : vector<1x512xf32> to vector<16x512xf32>
    %227 = arith.addf %225, %226 : vector<16x512xf32>
    %c1_i32_109 = arith.constant 1 : i32
    %228 = tpu.dynamic_rotate %227 by %c1_i32_109 dim 1 : vector<16x512xf32>, i32 -> vector<16x512xf32>
    %229 = vector.broadcast %25 : vector<1x512xf32> to vector<16x512xf32>
    %230 = arith.mulf %228, %229 : vector<16x512xf32>
    %c0_110 = arith.constant 0 : index
    %c0_111 = arith.constant 0 : index
    %231 = vector.load %arg11[%c0_110, %c0_111] : memref<48x512xf32, #tpu.memory_space<vmem>>, vector<16x512xf32>
    tpu.vector_store %arg11[%c0_110, %c0_111], %230 {strides = array<i32>} : memref<48x512xf32, #tpu.memory_space<vmem>>, vector<16x512xf32>,
    %c16_112 = arith.constant 16 : index
    %c0_113 = arith.constant 0 : index
    %232 = vector.load %arg11[%c16_112, %c0_113] : memref<48x512xf32, #tpu.memory_space<vmem>>, vector<16x512xf32>
    tpu.vector_store %arg11[%c16_112, %c0_113], %227 {strides = array<i32>} : memref<48x512xf32, #tpu.memory_space<vmem>>, vector<16x512xf32>,
    %c511_i32_114 = arith.constant 511 : i32
    %233 = tpu.dynamic_rotate %227 by %c511_i32_114 dim 1 : vector<16x512xf32>, i32 -> vector<16x512xf32>
    %234 = vector.broadcast %33 : vector<1x512xf32> to vector<16x512xf32>
    %235 = arith.mulf %233, %234 : vector<16x512xf32>
    %c32_115 = arith.constant 32 : index
    %c0_116 = arith.constant 0 : index
    %236 = vector.load %arg11[%c32_115, %c0_116] : memref<48x512xf32, #tpu.memory_space<vmem>>, vector<16x512xf32>
    tpu.vector_store %arg11[%c32_115, %c0_116], %235 {strides = array<i32>} : memref<48x512xf32, #tpu.memory_space<vmem>>, vector<16x512xf32>,
    %c0_117 = arith.constant 0 : index
    %c0_118 = arith.constant 0 : index
    %237 = vector.load %arg11[%c0_117, %c0_118] : memref<48x512xf32, #tpu.memory_space<vmem>>, vector<48x512xf32>
    %cst_119 = arith.constant dense<0.000000e+00> : vector<16x512xf32>
    %238 = tpu.matmul %10, %237, %cst_119 {dimension_numbers = #tpu.dot_dimension_numbers<[1], [0], [0], [1], [0, 0, 1, 1], [], []>} : vector<16x48xf32>, vector<48x512xf32>, vector<16x512xf32> -> vector<16x512xf32>
    %239 = vector.broadcast %16 : vector<16x1xf32> to vector<16x512xf32>
    %240 = arith.addf %238, %239 : vector<16x512xf32>
    %c2_i32_120 = arith.constant 2 : i32
    %241 = tpu.dynamic_rotate %240 by %c2_i32_120 dim 1 : vector<16x512xf32>, i32 -> vector<16x512xf32>
    %242 = vector.broadcast %29 : vector<1x512xf32> to vector<16x512xf32>
    %243 = arith.mulf %241, %242 : vector<16x512xf32>
    %c0_121 = arith.constant 0 : index
    %c0_122 = arith.constant 0 : index
    %244 = vector.load %arg11[%c0_121, %c0_122] : memref<48x512xf32, #tpu.memory_space<vmem>>, vector<16x512xf32>
    tpu.vector_store %arg11[%c0_121, %c0_122], %243 {strides = array<i32>} : memref<48x512xf32, #tpu.memory_space<vmem>>, vector<16x512xf32>,
    %c16_123 = arith.constant 16 : index
    %c0_124 = arith.constant 0 : index
    %245 = vector.load %arg11[%c16_123, %c0_124] : memref<48x512xf32, #tpu.memory_space<vmem>>, vector<16x512xf32>
    tpu.vector_store %arg11[%c16_123, %c0_124], %240 {strides = array<i32>} : memref<48x512xf32, #tpu.memory_space<vmem>>, vector<16x512xf32>,
    %c510_i32_125 = arith.constant 510 : i32
    %246 = tpu.dynamic_rotate %240 by %c510_i32_125 dim 1 : vector<16x512xf32>, i32 -> vector<16x512xf32>
    %247 = vector.broadcast %37 : vector<1x512xf32> to vector<16x512xf32>
    %248 = arith.mulf %246, %247 : vector<16x512xf32>
    %c32_126 = arith.constant 32 : index
    %c0_127 = arith.constant 0 : index
    %249 = vector.load %arg11[%c32_126, %c0_127] : memref<48x512xf32, #tpu.memory_space<vmem>>, vector<16x512xf32>
    tpu.vector_store %arg11[%c32_126, %c0_127], %248 {strides = array<i32>} : memref<48x512xf32, #tpu.memory_space<vmem>>, vector<16x512xf32>,
    %c0_128 = arith.constant 0 : index
    %c0_129 = arith.constant 0 : index
    %250 = vector.load %arg11[%c0_128, %c0_129] : memref<48x512xf32, #tpu.memory_space<vmem>>, vector<48x512xf32>
    %cst_130 = arith.constant dense<0.000000e+00> : vector<16x512xf32>
    %251 = tpu.matmul %12, %250, %cst_130 {dimension_numbers = #tpu.dot_dimension_numbers<[1], [0], [0], [1], [0, 0, 1, 1], [], []>} : vector<16x48xf32>, vector<48x512xf32>, vector<16x512xf32> -> vector<16x512xf32>
    %252 = vector.broadcast %18 : vector<16x1xf32> to vector<16x512xf32>
    %253 = arith.addf %251, %252 : vector<16x512xf32>
    %c1_i32_131 = arith.constant 1 : i32
    %254 = tpu.dynamic_rotate %253 by %c1_i32_131 dim 1 : vector<16x512xf32>, i32 -> vector<16x512xf32>
    %255 = vector.broadcast %25 : vector<1x512xf32> to vector<16x512xf32>
    %256 = arith.mulf %254, %255 : vector<16x512xf32>
    %c0_132 = arith.constant 0 : index
    %c0_133 = arith.constant 0 : index
    %257 = vector.load %arg11[%c0_132, %c0_133] : memref<48x512xf32, #tpu.memory_space<vmem>>, vector<16x512xf32>
    tpu.vector_store %arg11[%c0_132, %c0_133], %256 {strides = array<i32>} : memref<48x512xf32, #tpu.memory_space<vmem>>, vector<16x512xf32>,
    %c16_134 = arith.constant 16 : index
    %c0_135 = arith.constant 0 : index
    %258 = vector.load %arg11[%c16_134, %c0_135] : memref<48x512xf32, #tpu.memory_space<vmem>>, vector<16x512xf32>
    tpu.vector_store %arg11[%c16_134, %c0_135], %253 {strides = array<i32>} : memref<48x512xf32, #tpu.memory_space<vmem>>, vector<16x512xf32>,
    %c511_i32_136 = arith.constant 511 : i32
    %259 = tpu.dynamic_rotate %253 by %c511_i32_136 dim 1 : vector<16x512xf32>, i32 -> vector<16x512xf32>
    %260 = vector.broadcast %33 : vector<1x512xf32> to vector<16x512xf32>
    %261 = arith.mulf %259, %260 : vector<16x512xf32>
    %c32_137 = arith.constant 32 : index
    %c0_138 = arith.constant 0 : index
    %262 = vector.load %arg11[%c32_137, %c0_138] : memref<48x512xf32, #tpu.memory_space<vmem>>, vector<16x512xf32>
    tpu.vector_store %arg11[%c32_137, %c0_138], %261 {strides = array<i32>} : memref<48x512xf32, #tpu.memory_space<vmem>>, vector<16x512xf32>,
    %c0_139 = arith.constant 0 : index
    %c0_140 = arith.constant 0 : index
    %263 = vector.load %arg11[%c0_139, %c0_140] : memref<48x512xf32, #tpu.memory_space<vmem>>, vector<48x512xf32>
    %cst_141 = arith.constant dense<0.000000e+00> : vector<16x512xf32>
    %264 = tpu.matmul %8, %263, %cst_141 {dimension_numbers = #tpu.dot_dimension_numbers<[1], [0], [0], [1], [0, 0, 1, 1], [], []>} : vector<16x48xf32>, vector<48x512xf32>, vector<16x512xf32> -> vector<16x512xf32>
    %265 = vector.broadcast %14 : vector<16x1xf32> to vector<16x512xf32>
    %266 = arith.addf %264, %265 : vector<16x512xf32>
    %cst_142 = arith.constant 0.000000e+00 : f32
    %267 = vector.broadcast %cst_142 : f32 to vector<16x512xf32>
    %268 = arith.maximumf %266, %267 : vector<16x512xf32>
    %269 = vector.extract_strided_slice %268 {offsets = [0, 0], sizes = [16, 256], strides = [1, 1]} : vector<16x512xf32> to vector<16x256xf32>
    %cst_143 = arith.constant dense<0.000000e+00> : vector<16xf32>
    %270 = vector.multi_reduction <add>, %269, %cst_143 [1] : vector<16x256xf32> to vector<16xf32>
    %271 = vector.shape_cast %270 : vector<16xf32> to vector<16x1xf32>
    %cst_144 = arith.constant 2.560000e+02 : f32
    %272 = vector.broadcast %cst_144 : f32 to vector<16x1xf32>
    %273 = arith.divf %271, %272 : vector<16x1xf32>
    %274 = vector.broadcast %273 : vector<16x1xf32> to vector<16x256xf32>
    %275 = arith.subf %269, %274 : vector<16x256xf32>
    %276 = arith.mulf %275, %275 : vector<16x256xf32>
    %cst_145 = arith.constant dense<0.000000e+00> : vector<16xf32>
    %277 = vector.multi_reduction <add>, %276, %cst_145 [1] : vector<16x256xf32> to vector<16xf32>
    %278 = vector.shape_cast %277 : vector<16xf32> to vector<16x1xf32>
    %cst_146 = arith.constant 0.00392156886 : f32
    %279 = vector.broadcast %cst_146 : f32 to vector<16x1xf32>
    %280 = arith.mulf %278, %279 : vector<16x1xf32>
    %281 = math.sqrt %280 : vector<16x1xf32>
    %cst_147 = arith.constant 9.99999997E-7 : f32
    %282 = vector.broadcast %cst_147 : f32 to vector<16x1xf32>
    %283 = arith.addf %281, %282 : vector<16x1xf32>
    %cst_148 = arith.constant 1.000000e+00 : f32
    %284 = vector.broadcast %cst_148 : f32 to vector<16x1xf32>
    %285 = arith.divf %284, %283 : vector<16x1xf32>
    %286 = vector.broadcast %285 : vector<16x1xf32> to vector<16x256xf32>
    %287 = arith.mulf %275, %286 : vector<16x256xf32>
    %288 = vector.extract_strided_slice %268 {offsets = [0, 256], sizes = [16, 256], strides = [1, 1]} : vector<16x512xf32> to vector<16x256xf32>
    %cst_149 = arith.constant dense<0.000000e+00> : vector<16xf32>
    %289 = vector.multi_reduction <add>, %288, %cst_149 [1] : vector<16x256xf32> to vector<16xf32>
    %290 = vector.shape_cast %289 : vector<16xf32> to vector<16x1xf32>
    %cst_150 = arith.constant 2.560000e+02 : f32
    %291 = vector.broadcast %cst_150 : f32 to vector<16x1xf32>
    %292 = arith.divf %290, %291 : vector<16x1xf32>
    %293 = vector.broadcast %292 : vector<16x1xf32> to vector<16x256xf32>
    %294 = arith.subf %288, %293 : vector<16x256xf32>
    %295 = arith.mulf %294, %294 : vector<16x256xf32>
    %cst_151 = arith.constant dense<0.000000e+00> : vector<16xf32>
    %296 = vector.multi_reduction <add>, %295, %cst_151 [1] : vector<16x256xf32> to vector<16xf32>
    %297 = vector.shape_cast %296 : vector<16xf32> to vector<16x1xf32>
    %cst_152 = arith.constant 0.00392156886 : f32
    %298 = vector.broadcast %cst_152 : f32 to vector<16x1xf32>
    %299 = arith.mulf %297, %298 : vector<16x1xf32>
    %300 = math.sqrt %299 : vector<16x1xf32>
    %cst_153 = arith.constant 9.99999997E-7 : f32
    %301 = vector.broadcast %cst_153 : f32 to vector<16x1xf32>
    %302 = arith.addf %300, %301 : vector<16x1xf32>
    %cst_154 = arith.constant 1.000000e+00 : f32
    %303 = vector.broadcast %cst_154 : f32 to vector<16x1xf32>
    %304 = arith.divf %303, %302 : vector<16x1xf32>
    %305 = vector.broadcast %304 : vector<16x1xf32> to vector<16x256xf32>
    %306 = arith.mulf %294, %305 : vector<16x256xf32>
    %307 = tpu.concatenate %287, %306 in 1 : vector<16x256xf32>, vector<16x256xf32> -> vector<16x512xf32>
    %308 = vector.broadcast %3 : vector<1x512xf32> to vector<16x512xf32>
    %309 = arith.mulf %308, %307 : vector<16x512xf32>
    %310 = vector.broadcast %4 : vector<1x512xf32> to vector<16x512xf32>
    %311 = arith.addf %309, %310 : vector<16x512xf32>
    %c1_i32_155 = arith.constant 1 : i32
    %312 = tpu.dynamic_rotate %311 by %c1_i32_155 dim 1 : vector<16x512xf32>, i32 -> vector<16x512xf32>
    %313 = vector.broadcast %25 : vector<1x512xf32> to vector<16x512xf32>
    %314 = arith.mulf %312, %313 : vector<16x512xf32>
    %c0_156 = arith.constant 0 : index
    %c0_157 = arith.constant 0 : index
    %315 = vector.load %arg11[%c0_156, %c0_157] : memref<48x512xf32, #tpu.memory_space<vmem>>, vector<16x512xf32>
    tpu.vector_store %arg11[%c0_156, %c0_157], %314 {strides = array<i32>} : memref<48x512xf32, #tpu.memory_space<vmem>>, vector<16x512xf32>,
    %c16_158 = arith.constant 16 : index
    %c0_159 = arith.constant 0 : index
    %316 = vector.load %arg11[%c16_158, %c0_159] : memref<48x512xf32, #tpu.memory_space<vmem>>, vector<16x512xf32>
    tpu.vector_store %arg11[%c16_158, %c0_159], %311 {strides = array<i32>} : memref<48x512xf32, #tpu.memory_space<vmem>>, vector<16x512xf32>,
    %c511_i32_160 = arith.constant 511 : i32
    %317 = tpu.dynamic_rotate %311 by %c511_i32_160 dim 1 : vector<16x512xf32>, i32 -> vector<16x512xf32>
    %318 = vector.broadcast %33 : vector<1x512xf32> to vector<16x512xf32>
    %319 = arith.mulf %317, %318 : vector<16x512xf32>
    %c32_161 = arith.constant 32 : index
    %c0_162 = arith.constant 0 : index
    %320 = vector.load %arg11[%c32_161, %c0_162] : memref<48x512xf32, #tpu.memory_space<vmem>>, vector<16x512xf32>
    tpu.vector_store %arg11[%c32_161, %c0_162], %319 {strides = array<i32>} : memref<48x512xf32, #tpu.memory_space<vmem>>, vector<16x512xf32>,
    %c0_163 = arith.constant 0 : index
    %c0_164 = arith.constant 0 : index
    %321 = vector.load %arg11[%c0_163, %c0_164] : memref<48x512xf32, #tpu.memory_space<vmem>>, vector<48x512xf32>
    %cst_165 = arith.constant dense<0.000000e+00> : vector<16x512xf32>
    %322 = tpu.matmul %10, %321, %cst_165 {dimension_numbers = #tpu.dot_dimension_numbers<[1], [0], [0], [1], [0, 0, 1, 1], [], []>} : vector<16x48xf32>, vector<48x512xf32>, vector<16x512xf32> -> vector<16x512xf32>
    %323 = vector.broadcast %16 : vector<16x1xf32> to vector<16x512xf32>
    %324 = arith.addf %322, %323 : vector<16x512xf32>
    %c2_i32_166 = arith.constant 2 : i32
    %325 = tpu.dynamic_rotate %324 by %c2_i32_166 dim 1 : vector<16x512xf32>, i32 -> vector<16x512xf32>
    %326 = vector.broadcast %29 : vector<1x512xf32> to vector<16x512xf32>
    %327 = arith.mulf %325, %326 : vector<16x512xf32>
    %c0_167 = arith.constant 0 : index
    %c0_168 = arith.constant 0 : index
    %328 = vector.load %arg11[%c0_167, %c0_168] : memref<48x512xf32, #tpu.memory_space<vmem>>, vector<16x512xf32>
    tpu.vector_store %arg11[%c0_167, %c0_168], %327 {strides = array<i32>} : memref<48x512xf32, #tpu.memory_space<vmem>>, vector<16x512xf32>,
    %c16_169 = arith.constant 16 : index
    %c0_170 = arith.constant 0 : index
    %329 = vector.load %arg11[%c16_169, %c0_170] : memref<48x512xf32, #tpu.memory_space<vmem>>, vector<16x512xf32>
    tpu.vector_store %arg11[%c16_169, %c0_170], %324 {strides = array<i32>} : memref<48x512xf32, #tpu.memory_space<vmem>>, vector<16x512xf32>,
    %c510_i32_171 = arith.constant 510 : i32
    %330 = tpu.dynamic_rotate %324 by %c510_i32_171 dim 1 : vector<16x512xf32>, i32 -> vector<16x512xf32>
    %331 = vector.broadcast %37 : vector<1x512xf32> to vector<16x512xf32>
    %332 = arith.mulf %330, %331 : vector<16x512xf32>
    %c32_172 = arith.constant 32 : index
    %c0_173 = arith.constant 0 : index
    %333 = vector.load %arg11[%c32_172, %c0_173] : memref<48x512xf32, #tpu.memory_space<vmem>>, vector<16x512xf32>
    tpu.vector_store %arg11[%c32_172, %c0_173], %332 {strides = array<i32>} : memref<48x512xf32, #tpu.memory_space<vmem>>, vector<16x512xf32>,
    %c0_174 = arith.constant 0 : index
    %c0_175 = arith.constant 0 : index
    %334 = vector.load %arg11[%c0_174, %c0_175] : memref<48x512xf32, #tpu.memory_space<vmem>>, vector<48x512xf32>
    %cst_176 = arith.constant dense<0.000000e+00> : vector<16x512xf32>
    %335 = tpu.matmul %12, %334, %cst_176 {dimension_numbers = #tpu.dot_dimension_numbers<[1], [0], [0], [1], [0, 0, 1, 1], [], []>} : vector<16x48xf32>, vector<48x512xf32>, vector<16x512xf32> -> vector<16x512xf32>
    %336 = vector.broadcast %18 : vector<16x1xf32> to vector<16x512xf32>
    %337 = arith.addf %335, %336 : vector<16x512xf32>
    %c1_i32_177 = arith.constant 1 : i32
    %338 = tpu.dynamic_rotate %337 by %c1_i32_177 dim 1 : vector<16x512xf32>, i32 -> vector<16x512xf32>
    %339 = vector.broadcast %25 : vector<1x512xf32> to vector<16x512xf32>
    %340 = arith.mulf %338, %339 : vector<16x512xf32>
    %c0_178 = arith.constant 0 : index
    %c0_179 = arith.constant 0 : index
    %341 = vector.load %arg11[%c0_178, %c0_179] : memref<48x512xf32, #tpu.memory_space<vmem>>, vector<16x512xf32>
    tpu.vector_store %arg11[%c0_178, %c0_179], %340 {strides = array<i32>} : memref<48x512xf32, #tpu.memory_space<vmem>>, vector<16x512xf32>,
    %c16_180 = arith.constant 16 : index
    %c0_181 = arith.constant 0 : index
    %342 = vector.load %arg11[%c16_180, %c0_181] : memref<48x512xf32, #tpu.memory_space<vmem>>, vector<16x512xf32>
    tpu.vector_store %arg11[%c16_180, %c0_181], %337 {strides = array<i32>} : memref<48x512xf32, #tpu.memory_space<vmem>>, vector<16x512xf32>,
    %c511_i32_182 = arith.constant 511 : i32
    %343 = tpu.dynamic_rotate %337 by %c511_i32_182 dim 1 : vector<16x512xf32>, i32 -> vector<16x512xf32>
    %344 = vector.broadcast %33 : vector<1x512xf32> to vector<16x512xf32>
    %345 = arith.mulf %343, %344 : vector<16x512xf32>
    %c32_183 = arith.constant 32 : index
    %c0_184 = arith.constant 0 : index
    %346 = vector.load %arg11[%c32_183, %c0_184] : memref<48x512xf32, #tpu.memory_space<vmem>>, vector<16x512xf32>
    tpu.vector_store %arg11[%c32_183, %c0_184], %345 {strides = array<i32>} : memref<48x512xf32, #tpu.memory_space<vmem>>, vector<16x512xf32>,
    %c0_185 = arith.constant 0 : index
    %c0_186 = arith.constant 0 : index
    %347 = vector.load %arg11[%c0_185, %c0_186] : memref<48x512xf32, #tpu.memory_space<vmem>>, vector<48x512xf32>
    %cst_187 = arith.constant dense<0.000000e+00> : vector<16x512xf32>
    %348 = tpu.matmul %8, %347, %cst_187 {dimension_numbers = #tpu.dot_dimension_numbers<[1], [0], [0], [1], [0, 0, 1, 1], [], []>} : vector<16x48xf32>, vector<48x512xf32>, vector<16x512xf32> -> vector<16x512xf32>
    %349 = vector.broadcast %14 : vector<16x1xf32> to vector<16x512xf32>
    %350 = arith.addf %348, %349 : vector<16x512xf32>
    %cst_188 = arith.constant 0.000000e+00 : f32
    %351 = vector.broadcast %cst_188 : f32 to vector<16x512xf32>
    %352 = arith.maximumf %350, %351 : vector<16x512xf32>
    %353 = vector.extract_strided_slice %352 {offsets = [0, 0], sizes = [16, 256], strides = [1, 1]} : vector<16x512xf32> to vector<16x256xf32>
    %cst_189 = arith.constant dense<0.000000e+00> : vector<16xf32>
    %354 = vector.multi_reduction <add>, %353, %cst_189 [1] : vector<16x256xf32> to vector<16xf32>
    %355 = vector.shape_cast %354 : vector<16xf32> to vector<16x1xf32>
    %cst_190 = arith.constant 2.560000e+02 : f32
    %356 = vector.broadcast %cst_190 : f32 to vector<16x1xf32>
    %357 = arith.divf %355, %356 : vector<16x1xf32>
    %358 = vector.broadcast %357 : vector<16x1xf32> to vector<16x256xf32>
    %359 = arith.subf %353, %358 : vector<16x256xf32>
    %360 = arith.mulf %359, %359 : vector<16x256xf32>
    %cst_191 = arith.constant dense<0.000000e+00> : vector<16xf32>
    %361 = vector.multi_reduction <add>, %360, %cst_191 [1] : vector<16x256xf32> to vector<16xf32>
    %362 = vector.shape_cast %361 : vector<16xf32> to vector<16x1xf32>
    %cst_192 = arith.constant 0.00392156886 : f32
    %363 = vector.broadcast %cst_192 : f32 to vector<16x1xf32>
    %364 = arith.mulf %362, %363 : vector<16x1xf32>
    %365 = math.sqrt %364 : vector<16x1xf32>
    %cst_193 = arith.constant 9.99999997E-7 : f32
    %366 = vector.broadcast %cst_193 : f32 to vector<16x1xf32>
    %367 = arith.addf %365, %366 : vector<16x1xf32>
    %cst_194 = arith.constant 1.000000e+00 : f32
    %368 = vector.broadcast %cst_194 : f32 to vector<16x1xf32>
    %369 = arith.divf %368, %367 : vector<16x1xf32>
    %370 = vector.broadcast %369 : vector<16x1xf32> to vector<16x256xf32>
    %371 = arith.mulf %359, %370 : vector<16x256xf32>
    %372 = vector.extract_strided_slice %352 {offsets = [0, 256], sizes = [16, 256], strides = [1, 1]} : vector<16x512xf32> to vector<16x256xf32>
    %cst_195 = arith.constant dense<0.000000e+00> : vector<16xf32>
    %373 = vector.multi_reduction <add>, %372, %cst_195 [1] : vector<16x256xf32> to vector<16xf32>
    %374 = vector.shape_cast %373 : vector<16xf32> to vector<16x1xf32>
    %cst_196 = arith.constant 2.560000e+02 : f32
    %375 = vector.broadcast %cst_196 : f32 to vector<16x1xf32>
    %376 = arith.divf %374, %375 : vector<16x1xf32>
    %377 = vector.broadcast %376 : vector<16x1xf32> to vector<16x256xf32>
    %378 = arith.subf %372, %377 : vector<16x256xf32>
    %379 = arith.mulf %378, %378 : vector<16x256xf32>
    %cst_197 = arith.constant dense<0.000000e+00> : vector<16xf32>
    %380 = vector.multi_reduction <add>, %379, %cst_197 [1] : vector<16x256xf32> to vector<16xf32>
    %381 = vector.shape_cast %380 : vector<16xf32> to vector<16x1xf32>
    %cst_198 = arith.constant 0.00392156886 : f32
    %382 = vector.broadcast %cst_198 : f32 to vector<16x1xf32>
    %383 = arith.mulf %381, %382 : vector<16x1xf32>
    %384 = math.sqrt %383 : vector<16x1xf32>
    %cst_199 = arith.constant 9.99999997E-7 : f32
    %385 = vector.broadcast %cst_199 : f32 to vector<16x1xf32>
    %386 = arith.addf %384, %385 : vector<16x1xf32>
    %cst_200 = arith.constant 1.000000e+00 : f32
    %387 = vector.broadcast %cst_200 : f32 to vector<16x1xf32>
    %388 = arith.divf %387, %386 : vector<16x1xf32>
    %389 = vector.broadcast %388 : vector<16x1xf32> to vector<16x256xf32>
    %390 = arith.mulf %378, %389 : vector<16x256xf32>
    %391 = tpu.concatenate %371, %390 in 1 : vector<16x256xf32>, vector<16x256xf32> -> vector<16x512xf32>
    %392 = vector.broadcast %3 : vector<1x512xf32> to vector<16x512xf32>
    %393 = arith.mulf %392, %391 : vector<16x512xf32>
    %394 = vector.broadcast %4 : vector<1x512xf32> to vector<16x512xf32>
    %395 = arith.addf %393, %394 : vector<16x512xf32>
    %c1_i32_201 = arith.constant 1 : i32
    %396 = tpu.dynamic_rotate %395 by %c1_i32_201 dim 1 : vector<16x512xf32>, i32 -> vector<16x512xf32>
    %397 = vector.broadcast %25 : vector<1x512xf32> to vector<16x512xf32>
    %398 = arith.mulf %396, %397 : vector<16x512xf32>
    %c0_202 = arith.constant 0 : index
    %c0_203 = arith.constant 0 : index
    %399 = vector.load %arg11[%c0_202, %c0_203] : memref<48x512xf32, #tpu.memory_space<vmem>>, vector<16x512xf32>
    tpu.vector_store %arg11[%c0_202, %c0_203], %398 {strides = array<i32>} : memref<48x512xf32, #tpu.memory_space<vmem>>, vector<16x512xf32>,
    %c16_204 = arith.constant 16 : index
    %c0_205 = arith.constant 0 : index
    %400 = vector.load %arg11[%c16_204, %c0_205] : memref<48x512xf32, #tpu.memory_space<vmem>>, vector<16x512xf32>
    tpu.vector_store %arg11[%c16_204, %c0_205], %395 {strides = array<i32>} : memref<48x512xf32, #tpu.memory_space<vmem>>, vector<16x512xf32>,
    %c511_i32_206 = arith.constant 511 : i32
    %401 = tpu.dynamic_rotate %395 by %c511_i32_206 dim 1 : vector<16x512xf32>, i32 -> vector<16x512xf32>
    %402 = vector.broadcast %33 : vector<1x512xf32> to vector<16x512xf32>
    %403 = arith.mulf %401, %402 : vector<16x512xf32>
    %c32_207 = arith.constant 32 : index
    %c0_208 = arith.constant 0 : index
    %404 = vector.load %arg11[%c32_207, %c0_208] : memref<48x512xf32, #tpu.memory_space<vmem>>, vector<16x512xf32>
    tpu.vector_store %arg11[%c32_207, %c0_208], %403 {strides = array<i32>} : memref<48x512xf32, #tpu.memory_space<vmem>>, vector<16x512xf32>,
    %c0_209 = arith.constant 0 : index
    %c0_210 = arith.constant 0 : index
    %405 = vector.load %arg11[%c0_209, %c0_210] : memref<48x512xf32, #tpu.memory_space<vmem>>, vector<48x512xf32>
    %cst_211 = arith.constant dense<0.000000e+00> : vector<16x512xf32>
    %406 = tpu.matmul %10, %405, %cst_211 {dimension_numbers = #tpu.dot_dimension_numbers<[1], [0], [0], [1], [0, 0, 1, 1], [], []>} : vector<16x48xf32>, vector<48x512xf32>, vector<16x512xf32> -> vector<16x512xf32>
    %407 = vector.broadcast %16 : vector<16x1xf32> to vector<16x512xf32>
    %408 = arith.addf %406, %407 : vector<16x512xf32>
    %c2_i32_212 = arith.constant 2 : i32
    %409 = tpu.dynamic_rotate %408 by %c2_i32_212 dim 1 : vector<16x512xf32>, i32 -> vector<16x512xf32>
    %410 = vector.broadcast %29 : vector<1x512xf32> to vector<16x512xf32>
    %411 = arith.mulf %409, %410 : vector<16x512xf32>
    %c0_213 = arith.constant 0 : index
    %c0_214 = arith.constant 0 : index
    %412 = vector.load %arg11[%c0_213, %c0_214] : memref<48x512xf32, #tpu.memory_space<vmem>>, vector<16x512xf32>
    tpu.vector_store %arg11[%c0_213, %c0_214], %411 {strides = array<i32>} : memref<48x512xf32, #tpu.memory_space<vmem>>, vector<16x512xf32>,
    %c16_215 = arith.constant 16 : index
    %c0_216 = arith.constant 0 : index
    %413 = vector.load %arg11[%c16_215, %c0_216] : memref<48x512xf32, #tpu.memory_space<vmem>>, vector<16x512xf32>
    tpu.vector_store %arg11[%c16_215, %c0_216], %408 {strides = array<i32>} : memref<48x512xf32, #tpu.memory_space<vmem>>, vector<16x512xf32>,
    %c510_i32_217 = arith.constant 510 : i32
    %414 = tpu.dynamic_rotate %408 by %c510_i32_217 dim 1 : vector<16x512xf32>, i32 -> vector<16x512xf32>
    %415 = vector.broadcast %37 : vector<1x512xf32> to vector<16x512xf32>
    %416 = arith.mulf %414, %415 : vector<16x512xf32>
    %c32_218 = arith.constant 32 : index
    %c0_219 = arith.constant 0 : index
    %417 = vector.load %arg11[%c32_218, %c0_219] : memref<48x512xf32, #tpu.memory_space<vmem>>, vector<16x512xf32>
    tpu.vector_store %arg11[%c32_218, %c0_219], %416 {strides = array<i32>} : memref<48x512xf32, #tpu.memory_space<vmem>>, vector<16x512xf32>,
    %c0_220 = arith.constant 0 : index
    %c0_221 = arith.constant 0 : index
    %418 = vector.load %arg11[%c0_220, %c0_221] : memref<48x512xf32, #tpu.memory_space<vmem>>, vector<48x512xf32>
    %cst_222 = arith.constant dense<0.000000e+00> : vector<16x512xf32>
    %419 = tpu.matmul %12, %418, %cst_222 {dimension_numbers = #tpu.dot_dimension_numbers<[1], [0], [0], [1], [0, 0, 1, 1], [], []>} : vector<16x48xf32>, vector<48x512xf32>, vector<16x512xf32> -> vector<16x512xf32>
    %420 = vector.broadcast %18 : vector<16x1xf32> to vector<16x512xf32>
    %421 = arith.addf %419, %420 : vector<16x512xf32>
    %c0_223 = arith.constant 0 : index
    %c0_224 = arith.constant 0 : index
    %422 = vector.load %arg10[%c0_223, %c0_224] : memref<16x512xf32, #tpu.memory_space<vmem>>, vector<16x512xf32>
    tpu.vector_store %arg10[%c0_223, %c0_224], %421 {strides = array<i32>} : memref<16x512xf32, #tpu.memory_space<vmem>>, vector<16x512xf32>,
    return
  }
  func.func @transform_0(%arg0: i32) -> (i32, i32) {
    %c0_i32 = arith.constant 0 : i32
    %c0_i32_0 = arith.constant 0 : i32
    return %c0_i32, %arg0 : i32, i32
  }
  func.func @transform_1(%arg0: i32) -> (i32, i32) {
    %c0_i32 = arith.constant 0 : i32
    %c0_i32_0 = arith.constant 0 : i32
    %c0_i32_1 = arith.constant 0 : i32
    return %c0_i32, %c0_i32_0 : i32, i32
  }
  func.func @transform_2(%arg0: i32) -> (i32, i32) {
    %c0_i32 = arith.constant 0 : i32
    %c0_i32_0 = arith.constant 0 : i32
    %c0_i32_1 = arith.constant 0 : i32
    return %c0_i32, %c0_i32_0 : i32, i32
  }
  func.func @transform_3(%arg0: i32) -> (i32, i32, i32) {
    %c0_i32 = arith.constant 0 : i32
    %c0_i32_0 = arith.constant 0 : i32
    %c0_i32_1 = arith.constant 0 : i32
    %c0_i32_2 = arith.constant 0 : i32
    return %c0_i32, %c0_i32_0, %c0_i32_1 : i32, i32, i32
  }
  func.func @transform_4(%arg0: i32) -> (i32, i32, i32) {
    %c0_i32 = arith.constant 0 : i32
    %c0_i32_0 = arith.constant 0 : i32
    %c0_i32_1 = arith.constant 0 : i32
    %c0_i32_2 = arith.constant 0 : i32
    return %c0_i32, %c0_i32_0, %c0_i32_1 : i32, i32, i32
  }
  func.func @transform_5(%arg0: i32) -> (i32, i32) {
    %c0_i32 = arith.constant 0 : i32
    %c0_i32_0 = arith.constant 0 : i32
    %c0_i32_1 = arith.constant 0 : i32
    return %c0_i32, %c0_i32_0 : i32, i32
  }
  func.func @transform_6(%arg0: i32) -> (i32, i32) {
    %c0_i32 = arith.constant 0 : i32
    %c0_i32_0 = arith.constant 0 : i32
    %c0_i32_1 = arith.constant 0 : i32
    return %c0_i32, %c0_i32_0 : i32, i32
  }
  func.func @transform_7(%arg0: i32) -> (i32, i32) {
    %c0_i32 = arith.constant 0 : i32
    %c0_i32_0 = arith.constant 0 : i32
    %c0_i32_1 = arith.constant 0 : i32
    return %c0_i32, %c0_i32_0 : i32, i32
  }
  func.func @transform_8(%arg0: i32) -> (i32, i32) {
    %c0_i32 = arith.constant 0 : i32
    %c0_i32_0 = arith.constant 0 : i32
    %c0_i32_1 = arith.constant 0 : i32
    return %c0_i32, %c0_i32_0 : i32, i32
  }
  func.func @transform_9(%arg0: i32) -> (i32, i32) {
    %c0_i32 = arith.constant 0 : i32
    %c0_i32_0 = arith.constant 0 : i32
    return %c0_i32, %arg0 : i32, i32
  }
}

</mosaic_0001>

<llo_original>
// kernel: tpu_custom_call.1
$region0: #{tpu_custom_call.1}
  #allocation0 [shape = 'u32[]', space=smem, size = 0x4, offset = 0x4, fixed_abs, tag = 'smem constant byte address 0x4 - core index']
  #allocation1 [shape = 'u32[72,128]{1,0:T(1,128)}', space=vmem, size = 0x9000, scoped, tag = 'internal scratch']
  #allocation2 [shape = 'f32[48,512]{1,0:T(8,128)}', space=vmem, size = 0x18000, scoped, tag = 'scratch operand']
  %s0 = inlined_call_operand.hbm [shape: f32[32,512], index: 0, kind: input, shape index: {}]
  %s1 = inlined_call_operand.vmem [shape: f32[16,32], index: 1, kind: input, shape index: {}]
  %s2 = inlined_call_operand.vmem [shape: f32[16,1], index: 2, kind: input, shape index: {}]
  %s3 = inlined_call_operand.vmem [shape: f32[3,16,48], index: 3, kind: input, shape index: {}]
  %s4 = inlined_call_operand.vmem [shape: f32[3,16,1], index: 4, kind: input, shape index: {}]
  %s5 = inlined_call_operand.hbm [shape: f32[1,512], index: 5, kind: input, shape index: {}]
  %s6 = inlined_call_operand.vmem [shape: f32[1,512], index: 6, kind: input, shape index: {}]
  %s7 = inlined_call_operand.hbm [shape: f32[1,512], index: 7, kind: input, shape index: {}]
  %s8 = inlined_call_operand.hbm [shape: f32[1,512], index: 8, kind: input, shape index: {}]
  %s9 = inlined_call_operand.hbm [shape: f32[16,512], index: 9, kind: output, shape index: {}]
  %s10 = sld [smem:[#allocation0]]
  $region62: #{tpu_custom_call.1} parent=0
    _
  %s12 = ssub.s32 1, %s10
  %s13 = scalar_select 0, %s12, %s10
  $region1: #{tpu_custom_call.1} parent=0
    #allocation3 [shape = 'u8[65536]{0}', space=vmem, size = 0x10000, scoped, tag = 'input window, operand 0, single buffered']
    #allocation4 [shape = 's32[1]{0}', space=sflag, size = 0x4, scoped, tag = 'scoped memory for tpu_custom_call.1']
    #allocation5 [shape = 's32[1]{0}', space=sflag, size = 0x4, scoped, tag = 'scoped memory for tpu_custom_call.1']
    #allocation6 [shape = 'u8[2048]{0}', space=vmem, size = 0x800, scoped, tag = 'input window, operand 5, single buffered']
    #allocation7 [shape = 's32[1]{0}', space=sflag, size = 0x4, scoped, tag = 'scoped memory for tpu_custom_call.1']
    #allocation8 [shape = 'u8[2048]{0}', space=vmem, size = 0x800, scoped, tag = 'input window, operand 7, single buffered']
    #allocation9 [shape = 'u8[2048]{0}', space=vmem, size = 0x800, scoped, tag = 'input window, operand 8, single buffered']
    #allocation10 [shape = 's32[1]{0}', space=sflag, size = 0x4, scoped, tag = 'scoped memory for tpu_custom_call.1']
    #allocation11 [shape = 'u8[32768]{0}', space=vmem, size = 0x8000, scoped, tag = 'output window, operand 0, single buffered']
    %14 = vsyncpa [#allocation4], 0
    %15 = vsyncpa [#allocation7], 0
    %16 = vsyncpa [#allocation10], 0
    %17 = vsyncpa [#allocation5], 0
    // Predicated region
    $region2: #{tpu_custom_call.1} parent=1 // pred_check
      _
    $region3: #{tpu_custom_call.1} parent=1 // pred_check_branch
      %19 = sbr.rel (0) target = $region5
    $region4: #{tpu_custom_call.1} parent=1 // pred_region
      %21 = vsyncadd [#allocation4], 0
      %s22 = sshll.u32 %s0, 4
      %s23 = int_to_ptr.hbm [resolvable:$true] %s22
      %s24 = sshll.u32 [#allocation3], 4
      %s25 = int_to_ptr.vmem [resolvable:$true] %s24
      %30 = dma.hbm_to_vmem [thread:$0]  %s23, 2048, %s25, [#allocation4], 512, 512, 32
    $region5: #{tpu_custom_call.1} parent=1 // pred_fallthru
      _
    // Predicated region
    $region6: #{tpu_custom_call.1} parent=1 // pred_check
      _
    $region7: #{tpu_custom_call.1} parent=1 // pred_check_branch
      %32 = sbr.rel (0) target = $region9
    $region8: #{tpu_custom_call.1} parent=1 // pred_region
      _
    $region9: #{tpu_custom_call.1} parent=1 // pred_fallthru
      _
    // Predicated region
    $region10: #{tpu_custom_call.1} parent=1 // pred_check
      _
    $region11: #{tpu_custom_call.1} parent=1 // pred_check_branch
      %34 = sbr.rel (0) target = $region13
    $region12: #{tpu_custom_call.1} parent=1 // pred_region
      _
    $region13: #{tpu_custom_call.1} parent=1 // pred_fallthru
      _
    // Predicated region
    $region14: #{tpu_custom_call.1} parent=1 // pred_check
      _
    $region15: #{tpu_custom_call.1} parent=1 // pred_check_branch
      %36 = sbr.rel (0) target = $region17
    $region16: #{tpu_custom_call.1} parent=1 // pred_region
      _
    $region17: #{tpu_custom_call.1} parent=1 // pred_fallthru
      _
    // Predicated region
    $region18: #{tpu_custom_call.1} parent=1 // pred_check
      _
    $region19: #{tpu_custom_call.1} parent=1 // pred_check_branch
      %38 = sbr.rel (0) target = $region21
    $region20: #{tpu_custom_call.1} parent=1 // pred_region
      _
    $region21: #{tpu_custom_call.1} parent=1 // pred_fallthru
      _
    // Predicated region
    $region22: #{tpu_custom_call.1} parent=1 // pred_check
      _
    $region23: #{tpu_custom_call.1} parent=1 // pred_check_branch
      %40 = sbr.rel (0) target = $region25
    $region24: #{tpu_custom_call.1} parent=1 // pred_region
      %42 = vsyncadd [#allocation7], 0
      %s44 = sshll.u32 %s5, 4
      %s45 = int_to_ptr.hbm [resolvable:$true] %s44
      %s46 = sshll.u32 [#allocation6], 4
      %s47 = int_to_ptr.vmem [resolvable:$true] %s46
      %49 = dma.hbm_to_vmem [thread:$0]  %s45, 64, %s47, [#allocation7]
    $region25: #{tpu_custom_call.1} parent=1 // pred_fallthru
      _
    // Predicated region
    $region26: #{tpu_custom_call.1} parent=1 // pred_check
      _
    $region27: #{tpu_custom_call.1} parent=1 // pred_check_branch
      %51 = sbr.rel (0) target = $region29
    $region28: #{tpu_custom_call.1} parent=1 // pred_region
      _
    $region29: #{tpu_custom_call.1} parent=1 // pred_fallthru
      _
    // Predicated region
    $region30: #{tpu_custom_call.1} parent=1 // pred_check
      _
    $region31: #{tpu_custom_call.1} parent=1 // pred_check_branch
      %53 = sbr.rel (0) target = $region33
    $region32: #{tpu_custom_call.1} parent=1 // pred_region
      %55 = vsyncadd [#allocation7], 0
      %s57 = sshll.u32 %s7, 4
      %s58 = int_to_ptr.hbm [resolvable:$true] %s57
      %s59 = sshll.u32 [#allocation8], 4
      %s60 = int_to_ptr.vmem [resolvable:$true] %s59
      %62 = dma.hbm_to_vmem [thread:$0]  %s58, 64, %s60, [#allocation7]
    $region33: #{tpu_custom_call.1} parent=1 // pred_fallthru
      _
    // Predicated region
    $region34: #{tpu_custom_call.1} parent=1 // pred_check
      _
    $region35: #{tpu_custom_call.1} parent=1 // pred_check_branch
      %64 = sbr.rel (0) target = $region37
    $region36: #{tpu_custom_call.1} parent=1 // pred_region
      %66 = vsyncadd [#allocation10], 0
      %s68 = sshll.u32 %s8, 4
      %s69 = int_to_ptr.hbm [resolvable:$true] %s68
      %s70 = sshll.u32 [#allocation9], 4
      %s71 = int_to_ptr.vmem [resolvable:$true] %s70
      %73 = dma.hbm_to_vmem [thread:$0]  %s69, 64, %s71, [#allocation10]
    $region37: #{tpu_custom_call.1} parent=1 // pred_fallthru
      _
    // Predicated region
    $region38: #{tpu_custom_call.1} parent=1 // pred_check
      _
    $region39: #{tpu_custom_call.1} parent=1 // pred_check_branch
      %75 = sbr.rel (0) target = $region41
    $region40: #{tpu_custom_call.1} parent=1 // pred_region
      %77 = dma.done [#allocation4], 2048
    $region41: #{tpu_custom_call.1} parent=1 // pred_fallthru
      _
    // Predicated region
    $region42: #{tpu_custom_call.1} parent=1 // pred_check
      _
    $region43: #{tpu_custom_call.1} parent=1 // pred_check_branch
      %79 = sbr.rel (0) target = $region45
    $region44: #{tpu_custom_call.1} parent=1 // pred_region
      %81 = dma.done [#allocation7], 64
    $region45: #{tpu_custom_call.1} parent=1 // pred_fallthru
      _
    // Predicated region
    $region46: #{tpu_custom_call.1} parent=1 // pred_check
      _
    $region47: #{tpu_custom_call.1} parent=1 // pred_check_branch
      %83 = sbr.rel (0) target = $region49
    $region48: #{tpu_custom_call.1} parent=1 // pred_region
      %85 = dma.done [#allocation7], 64
    $region49: #{tpu_custom_call.1} parent=1 // pred_fallthru
      _
    // Predicated region
    $region50: #{tpu_custom_call.1} parent=1 // pred_check
      _
    $region51: #{tpu_custom_call.1} parent=1 // pred_check_branch
      %87 = sbr.rel (0) target = $region53
    $region52: #{tpu_custom_call.1} parent=1 // pred_region
      %89 = dma.done [#allocation10], 64
    $region53: #{tpu_custom_call.1} parent=1 // pred_fallthru
      _
    %v90 = vld [vmem:[#allocation3] sm:$0xff]
    %v91 = vld [vmem:[#allocation3 + $0x8] sm:$0xff]
    %v92 = vld [vmem:[#allocation3 + $0x10] sm:$0xff]
    %v93 = vld [vmem:[#allocation3 + $0x18] sm:$0xff]
    %v94 = vld [vmem:[#allocation3 + $0x20] sm:$0xff]
    %v95 = vld [vmem:[#allocation3 + $0x28] sm:$0xff]
    %v96 = vld [vmem:[#allocation3 + $0x30] sm:$0xff]
    %v97 = vld [vmem:[#allocation3 + $0x38] sm:$0xff]
    %v98 = vld [vmem:[#allocation3 + $0x40] sm:$0xff]
    %v99 = vld [vmem:[#allocation3 + $0x48] sm:$0xff]
    %v100 = vld [vmem:[#allocation3 + $0x50] sm:$0xff]
    %v101 = vld [vmem:[#allocation3 + $0x58] sm:$0xff]
    %v102 = vld [vmem:[#allocation3 + $0x60] sm:$0xff]
    %v103 = vld [vmem:[#allocation3 + $0x68] sm:$0xff]
    %v104 = vld [vmem:[#allocation3 + $0x70] sm:$0xff]
    %v105 = vld [vmem:[#allocation3 + $0x78] sm:$0xff]
    %v106 = vld [vmem:[%s1] sm:$0xff]
    %v107 = vld [vmem:[%s1 + $0x8] sm:$0xff]
    %v108 = vld [vmem:[%s2] sm:$0xff]
    %v109 = vld [vmem:[%s2 + $0x8] sm:$0xff]
    %v110 = vld [vmem:[#allocation6] sm:$0xf]
    %v111 = vld [vmem:[%s6] sm:$0xf]
    %v112 = vld [vmem:[#allocation8] sm:$0xf]
    %v113 = vld [vmem:[#allocation9] sm:$0xf]
    %v114 = vld [vmem:[%s3] sm:$0xff]
    %v115 = vld [vmem:[%s3 + $0x8] sm:$0xff]
    %s116 = scalar_lea.vmem %s3, 16
    %v117 = vld [vmem:[%s116] sm:$0xff]
    %v118 = vld [vmem:[%s116 + $0x8] sm:$0xff]
    %s119 = scalar_lea.vmem %s3, 32
    %v120 = vld [vmem:[%s119] sm:$0xff]
    %v121 = vld [vmem:[%s119 + $0x8] sm:$0xff]
    %v122 = vld [vmem:[%s4] sm:$0xff]
    %v123 = vld [vmem:[%s4 + $0x8] sm:$0xff]
    %s124 = scalar_lea.vmem %s4, 16
    %v125 = vld [vmem:[%s124] sm:$0xff]
    %v126 = vld [vmem:[%s124 + $0x8] sm:$0xff]
    %s127 = scalar_lea.vmem %s4, 32
    %v128 = vld [vmem:[%s127] sm:$0xff]
    %v129 = vld [vmem:[%s127 + $0x8] sm:$0xff]
    %v130 = vlaneseq
    %v131 = vand.u32 %v130, 127
    %v132 = vadd.s32 %v131, 128
    %v133 = vadd.s32 %v131, 256
    %v134 = vadd.s32 %v131, 384
    %v135 = vand.u32 %v131, 255
    %v136 = vand.u32 %v132, 255
    %v137 = vand.u32 %v133, 255
    %v138 = vand.u32 %v134, 255
    %vm139 = vcmp.ge.s32.totalorder %v135, 1
    %vm140 = vcmp.ge.s32.totalorder %v136, 1
    %vm141 = vcmp.ge.s32.totalorder %v137, 1
    %vm142 = vcmp.ge.s32.totalorder %v138, 1
    %v143 = vsel %vm139, 1, 0
    %v144 = vsel %vm140, 1, 0
    %v145 = vsel %vm141, 1, 0
    %v146 = vsel %vm142, 1, 0
    %v147 = vcvt.s32.f32 %v143
    %v148 = vcvt.s32.f32 %v144
    %v149 = vcvt.s32.f32 %v145
    %v150 = vcvt.s32.f32 %v146
    %vm151 = vcmp.ge.s32.totalorder %v135, 2
    %vm152 = vcmp.ge.s32.totalorder %v136, 2
    %vm153 = vcmp.ge.s32.totalorder %v137, 2
    %vm154 = vcmp.ge.s32.totalorder %v138, 2
    %v155 = vsel %vm151, 1, 0
    %v156 = vsel %vm152, 1, 0
    %v157 = vsel %vm153, 1, 0
    %v158 = vsel %vm154, 1, 0
    %v159 = vcvt.s32.f32 %v155
    %v160 = vcvt.s32.f32 %v156
    %v161 = vcvt.s32.f32 %v157
    %v162 = vcvt.s32.f32 %v158
    %vm163 = vcmp.lt.s32.totalorder %v135, 255
    %vm164 = vcmp.lt.s32.totalorder %v136, 255
    %vm165 = vcmp.lt.s32.totalorder %v137, 255
    %vm166 = vcmp.lt.s32.totalorder %v138, 255
    %v167 = vsel %vm163, 1, 0
    %v168 = vsel %vm164, 1, 0
    %v169 = vsel %vm165, 1, 0
    %v170 = vsel %vm166, 1, 0
    %v171 = vcvt.s32.f32 %v167
    %v172 = vcvt.s32.f32 %v168
    %v173 = vcvt.s32.f32 %v169
    %v174 = vcvt.s32.f32 %v170
    %vm175 = vcmp.lt.s32.totalorder %v135, 254
    %vm176 = vcmp.lt.s32.totalorder %v136, 254
    %vm177 = vcmp.lt.s32.totalorder %v137, 254
    %vm178 = vcmp.lt.s32.totalorder %v138, 254
    %v179 = vsel %vm175, 1, 0
    %v180 = vsel %vm176, 1, 0
    %v181 = vsel %vm177, 1, 0
    %v182 = vsel %vm178, 1, 0
    %v183 = vcvt.s32.f32 %v179
    %v184 = vcvt.s32.f32 %v180
    %v185 = vcvt.s32.f32 %v181
    %v186 = vcvt.s32.f32 %v182
    %188 = vset.pattern.permute.xlu0 0
    %189 = vperm.xlu0 %188, %v108
    %v190 = vpop.permute.xlu0 %189
    %193 = vset.pattern.permute.xlu0 0
    %194 = vperm.xlu0 %193, %v109
    %v195 = vpop.permute.xlu0 %194
    %vm197 = vcmask 261120
    %v199 = vsel %vm197, %v106, 0
    %v202 = vsel %vm197, %v107, 0
    %204 = vmatpush.msra.mxu0 0.0
    %205 = vmatpush.msra.mxu0 0.0
    %206 = vmatpush.msra.mxu0 0.0
    %207 = vmatpush.msra.mxu0 0.0
    %208 = vmatpush.msra.mxu0 0.0
    %209 = vmatpush.msra.mxu0 0.0
    %210 = vmatpush.msra.mxu0 0.0
    %211 = vmatpush.msra.mxu0 0.0
    %212 = vmatpush.msra.mxu0 0.0
    %213 = vmatpush.msra.mxu0 0.0
    %214 = vmatpush.msra.mxu0 0.0
    %215 = vmatpush.msra.mxu0 0.0
    %216 = vmatpush.msra.mxu0 %v102
    %217 = vmatpush.msra.mxu0 %v98
    %218 = vmatpush.msra.mxu0 %v94
    %219 = vmatpush.msra.mxu0 %v90
    %220 = vmatmul.f32.gmra.mxu0 %v199
    %v221 = vpop.f32.mrf.mxu0
    %v222 = vadd.f32 %v190, %v221
    %223 = vmatmul.f32.gmra.mxu0 %v202
    %v224 = vpop.f32.mrf.mxu0
    %v225 = vadd.f32 %v195, %v224
    %226 = vdwg.mxu0
    %227 = vmatpush.msra.mxu0 0.0
    %228 = vmatpush.msra.mxu0 0.0
    %229 = vmatpush.msra.mxu0 0.0
    %230 = vmatpush.msra.mxu0 0.0
    %231 = vmatpush.msra.mxu0 0.0
    %232 = vmatpush.msra.mxu0 0.0
    %233 = vmatpush.msra.mxu0 0.0
    %234 = vmatpush.msra.mxu0 0.0
    %235 = vmatpush.msra.mxu0 0.0
    %236 = vmatpush.msra.mxu0 0.0
    %237 = vmatpush.msra.mxu0 0.0
    %238 = vmatpush.msra.mxu0 0.0
    %239 = vmatpush.msra.mxu0 %v103
    %240 = vmatpush.msra.mxu0 %v99
    %241 = vmatpush.msra.mxu0 %v95
    %242 = vmatpush.msra.mxu0 %v91
    %243 = vmatmul.f32.gmra.mxu0 %v199
    %v244 = vpop.f32.mrf.mxu0
    %v245 = vadd.f32 %v190, %v244
    %246 = vmatmul.f32.gmra.mxu0 %v202
    %v247 = vpop.f32.mrf.mxu0
    %v248 = vadd.f32 %v195, %v247
    %249 = vdwg.mxu0
    %250 = vmatpush.msra.mxu0 0.0
    %251 = vmatpush.msra.mxu0 0.0
    %252 = vmatpush.msra.mxu0 0.0
    %253 = vmatpush.msra.mxu0 0.0
    %254 = vmatpush.msra.mxu0 0.0
    %255 = vmatpush.msra.mxu0 0.0
    %256 = vmatpush.msra.mxu0 0.0
    %257 = vmatpush.msra.mxu0 0.0
    %258 = vmatpush.msra.mxu0 0.0
    %259 = vmatpush.msra.mxu0 0.0
    %260 = vmatpush.msra.mxu0 0.0
    %261 = vmatpush.msra.mxu0 0.0
    %262 = vmatpush.msra.mxu0 %v104
    %263 = vmatpush.msra.mxu0 %v100
    %264 = vmatpush.msra.mxu0 %v96
    %265 = vmatpush.msra.mxu0 %v92
    %266 = vmatmul.f32.gmra.mxu0 %v199
    %v267 = vpop.f32.mrf.mxu0
    %v268 = vadd.f32 %v190, %v267
    %269 = vmatmul.f32.gmra.mxu0 %v202
    %v270 = vpop.f32.mrf.mxu0
    %v271 = vadd.f32 %v195, %v270
    %272 = vdwg.mxu0
    %273 = vmatpush.msra.mxu0 0.0
    %274 = vmatpush.msra.mxu0 0.0
    %275 = vmatpush.msra.mxu0 0.0
    %276 = vmatpush.msra.mxu0 0.0
    %277 = vmatpush.msra.mxu0 0.0
    %278 = vmatpush.msra.mxu0 0.0
    %279 = vmatpush.msra.mxu0 0.0
    %280 = vmatpush.msra.mxu0 0.0
    %281 = vmatpush.msra.mxu0 0.0
    %282 = vmatpush.msra.mxu0 0.0
    %283 = vmatpush.msra.mxu0 0.0
    %284 = vmatpush.msra.mxu0 0.0
    %285 = vmatpush.msra.mxu0 %v105
    %286 = vmatpush.msra.mxu0 %v101
    %287 = vmatpush.msra.mxu0 %v97
    %288 = vmatpush.msra.mxu0 %v93
    %289 = vmatmul.f32.gmra.mxu0 %v199
    %v290 = vpop.f32.mrf.mxu0
    %v291 = vadd.f32 %v190, %v290
    %292 = vmatmul.f32.gmra.mxu0 %v202
    %v293 = vpop.f32.mrf.mxu0
    %v294 = vadd.f32 %v195, %v293
    %295 = vdwg.mxu0
    %296 = vrot.lane.b32.xlu0 %v222, 1
    %v297 = vpop.permute.xlu0 %296
    %298 = vrot.lane.b32.xlu0 %v225, 1
    %v299 = vpop.permute.xlu0 %298
    %300 = vrot.lane.b32.xlu0 %v245, 1
    %v301 = vpop.permute.xlu0 %300
    %302 = vrot.lane.b32.xlu0 %v248, 1
    %v303 = vpop.permute.xlu0 %302
    %304 = vrot.lane.b32.xlu0 %v268, 1
    %v305 = vpop.permute.xlu0 %304
    %306 = vrot.lane.b32.xlu0 %v271, 1
    %v307 = vpop.permute.xlu0 %306
    %308 = vrot.lane.b32.xlu0 %v291, 1
    %v309 = vpop.permute.xlu0 %308
    %310 = vrot.lane.b32.xlu0 %v294, 1
    %v311 = vpop.permute.xlu0 %310
    %vm312 = vcmp.lt.s32.totalorder %v131, 1
    %v313 = vsel %vm312, %v305, %v309
    %v314 = vsel %vm312, %v307, %v311
    %v315 = vsel %vm312, %v301, %v305
    %v316 = vsel %vm312, %v303, %v307
    %v317 = vsel %vm312, %v297, %v301
    %v318 = vsel %vm312, %v299, %v303
    %v319 = vsel %vm312, %v309, %v297
    %v320 = vsel %vm312, %v311, %v299
    %v321 = vmul.f32 %v319, %v147
    %v322 = vmul.f32 %v317, %v148
    %v323 = vmul.f32 %v315, %v149
    %v324 = vmul.f32 %v313, %v150
    %v325 = vmul.f32 %v320, %v147
    %v326 = vmul.f32 %v318, %v148
    %v327 = vmul.f32 %v316, %v149
    %v328 = vmul.f32 %v314, %v150
    %329 = vst [vmem:[#allocation2] sm:$0xff] %v321
    %330 = vst [vmem:[#allocation2 + $0x8] sm:$0xff] %v322
    %331 = vst [vmem:[#allocation2 + $0x10] sm:$0xff] %v323
    %332 = vst [vmem:[#allocation2 + $0x18] sm:$0xff] %v324
    %333 = vst [vmem:[#allocation2 + $0x20] sm:$0xff] %v325
    %334 = vst [vmem:[#allocation2 + $0x28] sm:$0xff] %v326
    %335 = vst [vmem:[#allocation2 + $0x30] sm:$0xff] %v327
    %336 = vst [vmem:[#allocation2 + $0x38] sm:$0xff] %v328
    %337 = vst [vmem:[#allocation2 + $0x40] sm:$0xff] %v222
    %338 = vst [vmem:[#allocation2 + $0x48] sm:$0xff] %v245
    %339 = vst [vmem:[#allocation2 + $0x50] sm:$0xff] %v268
    %340 = vst [vmem:[#allocation2 + $0x58] sm:$0xff] %v291
    %341 = vst [vmem:[#allocation2 + $0x60] sm:$0xff] %v225
    %342 = vst [vmem:[#allocation2 + $0x68] sm:$0xff] %v248
    %343 = vst [vmem:[#allocation2 + $0x70] sm:$0xff] %v271
    %344 = vst [vmem:[#allocation2 + $0x78] sm:$0xff] %v294
    %345 = vrot.lane.b32.xlu0 %v222, 127
    %v346 = vpop.permute.xlu0 %345
    %347 = vrot.lane.b32.xlu0 %v225, 127
    %v348 = vpop.permute.xlu0 %347
    %349 = vrot.lane.b32.xlu0 %v245, 127
    %v350 = vpop.permute.xlu0 %349
    %351 = vrot.lane.b32.xlu0 %v248, 127
    %v352 = vpop.permute.xlu0 %351
    %353 = vrot.lane.b32.xlu0 %v268, 127
    %v354 = vpop.permute.xlu0 %353
    %355 = vrot.lane.b32.xlu0 %v271, 127
    %v356 = vpop.permute.xlu0 %355
    %357 = vrot.lane.b32.xlu0 %v291, 127
    %v358 = vpop.permute.xlu0 %357
    %359 = vrot.lane.b32.xlu0 %v294, 127
    %v360 = vpop.permute.xlu0 %359
    %vm361 = vcmp.lt.s32.totalorder %v131, 127
    %v362 = vsel %vm361, %v354, %v358
    %v363 = vsel %vm361, %v356, %v360
    %v364 = vsel %vm361, %v350, %v354
    %v365 = vsel %vm361, %v352, %v356
    %v366 = vsel %vm361, %v346, %v350
    %v367 = vsel %vm361, %v348, %v352
    %v368 = vsel %vm361, %v358, %v346
    %v369 = vsel %vm361, %v360, %v348
    %v370 = vmul.f32 %v366, %v171
    %v371 = vmul.f32 %v364, %v172
    %v372 = vmul.f32 %v362, %v173
    %v373 = vmul.f32 %v368, %v174
    %v374 = vmul.f32 %v367, %v171
    %v375 = vmul.f32 %v365, %v172
    %v376 = vmul.f32 %v363, %v173
    %v377 = vmul.f32 %v369, %v174
    %378 = vst [vmem:[#allocation2 + $0x80] sm:$0xff] %v370
    %379 = vst [vmem:[#allocation2 + $0x88] sm:$0xff] %v371
    %380 = vst [vmem:[#allocation2 + $0x90] sm:$0xff] %v372
    %381 = vst [vmem:[#allocation2 + $0x98] sm:$0xff] %v373
    %382 = vst [vmem:[#allocation2 + $0xa0] sm:$0xff] %v374
    %383 = vst [vmem:[#allocation2 + $0xa8] sm:$0xff] %v375
    %384 = vst [vmem:[#allocation2 + $0xb0] sm:$0xff] %v376
    %385 = vst [vmem:[#allocation2 + $0xb8] sm:$0xff] %v377
    %v386 = vld [vmem:[#allocation2] sm:$0xff]
    %v387 = vld [vmem:[#allocation2 + $0x8] sm:$0xff]
    %v388 = vld [vmem:[#allocation2 + $0x10] sm:$0xff]
    %v389 = vld [vmem:[#allocation2 + $0x18] sm:$0xff]
    %v390 = vld [vmem:[#allocation2 + $0x20] sm:$0xff]
    %v391 = vld [vmem:[#allocation2 + $0x28] sm:$0xff]
    %v392 = vld [vmem:[#allocation2 + $0x30] sm:$0xff]
    %v393 = vld [vmem:[#allocation2 + $0x38] sm:$0xff]
    %v394 = vld [vmem:[#allocation2 + $0x40] sm:$0xff]
    %v395 = vld [vmem:[#allocation2 + $0x48] sm:$0xff]
    %v396 = vld [vmem:[#allocation2 + $0x50] sm:$0xff]
    %v397 = vld [vmem:[#allocation2 + $0x58] sm:$0xff]
    %v398 = vld [vmem:[#allocation2 + $0x60] sm:$0xff]
    %v399 = vld [vmem:[#allocation2 + $0x68] sm:$0xff]
    %v400 = vld [vmem:[#allocation2 + $0x70] sm:$0xff]
    %v401 = vld [vmem:[#allocation2 + $0x78] sm:$0xff]
    %v402 = vld [vmem:[#allocation2 + $0x80] sm:$0xff]
    %v403 = vld [vmem:[#allocation2 + $0x88] sm:$0xff]
    %v404 = vld [vmem:[#allocation2 + $0x90] sm:$0xff]
    %v405 = vld [vmem:[#allocation2 + $0x98] sm:$0xff]
    %v406 = vld [vmem:[#allocation2 + $0xa0] sm:$0xff]
    %v407 = vld [vmem:[#allocation2 + $0xa8] sm:$0xff]
    %v408 = vld [vmem:[#allocation2 + $0xb0] sm:$0xff]
    %v409 = vld [vmem:[#allocation2 + $0xb8] sm:$0xff]
    %411 = vset.pattern.permute.xlu0 0
    %412 = vperm.xlu0 %411, %v122
    %v413 = vpop.permute.xlu0 %412
    %416 = vset.pattern.permute.xlu0 0
    %417 = vperm.xlu0 %416, %v123
    %v418 = vpop.permute.xlu0 %417
    %vm420 = vcmask 392192
    %v422 = vsel %vm420, %v114, 0
    %v425 = vsel %vm420, %v115, 0
    %427 = vmatpush.msra.mxu0 0.0
    %428 = vmatpush.msra.mxu0 0.0
    %429 = vmatpush.msra.mxu0 0.0
    %430 = vmatpush.msra.mxu0 0.0
    %431 = vmatpush.msra.mxu0 0.0
    %432 = vmatpush.msra.mxu0 0.0
    %433 = vmatpush.msra.mxu0 0.0
    %434 = vmatpush.msra.mxu0 0.0
    %435 = vmatpush.msra.mxu0 0.0
    %436 = vmatpush.msra.mxu0 0.0
    %437 = vmatpush.msra.mxu0 %v406
    %438 = vmatpush.msra.mxu0 %v402
    %439 = vmatpush.msra.mxu0 %v398
    %440 = vmatpush.msra.mxu0 %v394
    %441 = vmatpush.msra.mxu0 %v390
    %442 = vmatpush.msra.mxu0 %v386
    %443 = vmatmul.f32.gmra.mxu0 %v422
    %v444 = vpop.f32.mrf.mxu0
    %v445 = vadd.f32 %v413, %v444
    %446 = vmatmul.f32.gmra.mxu0 %v425
    %v447 = vpop.f32.mrf.mxu0
    %v448 = vadd.f32 %v418, %v447
    %449 = vdwg.mxu0
    %450 = vmatpush.msra.mxu0 0.0
    %451 = vmatpush.msra.mxu0 0.0
    %452 = vmatpush.msra.mxu0 0.0
    %453 = vmatpush.msra.mxu0 0.0
    %454 = vmatpush.msra.mxu0 0.0
    %455 = vmatpush.msra.mxu0 0.0
    %456 = vmatpush.msra.mxu0 0.0
    %457 = vmatpush.msra.mxu0 0.0
    %458 = vmatpush.msra.mxu0 0.0
    %459 = vmatpush.msra.mxu0 0.0
    %460 = vmatpush.msra.mxu0 %v407
    %461 = vmatpush.msra.mxu0 %v403
    %462 = vmatpush.msra.mxu0 %v399
    %463 = vmatpush.msra.mxu0 %v395
    %464 = vmatpush.msra.mxu0 %v391
    %465 = vmatpush.msra.mxu0 %v387
    %466 = vmatmul.f32.gmra.mxu0 %v422
    %v467 = vpop.f32.mrf.mxu0
    %v468 = vadd.f32 %v413, %v467
    %469 = vmatmul.f32.gmra.mxu0 %v425
    %v470 = vpop.f32.mrf.mxu0
    %v471 = vadd.f32 %v418, %v470
    %472 = vdwg.mxu0
    %473 = vmatpush.msra.mxu0 0.0
    %474 = vmatpush.msra.mxu0 0.0
    %475 = vmatpush.msra.mxu0 0.0
    %476 = vmatpush.msra.mxu0 0.0
    %477 = vmatpush.msra.mxu0 0.0
    %478 = vmatpush.msra.mxu0 0.0
    %479 = vmatpush.msra.mxu0 0.0
    %480 = vmatpush.msra.mxu0 0.0
    %481 = vmatpush.msra.mxu0 0.0
    %482 = vmatpush.msra.mxu0 0.0
    %483 = vmatpush.msra.mxu0 %v408
    %484 = vmatpush.msra.mxu0 %v404
    %485 = vmatpush.msra.mxu0 %v400
    %486 = vmatpush.msra.mxu0 %v396
    %487 = vmatpush.msra.mxu0 %v392
    %488 = vmatpush.msra.mxu0 %v388
    %489 = vmatmul.f32.gmra.mxu0 %v422
    %v490 = vpop.f32.mrf.mxu0
    %v491 = vadd.f32 %v413, %v490
    %492 = vmatmul.f32.gmra.mxu0 %v425
    %v493 = vpop.f32.mrf.mxu0
    %v494 = vadd.f32 %v418, %v493
    %495 = vdwg.mxu0
    %496 = vmatpush.msra.mxu0 0.0
    %497 = vmatpush.msra.mxu0 0.0
    %498 = vmatpush.msra.mxu0 0.0
    %499 = vmatpush.msra.mxu0 0.0
    %500 = vmatpush.msra.mxu0 0.0
    %501 = vmatpush.msra.mxu0 0.0
    %502 = vmatpush.msra.mxu0 0.0
    %503 = vmatpush.msra.mxu0 0.0
    %504 = vmatpush.msra.mxu0 0.0
    %505 = vmatpush.msra.mxu0 0.0
    %506 = vmatpush.msra.mxu0 %v409
    %507 = vmatpush.msra.mxu0 %v405
    %508 = vmatpush.msra.mxu0 %v401
    %509 = vmatpush.msra.mxu0 %v397
    %510 = vmatpush.msra.mxu0 %v393
    %511 = vmatpush.msra.mxu0 %v389
    %512 = vmatmul.f32.gmra.mxu0 %v422
    %v513 = vpop.f32.mrf.mxu0
    %v514 = vadd.f32 %v413, %v513
    %515 = vmatmul.f32.gmra.mxu0 %v425
    %v516 = vpop.f32.mrf.mxu0
    %v517 = vadd.f32 %v418, %v516
    %518 = vdwg.mxu0
    %v519 = vmax.f32 %v445, 0.0
    %v520 = vmax.f32 %v468, 0.0
    %v521 = vmax.f32 %v491, 0.0
    %v522 = vmax.f32 %v514, 0.0
    %v523 = vmax.f32 %v448, 0.0
    %v524 = vmax.f32 %v471, 0.0
    %v525 = vmax.f32 %v494, 0.0
    %v526 = vmax.f32 %v517, 0.0
    %v527 = vadd.f32 %v519, %v520
    %528 = vadd.xlane.f32.xlu0 %v527
    %v529 = vpop.xlane.xlu0 %528
    %v530 = vadd.f32 %v523, %v524
    %531 = vadd.xlane.f32.xlu0 %v530
    %v532 = vpop.xlane.xlu0 %531
    %v533 = vrcp.pop 256.0
    %v534 = vmul.f32 256.0, %v533
    %v535 = vsub.f32 1.0, %v534
    %v536 = vmul.f32 %v533, %v535
    %v537 = vadd.f32 %v533, %v536
    %vm538 = vweird.f32 %v533
    %v539 = vsel %vm538, %v533, %v537
    %v540 = vmul.f32 %v529, %v539
    %v541 = vmul.f32 %v532, %v539
    %v542 = vsub.f32 %v519, %v540
    %v543 = vsub.f32 %v520, %v540
    %v544 = vsub.f32 %v523, %v541
    %v545 = vsub.f32 %v524, %v541
    %v546 = vmul.f32 %v542, %v542
    %v547 = vmul.f32 %v543, %v543
    %v548 = vmul.f32 %v544, %v544
    %v549 = vmul.f32 %v545, %v545
    %v550 = vadd.f32 %v546, %v547
    %551 = vadd.xlane.f32.xlu0 %v550
    %v552 = vpop.xlane.xlu0 %551
    %v553 = vadd.f32 %v548, %v549
    %554 = vadd.xlane.f32.xlu0 %v553
    %v555 = vpop.xlane.xlu0 %554
    %v556 = vmul.f32 %v552, 0.003921569
    %v557 = vmul.f32 %v555, 0.003921569
    %v558 = vrsqrt.pop %v556
    %v559 = vmul.f32 %v558, %v556
    %v560 = vmul.f32 %v559, %v558
    %v561 = vmul.f32 0.5, %v560
    %v562 = vsub.f32 1.5, %v561
    %v563 = vmul.f32 %v558, %v562
    %v564 = vmul.f32 %v556, %v563
    %vm565 = vcmp.eq.f32.partialorder %v556, inf
    %v566 = vsel %vm565, %v556, %v564
    %vm567 = vcmp.eq.f32.partialorder %v556, 0.0
    %v568 = vand.u32 %v556, 2147483648
    %v569 = vsel %vm567, %v568, %v566
    %v570 = vrsqrt.pop %v557
    %v571 = vmul.f32 %v570, %v557
    %v572 = vmul.f32 %v571, %v570
    %v573 = vmul.f32 0.5, %v572
    %v574 = vsub.f32 1.5, %v573
    %v575 = vmul.f32 %v570, %v574
    %v576 = vmul.f32 %v557, %v575
    %vm577 = vcmp.eq.f32.partialorder %v557, inf
    %v578 = vsel %vm577, %v557, %v576
    %vm579 = vcmp.eq.f32.partialorder %v557, 0.0
    %v580 = vand.u32 %v557, 2147483648
    %v581 = vsel %vm579, %v580, %v578
    %v582 = vadd.f32 %v569, 1e-06
    %v583 = vadd.f32 %v581, 1e-06
    %v584 = vrcp.pop %v582
    %v585 = vmul.f32 %v582, %v584
    %v586 = vsub.f32 1.0, %v585
    %v587 = vmul.f32 %v584, %v586
    %v588 = vadd.f32 %v584, %v587
    %vm589 = vweird.f32 %v582
    %vm590 = vweird.f32 %v584
    %vm591 = vmor %vm589, %vm590
    %v592 = vsel %vm591, %v584, %v588
    %v593 = vand.u32 2147483647, %v582
    %vm594 = vcmp.eq.f32.partialorder %v593, 8.507059e+37
    %v595 = vand.u32 %v582, 2147483648
    %v596 = vor.u32 1.1754944e-38, %v595
    %v597 = vsel %vm594, %v596, %v592
    %v598 = vmul.f32 1.0, %v597
    %v599 = vrcp.pop %v583
    %v600 = vmul.f32 %v583, %v599
    %v601 = vsub.f32 1.0, %v600
    %v602 = vmul.f32 %v599, %v601
    %v603 = vadd.f32 %v599, %v602
    %vm604 = vweird.f32 %v583
    %vm605 = vweird.f32 %v599
    %vm606 = vmor %vm604, %vm605
    %v607 = vsel %vm606, %v599, %v603
    %v608 = vand.u32 2147483647, %v583
    %vm609 = vcmp.eq.f32.partialorder %v608, 8.507059e+37
    %v610 = vand.u32 %v583, 2147483648
    %v611 = vor.u32 1.1754944e-38, %v610
    %v612 = vsel %vm609, %v611, %v607
    %v613 = vmul.f32 1.0, %v612
    %v614 = vmul.f32 %v542, %v598
    %v615 = vmul.f32 %v543, %v598
    %v616 = vmul.f32 %v544, %v613
    %v617 = vmul.f32 %v545, %v613
    %v618 = vadd.f32 %v521, %v522
    %619 = vadd.xlane.f32.xlu0 %v618
    %v620 = vpop.xlane.xlu0 %619
    %v621 = vadd.f32 %v525, %v526
    %622 = vadd.xlane.f32.xlu0 %v621
    %v623 = vpop.xlane.xlu0 %622
    %v624 = vmul.f32 %v620, %v539
    %v625 = vmul.f32 %v623, %v539
    %v626 = vsub.f32 %v521, %v624
    %v627 = vsub.f32 %v522, %v624
    %v628 = vsub.f32 %v525, %v625
    %v629 = vsub.f32 %v526, %v625
    %v630 = vmul.f32 %v626, %v626
    %v631 = vmul.f32 %v627, %v627
    %v632 = vmul.f32 %v628, %v628
    %v633 = vmul.f32 %v629, %v629
    %v634 = vadd.f32 %v630, %v631
    %635 = vadd.xlane.f32.xlu0 %v634
    %v636 = vpop.xlane.xlu0 %635
    %v637 = vadd.f32 %v632, %v633
    %638 = vadd.xlane.f32.xlu0 %v637
    %v639 = vpop.xlane.xlu0 %638
    %v640 = vmul.f32 %v636, 0.003921569
    %v641 = vmul.f32 %v639, 0.003921569
    %v642 = vrsqrt.pop %v640
    %v643 = vmul.f32 %v642, %v640
    %v644 = vmul.f32 %v643, %v642
    %v645 = vmul.f32 0.5, %v644
    %v646 = vsub.f32 1.5, %v645
    %v647 = vmul.f32 %v642, %v646
    %v648 = vmul.f32 %v640, %v647
    %vm649 = vcmp.eq.f32.partialorder %v640, inf
    %v650 = vsel %vm649, %v640, %v648
    %vm651 = vcmp.eq.f32.partialorder %v640, 0.0
    %v652 = vand.u32 %v640, 2147483648
    %v653 = vsel %vm651, %v652, %v650
    %v654 = vrsqrt.pop %v641
    %v655 = vmul.f32 %v654, %v641
    %v656 = vmul.f32 %v655, %v654
    %v657 = vmul.f32 0.5, %v656
    %v658 = vsub.f32 1.5, %v657
    %v659 = vmul.f32 %v654, %v658
    %v660 = vmul.f32 %v641, %v659
    %vm661 = vcmp.eq.f32.partialorder %v641, inf
    %v662 = vsel %vm661, %v641, %v660
    %vm663 = vcmp.eq.f32.partialorder %v641, 0.0
    %v664 = vand.u32 %v641, 2147483648
    %v665 = vsel %vm663, %v664, %v662
    %v666 = vadd.f32 %v653, 1e-06
    %v667 = vadd.f32 %v665, 1e-06
    %v668 = vrcp.pop %v666
    %v669 = vmul.f32 %v666, %v668
    %v670 = vsub.f32 1.0, %v669
    %v671 = vmul.f32 %v668, %v670
    %v672 = vadd.f32 %v668, %v671
    %vm673 = vweird.f32 %v666
    %vm674 = vweird.f32 %v668
    %vm675 = vmor %vm673, %vm674
    %v676 = vsel %vm675, %v668, %v672
    %v677 = vand.u32 2147483647, %v666
    %vm678 = vcmp.eq.f32.partialorder %v677, 8.507059e+37
    %v679 = vand.u32 %v666, 2147483648
    %v680 = vor.u32 1.1754944e-38, %v679
    %v681 = vsel %vm678, %v680, %v676
    %v682 = vmul.f32 1.0, %v681
    %v683 = vrcp.pop %v667
    %v684 = vmul.f32 %v667, %v683
    %v685 = vsub.f32 1.0, %v684
    %v686 = vmul.f32 %v683, %v685
    %v687 = vadd.f32 %v683, %v686
    %vm688 = vweird.f32 %v667
    %vm689 = vweird.f32 %v683
    %vm690 = vmor %vm688, %vm689
    %v691 = vsel %vm690, %v683, %v687
    %v692 = vand.u32 2147483647, %v667
    %vm693 = vcmp.eq.f32.partialorder %v692, 8.507059e+37
    %v694 = vand.u32 %v667, 2147483648
    %v695 = vor.u32 1.1754944e-38, %v694
    %v696 = vsel %vm693, %v695, %v691
    %v697 = vmul.f32 1.0, %v696
    %v698 = vmul.f32 %v626, %v682
    %v699 = vmul.f32 %v627, %v682
    %v700 = vmul.f32 %v628, %v697
    %v701 = vmul.f32 %v629, %v697
    %v703 = vperm.slane %v110, 0
    %v704 = vperm.slane %v110, 1
    %v705 = vperm.slane %v110, 2
    %v706 = vperm.slane %v110, 3
    %v711 = vmul.f32 %v703, %v614
    %v712 = vmul.f32 %v704, %v615
    %v713 = vmul.f32 %v705, %v698
    %v714 = vmul.f32 %v706, %v699
    %v715 = vmul.f32 %v703, %v616
    %v716 = vmul.f32 %v704, %v617
    %v717 = vmul.f32 %v705, %v700
    %v718 = vmul.f32 %v706, %v701
    %v720 = vperm.slane %v111, 0
    %v721 = vperm.slane %v111, 1
    %v722 = vperm.slane %v111, 2
    %v723 = vperm.slane %v111, 3
    %v728 = vadd.f32 %v711, %v720
    %v729 = vadd.f32 %v712, %v721
    %v730 = vadd.f32 %v713, %v722
    %v731 = vadd.f32 %v714, %v723
    %v732 = vadd.f32 %v715, %v720
    %v733 = vadd.f32 %v716, %v721
    %v734 = vadd.f32 %v717, %v722
    %v735 = vadd.f32 %v718, %v723
    %736 = vrot.lane.b32.xlu0 %v728, 1
    %v737 = vpop.permute.xlu0 %736
    %738 = vrot.lane.b32.xlu0 %v732, 1
    %v739 = vpop.permute.xlu0 %738
    %740 = vrot.lane.b32.xlu0 %v729, 1
    %v741 = vpop.permute.xlu0 %740
    %742 = vrot.lane.b32.xlu0 %v733, 1
    %v743 = vpop.permute.xlu0 %742
    %744 = vrot.lane.b32.xlu0 %v730, 1
    %v745 = vpop.permute.xlu0 %744
    %746 = vrot.lane.b32.xlu0 %v734, 1
    %v747 = vpop.permute.xlu0 %746
    %748 = vrot.lane.b32.xlu0 %v731, 1
    %v749 = vpop.permute.xlu0 %748
    %750 = vrot.lane.b32.xlu0 %v735, 1
    %v751 = vpop.permute.xlu0 %750
    %v752 = vsel %vm312, %v745, %v749
    %v753 = vsel %vm312, %v747, %v751
    %v754 = vsel %vm312, %v741, %v745
    %v755 = vsel %vm312, %v743, %v747
    %v756 = vsel %vm312, %v737, %v741
    %v757 = vsel %vm312, %v739, %v743
    %v758 = vsel %vm312, %v749, %v737
    %v759 = vsel %vm312, %v751, %v739
    %v760 = vmul.f32 %v758, %v147
    %v761 = vmul.f32 %v756, %v148
    %v762 = vmul.f32 %v754, %v149
    %v763 = vmul.f32 %v752, %v150
    %v764 = vmul.f32 %v759, %v147
    %v765 = vmul.f32 %v757, %v148
    %v766 = vmul.f32 %v755, %v149
    %v767 = vmul.f32 %v753, %v150
    %768 = vst [vmem:[#allocation2] sm:$0xff] %v760
    %769 = vst [vmem:[#allocation2 + $0x8] sm:$0xff] %v761
    %770 = vst [vmem:[#allocation2 + $0x10] sm:$0xff] %v762
    %771 = vst [vmem:[#allocation2 + $0x18] sm:$0xff] %v763
    %772 = vst [vmem:[#allocation2 + $0x20] sm:$0xff] %v764
    %773 = vst [vmem:[#allocation2 + $0x28] sm:$0xff] %v765
    %774 = vst [vmem:[#allocation2 + $0x30] sm:$0xff] %v766
    %775 = vst [vmem:[#allocation2 + $0x38] sm:$0xff] %v767
    %776 = vst [vmem:[#allocation2 + $0x40] sm:$0xff] %v728
    %777 = vst [vmem:[#allocation2 + $0x48] sm:$0xff] %v729
    %778 = vst [vmem:[#allocation2 + $0x50] sm:$0xff] %v730
    %779 = vst [vmem:[#allocation2 + $0x58] sm:$0xff] %v731
    %780 = vst [vmem:[#allocation2 + $0x60] sm:$0xff] %v732
    %781 = vst [vmem:[#allocation2 + $0x68] sm:$0xff] %v733
    %782 = vst [vmem:[#allocation2 + $0x70] sm:$0xff] %v734
    %783 = vst [vmem:[#allocation2 + $0x78] sm:$0xff] %v735
    %784 = vrot.lane.b32.xlu0 %v728, 127
    %v785 = vpop.permute.xlu0 %784
    %786 = vrot.lane.b32.xlu0 %v732, 127
    %v787 = vpop.permute.xlu0 %786
    %788 = vrot.lane.b32.xlu0 %v729, 127
    %v789 = vpop.permute.xlu0 %788
    %790 = vrot.lane.b32.xlu0 %v733, 127
    %v791 = vpop.permute.xlu0 %790
    %792 = vrot.lane.b32.xlu0 %v730, 127
    %v793 = vpop.permute.xlu0 %792
    %794 = vrot.lane.b32.xlu0 %v734, 127
    %v795 = vpop.permute.xlu0 %794
    %796 = vrot.lane.b32.xlu0 %v731, 127
    %v797 = vpop.permute.xlu0 %796
    %798 = vrot.lane.b32.xlu0 %v735, 127
    %v799 = vpop.permute.xlu0 %798
    %v800 = vsel %vm361, %v793, %v797
    %v801 = vsel %vm361, %v795, %v799
    %v802 = vsel %vm361, %v789, %v793
    %v803 = vsel %vm361, %v791, %v795
    %v804 = vsel %vm361, %v785, %v789
    %v805 = vsel %vm361, %v787, %v791
    %v806 = vsel %vm361, %v797, %v785
    %v807 = vsel %vm361, %v799, %v787
    %v808 = vmul.f32 %v804, %v171
    %v809 = vmul.f32 %v802, %v172
    %v810 = vmul.f32 %v800, %v173
    %v811 = vmul.f32 %v806, %v174
    %v812 = vmul.f32 %v805, %v171
    %v813 = vmul.f32 %v803, %v172
    %v814 = vmul.f32 %v801, %v173
    %v815 = vmul.f32 %v807, %v174
    %816 = vst [vmem:[#allocation2 + $0x80] sm:$0xff] %v808
    %817 = vst [vmem:[#allocation2 + $0x88] sm:$0xff] %v809
    %818 = vst [vmem:[#allocation2 + $0x90] sm:$0xff] %v810
    %819 = vst [vmem:[#allocation2 + $0x98] sm:$0xff] %v811
    %820 = vst [vmem:[#allocation2 + $0xa0] sm:$0xff] %v812
    %821 = vst [vmem:[#allocation2 + $0xa8] sm:$0xff] %v813
    %822 = vst [vmem:[#allocation2 + $0xb0] sm:$0xff] %v814
    %823 = vst [vmem:[#allocation2 + $0xb8] sm:$0xff] %v815
    %v824 = vld [vmem:[#allocation2] sm:$0xff]
    %v825 = vld [vmem:[#allocation2 + $0x8] sm:$0xff]
    %v826 = vld [vmem:[#allocation2 + $0x10] sm:$0xff]
    %v827 = vld [vmem:[#allocation2 + $0x18] sm:$0xff]
    %v828 = vld [vmem:[#allocation2 + $0x20] sm:$0xff]
    %v829 = vld [vmem:[#allocation2 + $0x28] sm:$0xff]
    %v830 = vld [vmem:[#allocation2 + $0x30] sm:$0xff]
    %v831 = vld [vmem:[#allocation2 + $0x38] sm:$0xff]
    %v832 = vld [vmem:[#allocation2 + $0x40] sm:$0xff]
    %v833 = vld [vmem:[#allocation2 + $0x48] sm:$0xff]
    %v834 = vld [vmem:[#allocation2 + $0x50] sm:$0xff]
    %v835 = vld [vmem:[#allocation2 + $0x58] sm:$0xff]
    %v836 = vld [vmem:[#allocation2 + $0x60] sm:$0xff]
    %v837 = vld [vmem:[#allocation2 + $0x68] sm:$0xff]
    %v838 = vld [vmem:[#allocation2 + $0x70] sm:$0xff]
    %v839 = vld [vmem:[#allocation2 + $0x78] sm:$0xff]
    %v840 = vld [vmem:[#allocation2 + $0x80] sm:$0xff]
    %v841 = vld [vmem:[#allocation2 + $0x88] sm:$0xff]
    %v842 = vld [vmem:[#allocation2 + $0x90] sm:$0xff]
    %v843 = vld [vmem:[#allocation2 + $0x98] sm:$0xff]
    %v844 = vld [vmem:[#allocation2 + $0xa0] sm:$0xff]
    %v845 = vld [vmem:[#allocation2 + $0xa8] sm:$0xff]
    %v846 = vld [vmem:[#allocation2 + $0xb0] sm:$0xff]
    %v847 = vld [vmem:[#allocation2 + $0xb8] sm:$0xff]
    %849 = vset.pattern.permute.xlu0 0
    %850 = vperm.xlu0 %849, %v125
    %v851 = vpop.permute.xlu0 %850
    %854 = vset.pattern.permute.xlu0 0
    %855 = vperm.xlu0 %854, %v126
    %v856 = vpop.permute.xlu0 %855
    %v859 = vsel %vm420, %v117, 0
    %v862 = vsel %vm420, %v118, 0
    %864 = vmatpush.msra.mxu0 0.0
    %865 = vmatpush.msra.mxu0 0.0
    %866 = vmatpush.msra.mxu0 0.0
    %867 = vmatpush.msra.mxu0 0.0
    %868 = vmatpush.msra.mxu0 0.0
    %869 = vmatpush.msra.mxu0 0.0
    %870 = vmatpush.msra.mxu0 0.0
    %871 = vmatpush.msra.mxu0 0.0
    %872 = vmatpush.msra.mxu0 0.0
    %873 = vmatpush.msra.mxu0 0.0
    %874 = vmatpush.msra.mxu0 %v844
    %875 = vmatpush.msra.mxu0 %v840
    %876 = vmatpush.msra.mxu0 %v836
    %877 = vmatpush.msra.mxu0 %v832
    %878 = vmatpush.msra.mxu0 %v828
    %879 = vmatpush.msra.mxu0 %v824
    %880 = vmatmul.f32.gmra.mxu0 %v859
    %v881 = vpop.f32.mrf.mxu0
    %v882 = vadd.f32 %v851, %v881
    %883 = vmatmul.f32.gmra.mxu0 %v862
    %v884 = vpop.f32.mrf.mxu0
    %v885 = vadd.f32 %v856, %v884
    %886 = vdwg.mxu0
    %887 = vmatpush.msra.mxu0 0.0
    %888 = vmatpush.msra.mxu0 0.0
    %889 = vmatpush.msra.mxu0 0.0
    %890 = vmatpush.msra.mxu0 0.0
    %891 = vmatpush.msra.mxu0 0.0
    %892 = vmatpush.msra.mxu0 0.0
    %893 = vmatpush.msra.mxu0 0.0
    %894 = vmatpush.msra.mxu0 0.0
    %895 = vmatpush.msra.mxu0 0.0
    %896 = vmatpush.msra.mxu0 0.0
    %897 = vmatpush.msra.mxu0 %v845
    %898 = vmatpush.msra.mxu0 %v841
    %899 = vmatpush.msra.mxu0 %v837
    %900 = vmatpush.msra.mxu0 %v833
    %901 = vmatpush.msra.mxu0 %v829
    %902 = vmatpush.msra.mxu0 %v825
    %903 = vmatmul.f32.gmra.mxu0 %v859
    %v904 = vpop.f32.mrf.mxu0
    %v905 = vadd.f32 %v851, %v904
    %906 = vmatmul.f32.gmra.mxu0 %v862
    %v907 = vpop.f32.mrf.mxu0
    %v908 = vadd.f32 %v856, %v907
    %909 = vdwg.mxu0
    %910 = vmatpush.msra.mxu0 0.0
    %911 = vmatpush.msra.mxu0 0.0
    %912 = vmatpush.msra.mxu0 0.0
    %913 = vmatpush.msra.mxu0 0.0
    %914 = vmatpush.msra.mxu0 0.0
    %915 = vmatpush.msra.mxu0 0.0
    %916 = vmatpush.msra.mxu0 0.0
    %917 = vmatpush.msra.mxu0 0.0
    %918 = vmatpush.msra.mxu0 0.0
    %919 = vmatpush.msra.mxu0 0.0
    %920 = vmatpush.msra.mxu0 %v846
    %921 = vmatpush.msra.mxu0 %v842
    %922 = vmatpush.msra.mxu0 %v838
    %923 = vmatpush.msra.mxu0 %v834
    %924 = vmatpush.msra.mxu0 %v830
    %925 = vmatpush.msra.mxu0 %v826
    %926 = vmatmul.f32.gmra.mxu0 %v859
    %v927 = vpop.f32.mrf.mxu0
    %v928 = vadd.f32 %v851, %v927
    %929 = vmatmul.f32.gmra.mxu0 %v862
    %v930 = vpop.f32.mrf.mxu0
    %v931 = vadd.f32 %v856, %v930
    %932 = vdwg.mxu0
    %933 = vmatpush.msra.mxu0 0.0
    %934 = vmatpush.msra.mxu0 0.0
    %935 = vmatpush.msra.mxu0 0.0
    %936 = vmatpush.msra.mxu0 0.0
    %937 = vmatpush.msra.mxu0 0.0
    %938 = vmatpush.msra.mxu0 0.0
    %939 = vmatpush.msra.mxu0 0.0
    %940 = vmatpush.msra.mxu0 0.0
    %941 = vmatpush.msra.mxu0 0.0
    %942 = vmatpush.msra.mxu0 0.0
    %943 = vmatpush.msra.mxu0 %v847
    %944 = vmatpush.msra.mxu0 %v843
    %945 = vmatpush.msra.mxu0 %v839
    %946 = vmatpush.msra.mxu0 %v835
    %947 = vmatpush.msra.mxu0 %v831
    %948 = vmatpush.msra.mxu0 %v827
    %949 = vmatmul.f32.gmra.mxu0 %v859
    %v950 = vpop.f32.mrf.mxu0
    %v951 = vadd.f32 %v851, %v950
    %952 = vmatmul.f32.gmra.mxu0 %v862
    %v953 = vpop.f32.mrf.mxu0
    %v954 = vadd.f32 %v856, %v953
    %955 = vdwg.mxu0
    %956 = vrot.lane.b32.xlu0 %v882, 2
    %v957 = vpop.permute.xlu0 %956
    %958 = vrot.lane.b32.xlu0 %v885, 2
    %v959 = vpop.permute.xlu0 %958
    %960 = vrot.lane.b32.xlu0 %v905, 2
    %v961 = vpop.permute.xlu0 %960
    %962 = vrot.lane.b32.xlu0 %v908, 2
    %v963 = vpop.permute.xlu0 %962
    %964 = vrot.lane.b32.xlu0 %v928, 2
    %v965 = vpop.permute.xlu0 %964
    %966 = vrot.lane.b32.xlu0 %v931, 2
    %v967 = vpop.permute.xlu0 %966
    %968 = vrot.lane.b32.xlu0 %v951, 2
    %v969 = vpop.permute.xlu0 %968
    %970 = vrot.lane.b32.xlu0 %v954, 2
    %v971 = vpop.permute.xlu0 %970
    %vm972 = vcmp.lt.s32.totalorder %v131, 2
    %v973 = vsel %vm972, %v965, %v969
    %v974 = vsel %vm972, %v967, %v971
    %v975 = vsel %vm972, %v961, %v965
    %v976 = vsel %vm972, %v963, %v967
    %v977 = vsel %vm972, %v957, %v961
    %v978 = vsel %vm972, %v959, %v963
    %v979 = vsel %vm972, %v969, %v957
    %v980 = vsel %vm972, %v971, %v959
    %v981 = vmul.f32 %v979, %v159
    %v982 = vmul.f32 %v977, %v160
    %v983 = vmul.f32 %v975, %v161
    %v984 = vmul.f32 %v973, %v162
    %v985 = vmul.f32 %v980, %v159
    %v986 = vmul.f32 %v978, %v160
    %v987 = vmul.f32 %v976, %v161
    %v988 = vmul.f32 %v974, %v162
    %989 = vst [vmem:[#allocation2] sm:$0xff] %v981
    %990 = vst [vmem:[#allocation2 + $0x8] sm:$0xff] %v982
    %991 = vst [vmem:[#allocation2 + $0x10] sm:$0xff] %v983
    %992 = vst [vmem:[#allocation2 + $0x18] sm:$0xff] %v984
    %993 = vst [vmem:[#allocation2 + $0x20] sm:$0xff] %v985
    %994 = vst [vmem:[#allocation2 + $0x28] sm:$0xff] %v986
    %995 = vst [vmem:[#allocation2 + $0x30] sm:$0xff] %v987
    %996 = vst [vmem:[#allocation2 + $0x38] sm:$0xff] %v988
    %997 = vst [vmem:[#allocation2 + $0x40] sm:$0xff] %v882
    %998 = vst [vmem:[#allocation2 + $0x48] sm:$0xff] %v905
    %999 = vst [vmem:[#allocation2 + $0x50] sm:$0xff] %v928
    %1000 = vst [vmem:[#allocation2 + $0x58] sm:$0xff] %v951
    %1001 = vst [vmem:[#allocation2 + $0x60] sm:$0xff] %v885
    %1002 = vst [vmem:[#allocation2 + $0x68] sm:$0xff] %v908
    %1003 = vst [vmem:[#allocation2 + $0x70] sm:$0xff] %v931
    %1004 = vst [vmem:[#allocation2 + $0x78] sm:$0xff] %v954
    %1005 = vrot.lane.b32.xlu0 %v882, 126
    %v1006 = vpop.permute.xlu0 %1005
    %1007 = vrot.lane.b32.xlu0 %v885, 126
    %v1008 = vpop.permute.xlu0 %1007
    %1009 = vrot.lane.b32.xlu0 %v905, 126
    %v1010 = vpop.permute.xlu0 %1009
    %1011 = vrot.lane.b32.xlu0 %v908, 126
    %v1012 = vpop.permute.xlu0 %1011
    %1013 = vrot.lane.b32.xlu0 %v928, 126
    %v1014 = vpop.permute.xlu0 %1013
    %1015 = vrot.lane.b32.xlu0 %v931, 126
    %v1016 = vpop.permute.xlu0 %1015
    %1017 = vrot.lane.b32.xlu0 %v951, 126
    %v1018 = vpop.permute.xlu0 %1017
    %1019 = vrot.lane.b32.xlu0 %v954, 126
    %v1020 = vpop.permute.xlu0 %1019
    %vm1021 = vcmp.lt.s32.totalorder %v131, 126
    %v1022 = vsel %vm1021, %v1014, %v1018
    %v1023 = vsel %vm1021, %v1016, %v1020
    %v1024 = vsel %vm1021, %v1010, %v1014
    %v1025 = vsel %vm1021, %v1012, %v1016
    %v1026 = vsel %vm1021, %v1006, %v1010
    %v1027 = vsel %vm1021, %v1008, %v1012
    %v1028 = vsel %vm1021, %v1018, %v1006
    %v1029 = vsel %vm1021, %v1020, %v1008
    %v1030 = vmul.f32 %v1026, %v183
    %v1031 = vmul.f32 %v1024, %v184
    %v1032 = vmul.f32 %v1022, %v185
    %v1033 = vmul.f32 %v1028, %v186
    %v1034 = vmul.f32 %v1027, %v183
    %v1035 = vmul.f32 %v1025, %v184
    %v1036 = vmul.f32 %v1023, %v185
    %v1037 = vmul.f32 %v1029, %v186
    %1038 = vst [vmem:[#allocation2 + $0x80] sm:$0xff] %v1030
    %1039 = vst [vmem:[#allocation2 + $0x88] sm:$0xff] %v1031
    %1040 = vst [vmem:[#allocation2 + $0x90] sm:$0xff] %v1032
    %1041 = vst [vmem:[#allocation2 + $0x98] sm:$0xff] %v1033
    %1042 = vst [vmem:[#allocation2 + $0xa0] sm:$0xff] %v1034
    %1043 = vst [vmem:[#allocation2 + $0xa8] sm:$0xff] %v1035
    %1044 = vst [vmem:[#allocation2 + $0xb0] sm:$0xff] %v1036
    %1045 = vst [vmem:[#allocation2 + $0xb8] sm:$0xff] %v1037
    %v1046 = vld [vmem:[#allocation2] sm:$0xff]
    %v1047 = vld [vmem:[#allocation2 + $0x8] sm:$0xff]
    %v1048 = vld [vmem:[#allocation2 + $0x10] sm:$0xff]
    %v1049 = vld [vmem:[#allocation2 + $0x18] sm:$0xff]
    %v1050 = vld [vmem:[#allocation2 + $0x20] sm:$0xff]
    %v1051 = vld [vmem:[#allocation2 + $0x28] sm:$0xff]
    %v1052 = vld [vmem:[#allocation2 + $0x30] sm:$0xff]
    %v1053 = vld [vmem:[#allocation2 + $0x38] sm:$0xff]
    %v1054 = vld [vmem:[#allocation2 + $0x40] sm:$0xff]
    %v1055 = vld [vmem:[#allocation2 + $0x48] sm:$0xff]
    %v1056 = vld [vmem:[#allocation2 + $0x50] sm:$0xff]
    %v1057 = vld [vmem:[#allocation2 + $0x58] sm:$0xff]
    %v1058 = vld [vmem:[#allocation2 + $0x60] sm:$0xff]
    %v1059 = vld [vmem:[#allocation2 + $0x68] sm:$0xff]
    %v1060 = vld [vmem:[#allocation2 + $0x70] sm:$0xff]
    %v1061 = vld [vmem:[#allocation2 + $0x78] sm:$0xff]
    %v1062 = vld [vmem:[#allocation2 + $0x80] sm:$0xff]
    %v1063 = vld [vmem:[#allocation2 + $0x88] sm:$0xff]
    %v1064 = vld [vmem:[#allocation2 + $0x90] sm:$0xff]
    %v1065 = vld [vmem:[#allocation2 + $0x98] sm:$0xff]
    %v1066 = vld [vmem:[#allocation2 + $0xa0] sm:$0xff]
    %v1067 = vld [vmem:[#allocation2 + $0xa8] sm:$0xff]
    %v1068 = vld [vmem:[#allocation2 + $0xb0] sm:$0xff]
    %v1069 = vld [vmem:[#allocation2 + $0xb8] sm:$0xff]
    %1071 = vset.pattern.permute.xlu0 0
    %1072 = vperm.xlu0 %1071, %v128
    %v1073 = vpop.permute.xlu0 %1072
    %1076 = vset.pattern.permute.xlu0 0
    %1077 = vperm.xlu0 %1076, %v129
    %v1078 = vpop.permute.xlu0 %1077
    %v1081 = vsel %vm420, %v120, 0
    %v1084 = vsel %vm420, %v121, 0
    %1086 = vmatpush.msra.mxu0 0.0
    %1087 = vmatpush.msra.mxu0 0.0
    %1088 = vmatpush.msra.mxu0 0.0
    %1089 = vmatpush.msra.mxu0 0.0
    %1090 = vmatpush.msra.mxu0 0.0
    %1091 = vmatpush.msra.mxu0 0.0
    %1092 = vmatpush.msra.mxu0 0.0
    %1093 = vmatpush.msra.mxu0 0.0
    %1094 = vmatpush.msra.mxu0 0.0
    %1095 = vmatpush.msra.mxu0 0.0
    %1096 = vmatpush.msra.mxu0 %v1066
    %1097 = vmatpush.msra.mxu0 %v1062
    %1098 = vmatpush.msra.mxu0 %v1058
    %1099 = vmatpush.msra.mxu0 %v1054
    %1100 = vmatpush.msra.mxu0 %v1050
    %1101 = vmatpush.msra.mxu0 %v1046
    %1102 = vmatmul.f32.gmra.mxu0 %v1081
    %v1103 = vpop.f32.mrf.mxu0
    %v1104 = vadd.f32 %v1073, %v1103
    %1105 = vmatmul.f32.gmra.mxu0 %v1084
    %v1106 = vpop.f32.mrf.mxu0
    %v1107 = vadd.f32 %v1078, %v1106
    %1108 = vdwg.mxu0
    %1109 = vmatpush.msra.mxu0 0.0
    %1110 = vmatpush.msra.mxu0 0.0
    %1111 = vmatpush.msra.mxu0 0.0
    %1112 = vmatpush.msra.mxu0 0.0
    %1113 = vmatpush.msra.mxu0 0.0
    %1114 = vmatpush.msra.mxu0 0.0
    %1115 = vmatpush.msra.mxu0 0.0
    %1116 = vmatpush.msra.mxu0 0.0
    %1117 = vmatpush.msra.mxu0 0.0
    %1118 = vmatpush.msra.mxu0 0.0
    %1119 = vmatpush.msra.mxu0 %v1067
    %1120 = vmatpush.msra.mxu0 %v1063
    %1121 = vmatpush.msra.mxu0 %v1059
    %1122 = vmatpush.msra.mxu0 %v1055
    %1123 = vmatpush.msra.mxu0 %v1051
    %1124 = vmatpush.msra.mxu0 %v1047
    %1125 = vmatmul.f32.gmra.mxu0 %v1081
    %v1126 = vpop.f32.mrf.mxu0
    %v1127 = vadd.f32 %v1073, %v1126
    %1128 = vmatmul.f32.gmra.mxu0 %v1084
    %v1129 = vpop.f32.mrf.mxu0
    %v1130 = vadd.f32 %v1078, %v1129
    %1131 = vdwg.mxu0
    %1132 = vmatpush.msra.mxu0 0.0
    %1133 = vmatpush.msra.mxu0 0.0
    %1134 = vmatpush.msra.mxu0 0.0
    %1135 = vmatpush.msra.mxu0 0.0
    %1136 = vmatpush.msra.mxu0 0.0
    %1137 = vmatpush.msra.mxu0 0.0
    %1138 = vmatpush.msra.mxu0 0.0
    %1139 = vmatpush.msra.mxu0 0.0
    %1140 = vmatpush.msra.mxu0 0.0
    %1141 = vmatpush.msra.mxu0 0.0
    %1142 = vmatpush.msra.mxu0 %v1068
    %1143 = vmatpush.msra.mxu0 %v1064
    %1144 = vmatpush.msra.mxu0 %v1060
    %1145 = vmatpush.msra.mxu0 %v1056
    %1146 = vmatpush.msra.mxu0 %v1052
    %1147 = vmatpush.msra.mxu0 %v1048
    %1148 = vmatmul.f32.gmra.mxu0 %v1081
    %v1149 = vpop.f32.mrf.mxu0
    %v1150 = vadd.f32 %v1073, %v1149
    %1151 = vmatmul.f32.gmra.mxu0 %v1084
    %v1152 = vpop.f32.mrf.mxu0
    %v1153 = vadd.f32 %v1078, %v1152
    %1154 = vdwg.mxu0
    %1155 = vmatpush.msra.mxu0 0.0
    %1156 = vmatpush.msra.mxu0 0.0
    %1157 = vmatpush.msra.mxu0 0.0
    %1158 = vmatpush.msra.mxu0 0.0
    %1159 = vmatpush.msra.mxu0 0.0
    %1160 = vmatpush.msra.mxu0 0.0
    %1161 = vmatpush.msra.mxu0 0.0
    %1162 = vmatpush.msra.mxu0 0.0
    %1163 = vmatpush.msra.mxu0 0.0
    %1164 = vmatpush.msra.mxu0 0.0
    %1165 = vmatpush.msra.mxu0 %v1069
    %1166 = vmatpush.msra.mxu0 %v1065
    %1167 = vmatpush.msra.mxu0 %v1061
    %1168 = vmatpush.msra.mxu0 %v1057
    %1169 = vmatpush.msra.mxu0 %v1053
    %1170 = vmatpush.msra.mxu0 %v1049
    %1171 = vmatmul.f32.gmra.mxu0 %v1081
    %v1172 = vpop.f32.mrf.mxu0
    %v1173 = vadd.f32 %v1073, %v1172
    %1174 = vmatmul.f32.gmra.mxu0 %v1084
    %v1175 = vpop.f32.mrf.mxu0
    %v1176 = vadd.f32 %v1078, %v1175
    %1177 = vdwg.mxu0
    %v1178 = vmax.f32 %v1104, 0.0
    %v1179 = vmax.f32 %v1127, 0.0
    %v1180 = vmax.f32 %v1150, 0.0
    %v1181 = vmax.f32 %v1173, 0.0
    %v1182 = vmax.f32 %v1107, 0.0
    %v1183 = vmax.f32 %v1130, 0.0
    %v1184 = vmax.f32 %v1153, 0.0
    %v1185 = vmax.f32 %v1176, 0.0
    %v1186 = vadd.f32 %v1178, %v1179
    %1187 = vadd.xlane.f32.xlu0 %v1186
    %v1188 = vpop.xlane.xlu0 %1187
    %v1189 = vadd.f32 %v1182, %v1183
    %1190 = vadd.xlane.f32.xlu0 %v1189
    %v1191 = vpop.xlane.xlu0 %1190
    %v1192 = vmul.f32 %v1188, %v539
    %v1193 = vmul.f32 %v1191, %v539
    %v1194 = vsub.f32 %v1178, %v1192
    %v1195 = vsub.f32 %v1179, %v1192
    %v1196 = vsub.f32 %v1182, %v1193
    %v1197 = vsub.f32 %v1183, %v1193
    %v1198 = vmul.f32 %v1194, %v1194
    %v1199 = vmul.f32 %v1195, %v1195
    %v1200 = vmul.f32 %v1196, %v1196
    %v1201 = vmul.f32 %v1197, %v1197
    %v1202 = vadd.f32 %v1198, %v1199
    %1203 = vadd.xlane.f32.xlu0 %v1202
    %v1204 = vpop.xlane.xlu0 %1203
    %v1205 = vadd.f32 %v1200, %v1201
    %1206 = vadd.xlane.f32.xlu0 %v1205
    %v1207 = vpop.xlane.xlu0 %1206
    %v1208 = vmul.f32 %v1204, 0.003921569
    %v1209 = vmul.f32 %v1207, 0.003921569
    %v1210 = vrsqrt.pop %v1208
    %v1211 = vmul.f32 %v1210, %v1208
    %v1212 = vmul.f32 %v1211, %v1210
    %v1213 = vmul.f32 0.5, %v1212
    %v1214 = vsub.f32 1.5, %v1213
    %v1215 = vmul.f32 %v1210, %v1214
    %v1216 = vmul.f32 %v1208, %v1215
    %vm1217 = vcmp.eq.f32.partialorder %v1208, inf
    %v1218 = vsel %vm1217, %v1208, %v1216
    %vm1219 = vcmp.eq.f32.partialorder %v1208, 0.0
    %v1220 = vand.u32 %v1208, 2147483648
    %v1221 = vsel %vm1219, %v1220, %v1218
    %v1222 = vrsqrt.pop %v1209
    %v1223 = vmul.f32 %v1222, %v1209
    %v1224 = vmul.f32 %v1223, %v1222
    %v1225 = vmul.f32 0.5, %v1224
    %v1226 = vsub.f32 1.5, %v1225
    %v1227 = vmul.f32 %v1222, %v1226
    %v1228 = vmul.f32 %v1209, %v1227
    %vm1229 = vcmp.eq.f32.partialorder %v1209, inf
    %v1230 = vsel %vm1229, %v1209, %v1228
    %vm1231 = vcmp.eq.f32.partialorder %v1209, 0.0
    %v1232 = vand.u32 %v1209, 2147483648
    %v1233 = vsel %vm1231, %v1232, %v1230
    %v1234 = vadd.f32 %v1221, 1e-06
    %v1235 = vadd.f32 %v1233, 1e-06
    %v1236 = vrcp.pop %v1234
    %v1237 = vmul.f32 %v1234, %v1236
    %v1238 = vsub.f32 1.0, %v1237
    %v1239 = vmul.f32 %v1236, %v1238
    %v1240 = vadd.f32 %v1236, %v1239
    %vm1241 = vweird.f32 %v1234
    %vm1242 = vweird.f32 %v1236
    %vm1243 = vmor %vm1241, %vm1242
    %v1244 = vsel %vm1243, %v1236, %v1240
    %v1245 = vand.u32 2147483647, %v1234
    %vm1246 = vcmp.eq.f32.partialorder %v1245, 8.507059e+37
    %v1247 = vand.u32 %v1234, 2147483648
    %v1248 = vor.u32 1.1754944e-38, %v1247
    %v1249 = vsel %vm1246, %v1248, %v1244
    %v1250 = vmul.f32 1.0, %v1249
    %v1251 = vrcp.pop %v1235
    %v1252 = vmul.f32 %v1235, %v1251
    %v1253 = vsub.f32 1.0, %v1252
    %v1254 = vmul.f32 %v1251, %v1253
    %v1255 = vadd.f32 %v1251, %v1254
    %vm1256 = vweird.f32 %v1235
    %vm1257 = vweird.f32 %v1251
    %vm1258 = vmor %vm1256, %vm1257
    %v1259 = vsel %vm1258, %v1251, %v1255
    %v1260 = vand.u32 2147483647, %v1235
    %vm1261 = vcmp.eq.f32.partialorder %v1260, 8.507059e+37
    %v1262 = vand.u32 %v1235, 2147483648
    %v1263 = vor.u32 1.1754944e-38, %v1262
    %v1264 = vsel %vm1261, %v1263, %v1259
    %v1265 = vmul.f32 1.0, %v1264
    %v1266 = vmul.f32 %v1194, %v1250
    %v1267 = vmul.f32 %v1195, %v1250
    %v1268 = vmul.f32 %v1196, %v1265
    %v1269 = vmul.f32 %v1197, %v1265
    %v1270 = vadd.f32 %v1180, %v1181
    %1271 = vadd.xlane.f32.xlu0 %v1270
    %v1272 = vpop.xlane.xlu0 %1271
    %v1273 = vadd.f32 %v1184, %v1185
    %1274 = vadd.xlane.f32.xlu0 %v1273
    %v1275 = vpop.xlane.xlu0 %1274
    %v1276 = vmul.f32 %v1272, %v539
    %v1277 = vmul.f32 %v1275, %v539
    %v1278 = vsub.f32 %v1180, %v1276
    %v1279 = vsub.f32 %v1181, %v1276
    %v1280 = vsub.f32 %v1184, %v1277
    %v1281 = vsub.f32 %v1185, %v1277
    %v1282 = vmul.f32 %v1278, %v1278
    %v1283 = vmul.f32 %v1279, %v1279
    %v1284 = vmul.f32 %v1280, %v1280
    %v1285 = vmul.f32 %v1281, %v1281
    %v1286 = vadd.f32 %v1282, %v1283
    %1287 = vadd.xlane.f32.xlu0 %v1286
    %v1288 = vpop.xlane.xlu0 %1287
    %v1289 = vadd.f32 %v1284, %v1285
    %1290 = vadd.xlane.f32.xlu0 %v1289
    %v1291 = vpop.xlane.xlu0 %1290
    %v1292 = vmul.f32 %v1288, 0.003921569
    %v1293 = vmul.f32 %v1291, 0.003921569
    %v1294 = vrsqrt.pop %v1292
    %v1295 = vmul.f32 %v1294, %v1292
    %v1296 = vmul.f32 %v1295, %v1294
    %v1297 = vmul.f32 0.5, %v1296
    %v1298 = vsub.f32 1.5, %v1297
    %v1299 = vmul.f32 %v1294, %v1298
    %v1300 = vmul.f32 %v1292, %v1299
    %vm1301 = vcmp.eq.f32.partialorder %v1292, inf
    %v1302 = vsel %vm1301, %v1292, %v1300
    %vm1303 = vcmp.eq.f32.partialorder %v1292, 0.0
    %v1304 = vand.u32 %v1292, 2147483648
    %v1305 = vsel %vm1303, %v1304, %v1302
    %v1306 = vrsqrt.pop %v1293
    %v1307 = vmul.f32 %v1306, %v1293
    %v1308 = vmul.f32 %v1307, %v1306
    %v1309 = vmul.f32 0.5, %v1308
    %v1310 = vsub.f32 1.5, %v1309
    %v1311 = vmul.f32 %v1306, %v1310
    %v1312 = vmul.f32 %v1293, %v1311
    %vm1313 = vcmp.eq.f32.partialorder %v1293, inf
    %v1314 = vsel %vm1313, %v1293, %v1312
    %vm1315 = vcmp.eq.f32.partialorder %v1293, 0.0
    %v1316 = vand.u32 %v1293, 2147483648
    %v1317 = vsel %vm1315, %v1316, %v1314
    %v1318 = vadd.f32 %v1305, 1e-06
    %v1319 = vadd.f32 %v1317, 1e-06
    %v1320 = vrcp.pop %v1318
    %v1321 = vmul.f32 %v1318, %v1320
    %v1322 = vsub.f32 1.0, %v1321
    %v1323 = vmul.f32 %v1320, %v1322
    %v1324 = vadd.f32 %v1320, %v1323
    %vm1325 = vweird.f32 %v1318
    %vm1326 = vweird.f32 %v1320
    %vm1327 = vmor %vm1325, %vm1326
    %v1328 = vsel %vm1327, %v1320, %v1324
    %v1329 = vand.u32 2147483647, %v1318
    %vm1330 = vcmp.eq.f32.partialorder %v1329, 8.507059e+37
    %v1331 = vand.u32 %v1318, 2147483648
    %v1332 = vor.u32 1.1754944e-38, %v1331
    %v1333 = vsel %vm1330, %v1332, %v1328
    %v1334 = vmul.f32 1.0, %v1333
    %v1335 = vrcp.pop %v1319
    %v1336 = vmul.f32 %v1319, %v1335
    %v1337 = vsub.f32 1.0, %v1336
    %v1338 = vmul.f32 %v1335, %v1337
    %v1339 = vadd.f32 %v1335, %v1338
    %vm1340 = vweird.f32 %v1319
    %vm1341 = vweird.f32 %v1335
    %vm1342 = vmor %vm1340, %vm1341
    %v1343 = vsel %vm1342, %v1335, %v1339
    %v1344 = vand.u32 2147483647, %v1319
    %vm1345 = vcmp.eq.f32.partialorder %v1344, 8.507059e+37
    %v1346 = vand.u32 %v1319, 2147483648
    %v1347 = vor.u32 1.1754944e-38, %v1346
    %v1348 = vsel %vm1345, %v1347, %v1343
    %v1349 = vmul.f32 1.0, %v1348
    %v1350 = vmul.f32 %v1278, %v1334
    %v1351 = vmul.f32 %v1279, %v1334
    %v1352 = vmul.f32 %v1280, %v1349
    %v1353 = vmul.f32 %v1281, %v1349
    %v1355 = vperm.slane %v112, 0
    %v1356 = vperm.slane %v112, 1
    %v1357 = vperm.slane %v112, 2
    %v1358 = vperm.slane %v112, 3
    %v1363 = vmul.f32 %v1355, %v1266
    %v1364 = vmul.f32 %v1356, %v1267
    %v1365 = vmul.f32 %v1357, %v1350
    %v1366 = vmul.f32 %v1358, %v1351
    %v1367 = vmul.f32 %v1355, %v1268
    %v1368 = vmul.f32 %v1356, %v1269
    %v1369 = vmul.f32 %v1357, %v1352
    %v1370 = vmul.f32 %v1358, %v1353
    %v1372 = vperm.slane %v113, 0
    %v1373 = vperm.slane %v113, 1
    %v1374 = vperm.slane %v113, 2
    %v1375 = vperm.slane %v113, 3
    %v1380 = vadd.f32 %v1363, %v1372
    %v1381 = vadd.f32 %v1364, %v1373
    %v1382 = vadd.f32 %v1365, %v1374
    %v1383 = vadd.f32 %v1366, %v1375
    %v1384 = vadd.f32 %v1367, %v1372
    %v1385 = vadd.f32 %v1368, %v1373
    %v1386 = vadd.f32 %v1369, %v1374
    %v1387 = vadd.f32 %v1370, %v1375
    %1388 = vrot.lane.b32.xlu0 %v1380, 1
    %v1389 = vpop.permute.xlu0 %1388
    %1390 = vrot.lane.b32.xlu0 %v1384, 1
    %v1391 = vpop.permute.xlu0 %1390
    %1392 = vrot.lane.b32.xlu0 %v1381, 1
    %v1393 = vpop.permute.xlu0 %1392
    %1394 = vrot.lane.b32.xlu0 %v1385, 1
    %v1395 = vpop.permute.xlu0 %1394
    %1396 = vrot.lane.b32.xlu0 %v1382, 1
    %v1397 = vpop.permute.xlu0 %1396
    %1398 = vrot.lane.b32.xlu0 %v1386, 1
    %v1399 = vpop.permute.xlu0 %1398
    %1400 = vrot.lane.b32.xlu0 %v1383, 1
    %v1401 = vpop.permute.xlu0 %1400
    %1402 = vrot.lane.b32.xlu0 %v1387, 1
    %v1403 = vpop.permute.xlu0 %1402
    %v1404 = vsel %vm312, %v1397, %v1401
    %v1405 = vsel %vm312, %v1399, %v1403
    %v1406 = vsel %vm312, %v1393, %v1397
    %v1407 = vsel %vm312, %v1395, %v1399
    %v1408 = vsel %vm312, %v1389, %v1393
    %v1409 = vsel %vm312, %v1391, %v1395
    %v1410 = vsel %vm312, %v1401, %v1389
    %v1411 = vsel %vm312, %v1403, %v1391
    %v1412 = vmul.f32 %v1410, %v147
    %v1413 = vmul.f32 %v1408, %v148
    %v1414 = vmul.f32 %v1406, %v149
    %v1415 = vmul.f32 %v1404, %v150
    %v1416 = vmul.f32 %v1411, %v147
    %v1417 = vmul.f32 %v1409, %v148
    %v1418 = vmul.f32 %v1407, %v149
    %v1419 = vmul.f32 %v1405, %v150
    %1420 = vst [vmem:[#allocation2] sm:$0xff] %v1412
    %1421 = vst [vmem:[#allocation2 + $0x8] sm:$0xff] %v1413
    %1422 = vst [vmem:[#allocation2 + $0x10] sm:$0xff] %v1414
    %1423 = vst [vmem:[#allocation2 + $0x18] sm:$0xff] %v1415
    %1424 = vst [vmem:[#allocation2 + $0x20] sm:$0xff] %v1416
    %1425 = vst [vmem:[#allocation2 + $0x28] sm:$0xff] %v1417
    %1426 = vst [vmem:[#allocation2 + $0x30] sm:$0xff] %v1418
    %1427 = vst [vmem:[#allocation2 + $0x38] sm:$0xff] %v1419
    %1428 = vst [vmem:[#allocation2 + $0x40] sm:$0xff] %v1380
    %1429 = vst [vmem:[#allocation2 + $0x48] sm:$0xff] %v1381
    %1430 = vst [vmem:[#allocation2 + $0x50] sm:$0xff] %v1382
    %1431 = vst [vmem:[#allocation2 + $0x58] sm:$0xff] %v1383
    %1432 = vst [vmem:[#allocation2 + $0x60] sm:$0xff] %v1384
    %1433 = vst [vmem:[#allocation2 + $0x68] sm:$0xff] %v1385
    %1434 = vst [vmem:[#allocation2 + $0x70] sm:$0xff] %v1386
    %1435 = vst [vmem:[#allocation2 + $0x78] sm:$0xff] %v1387
    %1436 = vrot.lane.b32.xlu0 %v1380, 127
    %v1437 = vpop.permute.xlu0 %1436
    %1438 = vrot.lane.b32.xlu0 %v1384, 127
    %v1439 = vpop.permute.xlu0 %1438
    %1440 = vrot.lane.b32.xlu0 %v1381, 127
    %v1441 = vpop.permute.xlu0 %1440
    %1442 = vrot.lane.b32.xlu0 %v1385, 127
    %v1443 = vpop.permute.xlu0 %1442
    %1444 = vrot.lane.b32.xlu0 %v1382, 127
    %v1445 = vpop.permute.xlu0 %1444
    %1446 = vrot.lane.b32.xlu0 %v1386, 127
    %v1447 = vpop.permute.xlu0 %1446
    %1448 = vrot.lane.b32.xlu0 %v1383, 127
    %v1449 = vpop.permute.xlu0 %1448
    %1450 = vrot.lane.b32.xlu0 %v1387, 127
    %v1451 = vpop.permute.xlu0 %1450
    %v1452 = vsel %vm361, %v1445, %v1449
    %v1453 = vsel %vm361, %v1447, %v1451
    %v1454 = vsel %vm361, %v1441, %v1445
    %v1455 = vsel %vm361, %v1443, %v1447
    %v1456 = vsel %vm361, %v1437, %v1441
    %v1457 = vsel %vm361, %v1439, %v1443
    %v1458 = vsel %vm361, %v1449, %v1437
    %v1459 = vsel %vm361, %v1451, %v1439
    %v1460 = vmul.f32 %v1456, %v171
    %v1461 = vmul.f32 %v1454, %v172
    %v1462 = vmul.f32 %v1452, %v173
    %v1463 = vmul.f32 %v1458, %v174
    %v1464 = vmul.f32 %v1457, %v171
    %v1465 = vmul.f32 %v1455, %v172
    %v1466 = vmul.f32 %v1453, %v173
    %v1467 = vmul.f32 %v1459, %v174
    %1468 = vst [vmem:[#allocation2 + $0x80] sm:$0xff] %v1460
    %1469 = vst [vmem:[#allocation2 + $0x88] sm:$0xff] %v1461
    %1470 = vst [vmem:[#allocation2 + $0x90] sm:$0xff] %v1462
    %1471 = vst [vmem:[#allocation2 + $0x98] sm:$0xff] %v1463
    %1472 = vst [vmem:[#allocation2 + $0xa0] sm:$0xff] %v1464
    %1473 = vst [vmem:[#allocation2 + $0xa8] sm:$0xff] %v1465
    %1474 = vst [vmem:[#allocation2 + $0xb0] sm:$0xff] %v1466
    %1475 = vst [vmem:[#allocation2 + $0xb8] sm:$0xff] %v1467
    %v1476 = vld [vmem:[#allocation2] sm:$0xff]
    %v1477 = vld [vmem:[#allocation2 + $0x8] sm:$0xff]
    %v1478 = vld [vmem:[#allocation2 + $0x10] sm:$0xff]
    %v1479 = vld [vmem:[#allocation2 + $0x18] sm:$0xff]
    %v1480 = vld [vmem:[#allocation2 + $0x20] sm:$0xff]
    %v1481 = vld [vmem:[#allocation2 + $0x28] sm:$0xff]
    %v1482 = vld [vmem:[#allocation2 + $0x30] sm:$0xff]
    %v1483 = vld [vmem:[#allocation2 + $0x38] sm:$0xff]
    %v1484 = vld [vmem:[#allocation2 + $0x40] sm:$0xff]
    %v1485 = vld [vmem:[#allocation2 + $0x48] sm:$0xff]
    %v1486 = vld [vmem:[#allocation2 + $0x50] sm:$0xff]
    %v1487 = vld [vmem:[#allocation2 + $0x58] sm:$0xff]
    %v1488 = vld [vmem:[#allocation2 + $0x60] sm:$0xff]
    %v1489 = vld [vmem:[#allocation2 + $0x68] sm:$0xff]
    %v1490 = vld [vmem:[#allocation2 + $0x70] sm:$0xff]
    %v1491 = vld [vmem:[#allocation2 + $0x78] sm:$0xff]
    %v1492 = vld [vmem:[#allocation2 + $0x80] sm:$0xff]
    %v1493 = vld [vmem:[#allocation2 + $0x88] sm:$0xff]
    %v1494 = vld [vmem:[#allocation2 + $0x90] sm:$0xff]
    %v1495 = vld [vmem:[#allocation2 + $0x98] sm:$0xff]
    %v1496 = vld [vmem:[#allocation2 + $0xa0] sm:$0xff]
    %v1497 = vld [vmem:[#allocation2 + $0xa8] sm:$0xff]
    %v1498 = vld [vmem:[#allocation2 + $0xb0] sm:$0xff]
    %v1499 = vld [vmem:[#allocation2 + $0xb8] sm:$0xff]
    %1500 = vmatpush.msra.mxu0 0.0
    %1501 = vmatpush.msra.mxu0 0.0
    %1502 = vmatpush.msra.mxu0 0.0
    %1503 = vmatpush.msra.mxu0 0.0
    %1504 = vmatpush.msra.mxu0 0.0
    %1505 = vmatpush.msra.mxu0 0.0
    %1506 = vmatpush.msra.mxu0 0.0
    %1507 = vmatpush.msra.mxu0 0.0
    %1508 = vmatpush.msra.mxu0 0.0
    %1509 = vmatpush.msra.mxu0 0.0
    %1510 = vmatpush.msra.mxu0 %v1496
    %1511 = vmatpush.msra.mxu0 %v1492
    %1512 = vmatpush.msra.mxu0 %v1488
    %1513 = vmatpush.msra.mxu0 %v1484
    %1514 = vmatpush.msra.mxu0 %v1480
    %1515 = vmatpush.msra.mxu0 %v1476
    %1516 = vmatmul.f32.gmra.mxu0 %v422
    %v1517 = vpop.f32.mrf.mxu0
    %v1518 = vadd.f32 %v413, %v1517
    %1519 = vmatmul.f32.gmra.mxu0 %v425
    %v1520 = vpop.f32.mrf.mxu0
    %v1521 = vadd.f32 %v418, %v1520
    %1522 = vdwg.mxu0
    %1523 = vmatpush.msra.mxu0 0.0
    %1524 = vmatpush.msra.mxu0 0.0
    %1525 = vmatpush.msra.mxu0 0.0
    %1526 = vmatpush.msra.mxu0 0.0
    %1527 = vmatpush.msra.mxu0 0.0
    %1528 = vmatpush.msra.mxu0 0.0
    %1529 = vmatpush.msra.mxu0 0.0
    %1530 = vmatpush.msra.mxu0 0.0
    %1531 = vmatpush.msra.mxu0 0.0
    %1532 = vmatpush.msra.mxu0 0.0
    %1533 = vmatpush.msra.mxu0 %v1497
    %1534 = vmatpush.msra.mxu0 %v1493
    %1535 = vmatpush.msra.mxu0 %v1489
    %1536 = vmatpush.msra.mxu0 %v1485
    %1537 = vmatpush.msra.mxu0 %v1481
    %1538 = vmatpush.msra.mxu0 %v1477
    %1539 = vmatmul.f32.gmra.mxu0 %v422
    %v1540 = vpop.f32.mrf.mxu0
    %v1541 = vadd.f32 %v413, %v1540
    %1542 = vmatmul.f32.gmra.mxu0 %v425
    %v1543 = vpop.f32.mrf.mxu0
    %v1544 = vadd.f32 %v418, %v1543
    %1545 = vdwg.mxu0
    %1546 = vmatpush.msra.mxu0 0.0
    %1547 = vmatpush.msra.mxu0 0.0
    %1548 = vmatpush.msra.mxu0 0.0
    %1549 = vmatpush.msra.mxu0 0.0
    %1550 = vmatpush.msra.mxu0 0.0
    %1551 = vmatpush.msra.mxu0 0.0
    %1552 = vmatpush.msra.mxu0 0.0
    %1553 = vmatpush.msra.mxu0 0.0
    %1554 = vmatpush.msra.mxu0 0.0
    %1555 = vmatpush.msra.mxu0 0.0
    %1556 = vmatpush.msra.mxu0 %v1498
    %1557 = vmatpush.msra.mxu0 %v1494
    %1558 = vmatpush.msra.mxu0 %v1490
    %1559 = vmatpush.msra.mxu0 %v1486
    %1560 = vmatpush.msra.mxu0 %v1482
    %1561 = vmatpush.msra.mxu0 %v1478
    %1562 = vmatmul.f32.gmra.mxu0 %v422
    %v1563 = vpop.f32.mrf.mxu0
    %v1564 = vadd.f32 %v413, %v1563
    %1565 = vmatmul.f32.gmra.mxu0 %v425
    %v1566 = vpop.f32.mrf.mxu0
    %v1567 = vadd.f32 %v418, %v1566
    %1568 = vdwg.mxu0
    %1569 = vmatpush.msra.mxu0 0.0
    %1570 = vmatpush.msra.mxu0 0.0
    %1571 = vmatpush.msra.mxu0 0.0
    %1572 = vmatpush.msra.mxu0 0.0
    %1573 = vmatpush.msra.mxu0 0.0
    %1574 = vmatpush.msra.mxu0 0.0
    %1575 = vmatpush.msra.mxu0 0.0
    %1576 = vmatpush.msra.mxu0 0.0
    %1577 = vmatpush.msra.mxu0 0.0
    %1578 = vmatpush.msra.mxu0 0.0
    %1579 = vmatpush.msra.mxu0 %v1499
    %1580 = vmatpush.msra.mxu0 %v1495
    %1581 = vmatpush.msra.mxu0 %v1491
    %1582 = vmatpush.msra.mxu0 %v1487
    %1583 = vmatpush.msra.mxu0 %v1483
    %1584 = vmatpush.msra.mxu0 %v1479
    %1585 = vmatmul.f32.gmra.mxu0 %v422
    %v1586 = vpop.f32.mrf.mxu0
    %v1587 = vadd.f32 %v413, %v1586
    %1588 = vmatmul.f32.gmra.mxu0 %v425
    %v1589 = vpop.f32.mrf.mxu0
    %v1590 = vadd.f32 %v418, %v1589
    %1591 = vdwg.mxu0
    %v1592 = vmax.f32 %v1518, 0.0
    %v1593 = vmax.f32 %v1541, 0.0
    %v1594 = vmax.f32 %v1564, 0.0
    %v1595 = vmax.f32 %v1587, 0.0
    %v1596 = vmax.f32 %v1521, 0.0
    %v1597 = vmax.f32 %v1544, 0.0
    %v1598 = vmax.f32 %v1567, 0.0
    %v1599 = vmax.f32 %v1590, 0.0
    %v1600 = vadd.f32 %v1592, %v1593
    %1601 = vadd.xlane.f32.xlu0 %v1600
    %v1602 = vpop.xlane.xlu0 %1601
    %v1603 = vadd.f32 %v1596, %v1597
    %1604 = vadd.xlane.f32.xlu0 %v1603
    %v1605 = vpop.xlane.xlu0 %1604
    %v1606 = vmul.f32 %v1602, %v539
    %v1607 = vmul.f32 %v1605, %v539
    %v1608 = vsub.f32 %v1592, %v1606
    %v1609 = vsub.f32 %v1593, %v1606
    %v1610 = vsub.f32 %v1596, %v1607
    %v1611 = vsub.f32 %v1597, %v1607
    %v1612 = vmul.f32 %v1608, %v1608
    %v1613 = vmul.f32 %v1609, %v1609
    %v1614 = vmul.f32 %v1610, %v1610
    %v1615 = vmul.f32 %v1611, %v1611
    %v1616 = vadd.f32 %v1612, %v1613
    %1617 = vadd.xlane.f32.xlu0 %v1616
    %v1618 = vpop.xlane.xlu0 %1617
    %v1619 = vadd.f32 %v1614, %v1615
    %1620 = vadd.xlane.f32.xlu0 %v1619
    %v1621 = vpop.xlane.xlu0 %1620
    %v1622 = vmul.f32 %v1618, 0.003921569
    %v1623 = vmul.f32 %v1621, 0.003921569
    %v1624 = vrsqrt.pop %v1622
    %v1625 = vmul.f32 %v1624, %v1622
    %v1626 = vmul.f32 %v1625, %v1624
    %v1627 = vmul.f32 0.5, %v1626
    %v1628 = vsub.f32 1.5, %v1627
    %v1629 = vmul.f32 %v1624, %v1628
    %v1630 = vmul.f32 %v1622, %v1629
    %vm1631 = vcmp.eq.f32.partialorder %v1622, inf
    %v1632 = vsel %vm1631, %v1622, %v1630
    %vm1633 = vcmp.eq.f32.partialorder %v1622, 0.0
    %v1634 = vand.u32 %v1622, 2147483648
    %v1635 = vsel %vm1633, %v1634, %v1632
    %v1636 = vrsqrt.pop %v1623
    %v1637 = vmul.f32 %v1636, %v1623
    %v1638 = vmul.f32 %v1637, %v1636
    %v1639 = vmul.f32 0.5, %v1638
    %v1640 = vsub.f32 1.5, %v1639
    %v1641 = vmul.f32 %v1636, %v1640
    %v1642 = vmul.f32 %v1623, %v1641
    %vm1643 = vcmp.eq.f32.partialorder %v1623, inf
    %v1644 = vsel %vm1643, %v1623, %v1642
    %vm1645 = vcmp.eq.f32.partialorder %v1623, 0.0
    %v1646 = vand.u32 %v1623, 2147483648
    %v1647 = vsel %vm1645, %v1646, %v1644
    %v1648 = vadd.f32 %v1635, 1e-06
    %v1649 = vadd.f32 %v1647, 1e-06
    %v1650 = vrcp.pop %v1648
    %v1651 = vmul.f32 %v1648, %v1650
    %v1652 = vsub.f32 1.0, %v1651
    %v1653 = vmul.f32 %v1650, %v1652
    %v1654 = vadd.f32 %v1650, %v1653
    %vm1655 = vweird.f32 %v1648
    %vm1656 = vweird.f32 %v1650
    %vm1657 = vmor %vm1655, %vm1656
    %v1658 = vsel %vm1657, %v1650, %v1654
    %v1659 = vand.u32 2147483647, %v1648
    %vm1660 = vcmp.eq.f32.partialorder %v1659, 8.507059e+37
    %v1661 = vand.u32 %v1648, 2147483648
    %v1662 = vor.u32 1.1754944e-38, %v1661
    %v1663 = vsel %vm1660, %v1662, %v1658
    %v1664 = vmul.f32 1.0, %v1663
    %v1665 = vrcp.pop %v1649
    %v1666 = vmul.f32 %v1649, %v1665
    %v1667 = vsub.f32 1.0, %v1666
    %v1668 = vmul.f32 %v1665, %v1667
    %v1669 = vadd.f32 %v1665, %v1668
    %vm1670 = vweird.f32 %v1649
    %vm1671 = vweird.f32 %v1665
    %vm1672 = vmor %vm1670, %vm1671
    %v1673 = vsel %vm1672, %v1665, %v1669
    %v1674 = vand.u32 2147483647, %v1649
    %vm1675 = vcmp.eq.f32.partialorder %v1674, 8.507059e+37
    %v1676 = vand.u32 %v1649, 2147483648
    %v1677 = vor.u32 1.1754944e-38, %v1676
    %v1678 = vsel %vm1675, %v1677, %v1673
    %v1679 = vmul.f32 1.0, %v1678
    %v1680 = vmul.f32 %v1608, %v1664
    %v1681 = vmul.f32 %v1609, %v1664
    %v1682 = vmul.f32 %v1610, %v1679
    %v1683 = vmul.f32 %v1611, %v1679
    %v1684 = vadd.f32 %v1594, %v1595
    %1685 = vadd.xlane.f32.xlu0 %v1684
    %v1686 = vpop.xlane.xlu0 %1685
    %v1687 = vadd.f32 %v1598, %v1599
    %1688 = vadd.xlane.f32.xlu0 %v1687
    %v1689 = vpop.xlane.xlu0 %1688
    %v1690 = vmul.f32 %v1686, %v539
    %v1691 = vmul.f32 %v1689, %v539
    %v1692 = vsub.f32 %v1594, %v1690
    %v1693 = vsub.f32 %v1595, %v1690
    %v1694 = vsub.f32 %v1598, %v1691
    %v1695 = vsub.f32 %v1599, %v1691
    %v1696 = vmul.f32 %v1692, %v1692
    %v1697 = vmul.f32 %v1693, %v1693
    %v1698 = vmul.f32 %v1694, %v1694
    %v1699 = vmul.f32 %v1695, %v1695
    %v1700 = vadd.f32 %v1696, %v1697
    %1701 = vadd.xlane.f32.xlu0 %v1700
    %v1702 = vpop.xlane.xlu0 %1701
    %v1703 = vadd.f32 %v1698, %v1699
    %1704 = vadd.xlane.f32.xlu0 %v1703
    %v1705 = vpop.xlane.xlu0 %1704
    %v1706 = vmul.f32 %v1702, 0.003921569
    %v1707 = vmul.f32 %v1705, 0.003921569
    %v1708 = vrsqrt.pop %v1706
    %v1709 = vmul.f32 %v1708, %v1706
    %v1710 = vmul.f32 %v1709, %v1708
    %v1711 = vmul.f32 0.5, %v1710
    %v1712 = vsub.f32 1.5, %v1711
    %v1713 = vmul.f32 %v1708, %v1712
    %v1714 = vmul.f32 %v1706, %v1713
    %vm1715 = vcmp.eq.f32.partialorder %v1706, inf
    %v1716 = vsel %vm1715, %v1706, %v1714
    %vm1717 = vcmp.eq.f32.partialorder %v1706, 0.0
    %v1718 = vand.u32 %v1706, 2147483648
    %v1719 = vsel %vm1717, %v1718, %v1716
    %v1720 = vrsqrt.pop %v1707
    %v1721 = vmul.f32 %v1720, %v1707
    %v1722 = vmul.f32 %v1721, %v1720
    %v1723 = vmul.f32 0.5, %v1722
    %v1724 = vsub.f32 1.5, %v1723
    %v1725 = vmul.f32 %v1720, %v1724
    %v1726 = vmul.f32 %v1707, %v1725
    %vm1727 = vcmp.eq.f32.partialorder %v1707, inf
    %v1728 = vsel %vm1727, %v1707, %v1726
    %vm1729 = vcmp.eq.f32.partialorder %v1707, 0.0
    %v1730 = vand.u32 %v1707, 2147483648
    %v1731 = vsel %vm1729, %v1730, %v1728
    %v1732 = vadd.f32 %v1719, 1e-06
    %v1733 = vadd.f32 %v1731, 1e-06
    %v1734 = vrcp.pop %v1732
    %v1735 = vmul.f32 %v1732, %v1734
    %v1736 = vsub.f32 1.0, %v1735
    %v1737 = vmul.f32 %v1734, %v1736
    %v1738 = vadd.f32 %v1734, %v1737
    %vm1739 = vweird.f32 %v1732
    %vm1740 = vweird.f32 %v1734
    %vm1741 = vmor %vm1739, %vm1740
    %v1742 = vsel %vm1741, %v1734, %v1738
    %v1743 = vand.u32 2147483647, %v1732
    %vm1744 = vcmp.eq.f32.partialorder %v1743, 8.507059e+37
    %v1745 = vand.u32 %v1732, 2147483648
    %v1746 = vor.u32 1.1754944e-38, %v1745
    %v1747 = vsel %vm1744, %v1746, %v1742
    %v1748 = vmul.f32 1.0, %v1747
    %v1749 = vrcp.pop %v1733
    %v1750 = vmul.f32 %v1733, %v1749
    %v1751 = vsub.f32 1.0, %v1750
    %v1752 = vmul.f32 %v1749, %v1751
    %v1753 = vadd.f32 %v1749, %v1752
    %vm1754 = vweird.f32 %v1733
    %vm1755 = vweird.f32 %v1749
    %vm1756 = vmor %vm1754, %vm1755
    %v1757 = vsel %vm1756, %v1749, %v1753
    %v1758 = vand.u32 2147483647, %v1733
    %vm1759 = vcmp.eq.f32.partialorder %v1758, 8.507059e+37
    %v1760 = vand.u32 %v1733, 2147483648
    %v1761 = vor.u32 1.1754944e-38, %v1760
    %v1762 = vsel %vm1759, %v1761, %v1757
    %v1763 = vmul.f32 1.0, %v1762
    %v1764 = vmul.f32 %v1692, %v1748
    %v1765 = vmul.f32 %v1693, %v1748
    %v1766 = vmul.f32 %v1694, %v1763
    %v1767 = vmul.f32 %v1695, %v1763
    %v1768 = vmul.f32 %v703, %v1680
    %v1769 = vmul.f32 %v704, %v1681
    %v1770 = vmul.f32 %v705, %v1764
    %v1771 = vmul.f32 %v706, %v1765
    %v1772 = vmul.f32 %v703, %v1682
    %v1773 = vmul.f32 %v704, %v1683
    %v1774 = vmul.f32 %v705, %v1766
    %v1775 = vmul.f32 %v706, %v1767
    %v1776 = vadd.f32 %v1768, %v720
    %v1777 = vadd.f32 %v1769, %v721
    %v1778 = vadd.f32 %v1770, %v722
    %v1779 = vadd.f32 %v1771, %v723
    %v1780 = vadd.f32 %v1772, %v720
    %v1781 = vadd.f32 %v1773, %v721
    %v1782 = vadd.f32 %v1774, %v722
    %v1783 = vadd.f32 %v1775, %v723
    %1784 = vrot.lane.b32.xlu0 %v1776, 1
    %v1785 = vpop.permute.xlu0 %1784
    %1786 = vrot.lane.b32.xlu0 %v1780, 1
    %v1787 = vpop.permute.xlu0 %1786
    %1788 = vrot.lane.b32.xlu0 %v1777, 1
    %v1789 = vpop.permute.xlu0 %1788
    %1790 = vrot.lane.b32.xlu0 %v1781, 1
    %v1791 = vpop.permute.xlu0 %1790
    %1792 = vrot.lane.b32.xlu0 %v1778, 1
    %v1793 = vpop.permute.xlu0 %1792
    %1794 = vrot.lane.b32.xlu0 %v1782, 1
    %v1795 = vpop.permute.xlu0 %1794
    %1796 = vrot.lane.b32.xlu0 %v1779, 1
    %v1797 = vpop.permute.xlu0 %1796
    %1798 = vrot.lane.b32.xlu0 %v1783, 1
    %v1799 = vpop.permute.xlu0 %1798
    %v1800 = vsel %vm312, %v1793, %v1797
    %v1801 = vsel %vm312, %v1795, %v1799
    %v1802 = vsel %vm312, %v1789, %v1793
    %v1803 = vsel %vm312, %v1791, %v1795
    %v1804 = vsel %vm312, %v1785, %v1789
    %v1805 = vsel %vm312, %v1787, %v1791
    %v1806 = vsel %vm312, %v1797, %v1785
    %v1807 = vsel %vm312, %v1799, %v1787
    %v1808 = vmul.f32 %v1806, %v147
    %v1809 = vmul.f32 %v1804, %v148
    %v1810 = vmul.f32 %v1802, %v149
    %v1811 = vmul.f32 %v1800, %v150
    %v1812 = vmul.f32 %v1807, %v147
    %v1813 = vmul.f32 %v1805, %v148
    %v1814 = vmul.f32 %v1803, %v149
    %v1815 = vmul.f32 %v1801, %v150
    %1816 = vst [vmem:[#allocation2] sm:$0xff] %v1808
    %1817 = vst [vmem:[#allocation2 + $0x8] sm:$0xff] %v1809
    %1818 = vst [vmem:[#allocation2 + $0x10] sm:$0xff] %v1810
    %1819 = vst [vmem:[#allocation2 + $0x18] sm:$0xff] %v1811
    %1820 = vst [vmem:[#allocation2 + $0x20] sm:$0xff] %v1812
    %1821 = vst [vmem:[#allocation2 + $0x28] sm:$0xff] %v1813
    %1822 = vst [vmem:[#allocation2 + $0x30] sm:$0xff] %v1814
    %1823 = vst [vmem:[#allocation2 + $0x38] sm:$0xff] %v1815
    %1824 = vst [vmem:[#allocation2 + $0x40] sm:$0xff] %v1776
    %1825 = vst [vmem:[#allocation2 + $0x48] sm:$0xff] %v1777
    %1826 = vst [vmem:[#allocation2 + $0x50] sm:$0xff] %v1778
    %1827 = vst [vmem:[#allocation2 + $0x58] sm:$0xff] %v1779
    %1828 = vst [vmem:[#allocation2 + $0x60] sm:$0xff] %v1780
    %1829 = vst [vmem:[#allocation2 + $0x68] sm:$0xff] %v1781
    %1830 = vst [vmem:[#allocation2 + $0x70] sm:$0xff] %v1782
    %1831 = vst [vmem:[#allocation2 + $0x78] sm:$0xff] %v1783
    %1832 = vrot.lane.b32.xlu0 %v1776, 127
    %v1833 = vpop.permute.xlu0 %1832
    %1834 = vrot.lane.b32.xlu0 %v1780, 127
    %v1835 = vpop.permute.xlu0 %1834
    %1836 = vrot.lane.b32.xlu0 %v1777, 127
    %v1837 = vpop.permute.xlu0 %1836
    %1838 = vrot.lane.b32.xlu0 %v1781, 127
    %v1839 = vpop.permute.xlu0 %1838
    %1840 = vrot.lane.b32.xlu0 %v1778, 127
    %v1841 = vpop.permute.xlu0 %1840
    %1842 = vrot.lane.b32.xlu0 %v1782, 127
    %v1843 = vpop.permute.xlu0 %1842
    %1844 = vrot.lane.b32.xlu0 %v1779, 127
    %v1845 = vpop.permute.xlu0 %1844
    %1846 = vrot.lane.b32.xlu0 %v1783, 127
    %v1847 = vpop.permute.xlu0 %1846
    %v1848 = vsel %vm361, %v1841, %v1845
    %v1849 = vsel %vm361, %v1843, %v1847
    %v1850 = vsel %vm361, %v1837, %v1841
    %v1851 = vsel %vm361, %v1839, %v1843
    %v1852 = vsel %vm361, %v1833, %v1837
    %v1853 = vsel %vm361, %v1835, %v1839
    %v1854 = vsel %vm361, %v1845, %v1833
    %v1855 = vsel %vm361, %v1847, %v1835
    %v1856 = vmul.f32 %v1852, %v171
    %v1857 = vmul.f32 %v1850, %v172
    %v1858 = vmul.f32 %v1848, %v173
    %v1859 = vmul.f32 %v1854, %v174
    %v1860 = vmul.f32 %v1853, %v171
    %v1861 = vmul.f32 %v1851, %v172
    %v1862 = vmul.f32 %v1849, %v173
    %v1863 = vmul.f32 %v1855, %v174
    %1864 = vst [vmem:[#allocation2 + $0x80] sm:$0xff] %v1856
    %1865 = vst [vmem:[#allocation2 + $0x88] sm:$0xff] %v1857
    %1866 = vst [vmem:[#allocation2 + $0x90] sm:$0xff] %v1858
    %1867 = vst [vmem:[#allocation2 + $0x98] sm:$0xff] %v1859
    %1868 = vst [vmem:[#allocation2 + $0xa0] sm:$0xff] %v1860
    %1869 = vst [vmem:[#allocation2 + $0xa8] sm:$0xff] %v1861
    %1870 = vst [vmem:[#allocation2 + $0xb0] sm:$0xff] %v1862
    %1871 = vst [vmem:[#allocation2 + $0xb8] sm:$0xff] %v1863
    %v1872 = vld [vmem:[#allocation2] sm:$0xff]
    %v1873 = vld [vmem:[#allocation2 + $0x8] sm:$0xff]
    %v1874 = vld [vmem:[#allocation2 + $0x10] sm:$0xff]
    %v1875 = vld [vmem:[#allocation2 + $0x18] sm:$0xff]
    %v1876 = vld [vmem:[#allocation2 + $0x20] sm:$0xff]
    %v1877 = vld [vmem:[#allocation2 + $0x28] sm:$0xff]
    %v1878 = vld [vmem:[#allocation2 + $0x30] sm:$0xff]
    %v1879 = vld [vmem:[#allocation2 + $0x38] sm:$0xff]
    %v1880 = vld [vmem:[#allocation2 + $0x40] sm:$0xff]
    %v1881 = vld [vmem:[#allocation2 + $0x48] sm:$0xff]
    %v1882 = vld [vmem:[#allocation2 + $0x50] sm:$0xff]
    %v1883 = vld [vmem:[#allocation2 + $0x58] sm:$0xff]
    %v1884 = vld [vmem:[#allocation2 + $0x60] sm:$0xff]
    %v1885 = vld [vmem:[#allocation2 + $0x68] sm:$0xff]
    %v1886 = vld [vmem:[#allocation2 + $0x70] sm:$0xff]
    %v1887 = vld [vmem:[#allocation2 + $0x78] sm:$0xff]
    %v1888 = vld [vmem:[#allocation2 + $0x80] sm:$0xff]
    %v1889 = vld [vmem:[#allocation2 + $0x88] sm:$0xff]
    %v1890 = vld [vmem:[#allocation2 + $0x90] sm:$0xff]
    %v1891 = vld [vmem:[#allocation2 + $0x98] sm:$0xff]
    %v1892 = vld [vmem:[#allocation2 + $0xa0] sm:$0xff]
    %v1893 = vld [vmem:[#allocation2 + $0xa8] sm:$0xff]
    %v1894 = vld [vmem:[#allocation2 + $0xb0] sm:$0xff]
    %v1895 = vld [vmem:[#allocation2 + $0xb8] sm:$0xff]
    %1896 = vmatpush.msra.mxu0 0.0
    %1897 = vmatpush.msra.mxu0 0.0
    %1898 = vmatpush.msra.mxu0 0.0
    %1899 = vmatpush.msra.mxu0 0.0
    %1900 = vmatpush.msra.mxu0 0.0
    %1901 = vmatpush.msra.mxu0 0.0
    %1902 = vmatpush.msra.mxu0 0.0
    %1903 = vmatpush.msra.mxu0 0.0
    %1904 = vmatpush.msra.mxu0 0.0
    %1905 = vmatpush.msra.mxu0 0.0
    %1906 = vmatpush.msra.mxu0 %v1892
    %1907 = vmatpush.msra.mxu0 %v1888
    %1908 = vmatpush.msra.mxu0 %v1884
    %1909 = vmatpush.msra.mxu0 %v1880
    %1910 = vmatpush.msra.mxu0 %v1876
    %1911 = vmatpush.msra.mxu0 %v1872
    %1912 = vmatmul.f32.gmra.mxu0 %v859
    %v1913 = vpop.f32.mrf.mxu0
    %v1914 = vadd.f32 %v851, %v1913
    %1915 = vmatmul.f32.gmra.mxu0 %v862
    %v1916 = vpop.f32.mrf.mxu0
    %v1917 = vadd.f32 %v856, %v1916
    %1918 = vdwg.mxu0
    %1919 = vmatpush.msra.mxu0 0.0
    %1920 = vmatpush.msra.mxu0 0.0
    %1921 = vmatpush.msra.mxu0 0.0
    %1922 = vmatpush.msra.mxu0 0.0
    %1923 = vmatpush.msra.mxu0 0.0
    %1924 = vmatpush.msra.mxu0 0.0
    %1925 = vmatpush.msra.mxu0 0.0
    %1926 = vmatpush.msra.mxu0 0.0
    %1927 = vmatpush.msra.mxu0 0.0
    %1928 = vmatpush.msra.mxu0 0.0
    %1929 = vmatpush.msra.mxu0 %v1893
    %1930 = vmatpush.msra.mxu0 %v1889
    %1931 = vmatpush.msra.mxu0 %v1885
    %1932 = vmatpush.msra.mxu0 %v1881
    %1933 = vmatpush.msra.mxu0 %v1877
    %1934 = vmatpush.msra.mxu0 %v1873
    %1935 = vmatmul.f32.gmra.mxu0 %v859
    %v1936 = vpop.f32.mrf.mxu0
    %v1937 = vadd.f32 %v851, %v1936
    %1938 = vmatmul.f32.gmra.mxu0 %v862
    %v1939 = vpop.f32.mrf.mxu0
    %v1940 = vadd.f32 %v856, %v1939
    %1941 = vdwg.mxu0
    %1942 = vmatpush.msra.mxu0 0.0
    %1943 = vmatpush.msra.mxu0 0.0
    %1944 = vmatpush.msra.mxu0 0.0
    %1945 = vmatpush.msra.mxu0 0.0
    %1946 = vmatpush.msra.mxu0 0.0
    %1947 = vmatpush.msra.mxu0 0.0
    %1948 = vmatpush.msra.mxu0 0.0
    %1949 = vmatpush.msra.mxu0 0.0
    %1950 = vmatpush.msra.mxu0 0.0
    %1951 = vmatpush.msra.mxu0 0.0
    %1952 = vmatpush.msra.mxu0 %v1894
    %1953 = vmatpush.msra.mxu0 %v1890
    %1954 = vmatpush.msra.mxu0 %v1886
    %1955 = vmatpush.msra.mxu0 %v1882
    %1956 = vmatpush.msra.mxu0 %v1878
    %1957 = vmatpush.msra.mxu0 %v1874
    %1958 = vmatmul.f32.gmra.mxu0 %v859
    %v1959 = vpop.f32.mrf.mxu0
    %v1960 = vadd.f32 %v851, %v1959
    %1961 = vmatmul.f32.gmra.mxu0 %v862
    %v1962 = vpop.f32.mrf.mxu0
    %v1963 = vadd.f32 %v856, %v1962
    %1964 = vdwg.mxu0
    %1965 = vmatpush.msra.mxu0 0.0
    %1966 = vmatpush.msra.mxu0 0.0
    %1967 = vmatpush.msra.mxu0 0.0
    %1968 = vmatpush.msra.mxu0 0.0
    %1969 = vmatpush.msra.mxu0 0.0
    %1970 = vmatpush.msra.mxu0 0.0
    %1971 = vmatpush.msra.mxu0 0.0
    %1972 = vmatpush.msra.mxu0 0.0
    %1973 = vmatpush.msra.mxu0 0.0
    %1974 = vmatpush.msra.mxu0 0.0
    %1975 = vmatpush.msra.mxu0 %v1895
    %1976 = vmatpush.msra.mxu0 %v1891
    %1977 = vmatpush.msra.mxu0 %v1887
    %1978 = vmatpush.msra.mxu0 %v1883
    %1979 = vmatpush.msra.mxu0 %v1879
    %1980 = vmatpush.msra.mxu0 %v1875
    %1981 = vmatmul.f32.gmra.mxu0 %v859
    %v1982 = vpop.f32.mrf.mxu0
    %v1983 = vadd.f32 %v851, %v1982
    %1984 = vmatmul.f32.gmra.mxu0 %v862
    %v1985 = vpop.f32.mrf.mxu0
    %v1986 = vadd.f32 %v856, %v1985
    %1987 = vdwg.mxu0
    %1988 = vrot.lane.b32.xlu0 %v1914, 2
    %v1989 = vpop.permute.xlu0 %1988
    %1990 = vrot.lane.b32.xlu0 %v1917, 2
    %v1991 = vpop.permute.xlu0 %1990
    %1992 = vrot.lane.b32.xlu0 %v1937, 2
    %v1993 = vpop.permute.xlu0 %1992
    %1994 = vrot.lane.b32.xlu0 %v1940, 2
    %v1995 = vpop.permute.xlu0 %1994
    %1996 = vrot.lane.b32.xlu0 %v1960, 2
    %v1997 = vpop.permute.xlu0 %1996
    %1998 = vrot.lane.b32.xlu0 %v1963, 2
    %v1999 = vpop.permute.xlu0 %1998
    %2000 = vrot.lane.b32.xlu0 %v1983, 2
    %v2001 = vpop.permute.xlu0 %2000
    %2002 = vrot.lane.b32.xlu0 %v1986, 2
    %v2003 = vpop.permute.xlu0 %2002
    %v2004 = vsel %vm972, %v1997, %v2001
    %v2005 = vsel %vm972, %v1999, %v2003
    %v2006 = vsel %vm972, %v1993, %v1997
    %v2007 = vsel %vm972, %v1995, %v1999
    %v2008 = vsel %vm972, %v1989, %v1993
    %v2009 = vsel %vm972, %v1991, %v1995
    %v2010 = vsel %vm972, %v2001, %v1989
    %v2011 = vsel %vm972, %v2003, %v1991
    %v2012 = vmul.f32 %v2010, %v159
    %v2013 = vmul.f32 %v2008, %v160
    %v2014 = vmul.f32 %v2006, %v161
    %v2015 = vmul.f32 %v2004, %v162
    %v2016 = vmul.f32 %v2011, %v159
    %v2017 = vmul.f32 %v2009, %v160
    %v2018 = vmul.f32 %v2007, %v161
    %v2019 = vmul.f32 %v2005, %v162
    %2020 = vst [vmem:[#allocation2] sm:$0xff] %v2012
    %2021 = vst [vmem:[#allocation2 + $0x8] sm:$0xff] %v2013
    %2022 = vst [vmem:[#allocation2 + $0x10] sm:$0xff] %v2014
    %2023 = vst [vmem:[#allocation2 + $0x18] sm:$0xff] %v2015
    %2024 = vst [vmem:[#allocation2 + $0x20] sm:$0xff] %v2016
    %2025 = vst [vmem:[#allocation2 + $0x28] sm:$0xff] %v2017
    %2026 = vst [vmem:[#allocation2 + $0x30] sm:$0xff] %v2018
    %2027 = vst [vmem:[#allocation2 + $0x38] sm:$0xff] %v2019
    %2028 = vst [vmem:[#allocation2 + $0x40] sm:$0xff] %v1914
    %2029 = vst [vmem:[#allocation2 + $0x48] sm:$0xff] %v1937
    %2030 = vst [vmem:[#allocation2 + $0x50] sm:$0xff] %v1960
    %2031 = vst [vmem:[#allocation2 + $0x58] sm:$0xff] %v1983
    %2032 = vst [vmem:[#allocation2 + $0x60] sm:$0xff] %v1917
    %2033 = vst [vmem:[#allocation2 + $0x68] sm:$0xff] %v1940
    %2034 = vst [vmem:[#allocation2 + $0x70] sm:$0xff] %v1963
    %2035 = vst [vmem:[#allocation2 + $0x78] sm:$0xff] %v1986
    %2036 = vrot.lane.b32.xlu0 %v1914, 126
    %v2037 = vpop.permute.xlu0 %2036
    %2038 = vrot.lane.b32.xlu0 %v1917, 126
    %v2039 = vpop.permute.xlu0 %2038
    %2040 = vrot.lane.b32.xlu0 %v1937, 126
    %v2041 = vpop.permute.xlu0 %2040
    %2042 = vrot.lane.b32.xlu0 %v1940, 126
    %v2043 = vpop.permute.xlu0 %2042
    %2044 = vrot.lane.b32.xlu0 %v1960, 126
    %v2045 = vpop.permute.xlu0 %2044
    %2046 = vrot.lane.b32.xlu0 %v1963, 126
    %v2047 = vpop.permute.xlu0 %2046
    %2048 = vrot.lane.b32.xlu0 %v1983, 126
    %v2049 = vpop.permute.xlu0 %2048
    %2050 = vrot.lane.b32.xlu0 %v1986, 126
    %v2051 = vpop.permute.xlu0 %2050
    %v2052 = vsel %vm1021, %v2045, %v2049
    %v2053 = vsel %vm1021, %v2047, %v2051
    %v2054 = vsel %vm1021, %v2041, %v2045
    %v2055 = vsel %vm1021, %v2043, %v2047
    %v2056 = vsel %vm1021, %v2037, %v2041
    %v2057 = vsel %vm1021, %v2039, %v2043
    %v2058 = vsel %vm1021, %v2049, %v2037
    %v2059 = vsel %vm1021, %v2051, %v2039
    %v2060 = vmul.f32 %v2056, %v183
    %v2061 = vmul.f32 %v2054, %v184
    %v2062 = vmul.f32 %v2052, %v185
    %v2063 = vmul.f32 %v2058, %v186
    %v2064 = vmul.f32 %v2057, %v183
    %v2065 = vmul.f32 %v2055, %v184
    %v2066 = vmul.f32 %v2053, %v185
    %v2067 = vmul.f32 %v2059, %v186
    %2068 = vst [vmem:[#allocation2 + $0x80] sm:$0xff] %v2060
    %2069 = vst [vmem:[#allocation2 + $0x88] sm:$0xff] %v2061
    %2070 = vst [vmem:[#allocation2 + $0x90] sm:$0xff] %v2062
    %2071 = vst [vmem:[#allocation2 + $0x98] sm:$0xff] %v2063
    %2072 = vst [vmem:[#allocation2 + $0xa0] sm:$0xff] %v2064
    %2073 = vst [vmem:[#allocation2 + $0xa8] sm:$0xff] %v2065
    %2074 = vst [vmem:[#allocation2 + $0xb0] sm:$0xff] %v2066
    %2075 = vst [vmem:[#allocation2 + $0xb8] sm:$0xff] %v2067
    %v2076 = vld [vmem:[#allocation2] sm:$0xff]
    %v2077 = vld [vmem:[#allocation2 + $0x8] sm:$0xff]
    %v2078 = vld [vmem:[#allocation2 + $0x10] sm:$0xff]
    %v2079 = vld [vmem:[#allocation2 + $0x18] sm:$0xff]
    %v2080 = vld [vmem:[#allocation2 + $0x20] sm:$0xff]
    %v2081 = vld [vmem:[#allocation2 + $0x28] sm:$0xff]
    %v2082 = vld [vmem:[#allocation2 + $0x30] sm:$0xff]
    %v2083 = vld [vmem:[#allocation2 + $0x38] sm:$0xff]
    %v2084 = vld [vmem:[#allocation2 + $0x40] sm:$0xff]
    %v2085 = vld [vmem:[#allocation2 + $0x48] sm:$0xff]
    %v2086 = vld [vmem:[#allocation2 + $0x50] sm:$0xff]
    %v2087 = vld [vmem:[#allocation2 + $0x58] sm:$0xff]
    %v2088 = vld [vmem:[#allocation2 + $0x60] sm:$0xff]
    %v2089 = vld [vmem:[#allocation2 + $0x68] sm:$0xff]
    %v2090 = vld [vmem:[#allocation2 + $0x70] sm:$0xff]
    %v2091 = vld [vmem:[#allocation2 + $0x78] sm:$0xff]
    %v2092 = vld [vmem:[#allocation2 + $0x80] sm:$0xff]
    %v2093 = vld [vmem:[#allocation2 + $0x88] sm:$0xff]
    %v2094 = vld [vmem:[#allocation2 + $0x90] sm:$0xff]
    %v2095 = vld [vmem:[#allocation2 + $0x98] sm:$0xff]
    %v2096 = vld [vmem:[#allocation2 + $0xa0] sm:$0xff]
    %v2097 = vld [vmem:[#allocation2 + $0xa8] sm:$0xff]
    %v2098 = vld [vmem:[#allocation2 + $0xb0] sm:$0xff]
    %v2099 = vld [vmem:[#allocation2 + $0xb8] sm:$0xff]
    %2100 = vmatpush.msra.mxu0 0.0
    %2101 = vmatpush.msra.mxu0 0.0
    %2102 = vmatpush.msra.mxu0 0.0
    %2103 = vmatpush.msra.mxu0 0.0
    %2104 = vmatpush.msra.mxu0 0.0
    %2105 = vmatpush.msra.mxu0 0.0
    %2106 = vmatpush.msra.mxu0 0.0
    %2107 = vmatpush.msra.mxu0 0.0
    %2108 = vmatpush.msra.mxu0 0.0
    %2109 = vmatpush.msra.mxu0 0.0
    %2110 = vmatpush.msra.mxu0 %v2096
    %2111 = vmatpush.msra.mxu0 %v2092
    %2112 = vmatpush.msra.mxu0 %v2088
    %2113 = vmatpush.msra.mxu0 %v2084
    %2114 = vmatpush.msra.mxu0 %v2080
    %2115 = vmatpush.msra.mxu0 %v2076
    %2116 = vmatmul.f32.gmra.mxu0 %v1081
    %v2117 = vpop.f32.mrf.mxu0
    %v2118 = vadd.f32 %v1073, %v2117
    %2119 = vmatmul.f32.gmra.mxu0 %v1084
    %v2120 = vpop.f32.mrf.mxu0
    %v2121 = vadd.f32 %v1078, %v2120
    %2122 = vdwg.mxu0
    %2123 = vmatpush.msra.mxu0 0.0
    %2124 = vmatpush.msra.mxu0 0.0
    %2125 = vmatpush.msra.mxu0 0.0
    %2126 = vmatpush.msra.mxu0 0.0
    %2127 = vmatpush.msra.mxu0 0.0
    %2128 = vmatpush.msra.mxu0 0.0
    %2129 = vmatpush.msra.mxu0 0.0
    %2130 = vmatpush.msra.mxu0 0.0
    %2131 = vmatpush.msra.mxu0 0.0
    %2132 = vmatpush.msra.mxu0 0.0
    %2133 = vmatpush.msra.mxu0 %v2097
    %2134 = vmatpush.msra.mxu0 %v2093
    %2135 = vmatpush.msra.mxu0 %v2089
    %2136 = vmatpush.msra.mxu0 %v2085
    %2137 = vmatpush.msra.mxu0 %v2081
    %2138 = vmatpush.msra.mxu0 %v2077
    %2139 = vmatmul.f32.gmra.mxu0 %v1081
    %v2140 = vpop.f32.mrf.mxu0
    %v2141 = vadd.f32 %v1073, %v2140
    %2142 = vmatmul.f32.gmra.mxu0 %v1084
    %v2143 = vpop.f32.mrf.mxu0
    %v2144 = vadd.f32 %v1078, %v2143
    %2145 = vdwg.mxu0
    %2146 = vmatpush.msra.mxu0 0.0
    %2147 = vmatpush.msra.mxu0 0.0
    %2148 = vmatpush.msra.mxu0 0.0
    %2149 = vmatpush.msra.mxu0 0.0
    %2150 = vmatpush.msra.mxu0 0.0
    %2151 = vmatpush.msra.mxu0 0.0
    %2152 = vmatpush.msra.mxu0 0.0
    %2153 = vmatpush.msra.mxu0 0.0
    %2154 = vmatpush.msra.mxu0 0.0
    %2155 = vmatpush.msra.mxu0 0.0
    %2156 = vmatpush.msra.mxu0 %v2098
    %2157 = vmatpush.msra.mxu0 %v2094
    %2158 = vmatpush.msra.mxu0 %v2090
    %2159 = vmatpush.msra.mxu0 %v2086
    %2160 = vmatpush.msra.mxu0 %v2082
    %2161 = vmatpush.msra.mxu0 %v2078
    %2162 = vmatmul.f32.gmra.mxu0 %v1081
    %v2163 = vpop.f32.mrf.mxu0
    %v2164 = vadd.f32 %v1073, %v2163
    %2165 = vmatmul.f32.gmra.mxu0 %v1084
    %v2166 = vpop.f32.mrf.mxu0
    %v2167 = vadd.f32 %v1078, %v2166
    %2168 = vdwg.mxu0
    %2169 = vmatpush.msra.mxu0 0.0
    %2170 = vmatpush.msra.mxu0 0.0
    %2171 = vmatpush.msra.mxu0 0.0
    %2172 = vmatpush.msra.mxu0 0.0
    %2173 = vmatpush.msra.mxu0 0.0
    %2174 = vmatpush.msra.mxu0 0.0
    %2175 = vmatpush.msra.mxu0 0.0
    %2176 = vmatpush.msra.mxu0 0.0
    %2177 = vmatpush.msra.mxu0 0.0
    %2178 = vmatpush.msra.mxu0 0.0
    %2179 = vmatpush.msra.mxu0 %v2099
    %2180 = vmatpush.msra.mxu0 %v2095
    %2181 = vmatpush.msra.mxu0 %v2091
    %2182 = vmatpush.msra.mxu0 %v2087
    %2183 = vmatpush.msra.mxu0 %v2083
    %2184 = vmatpush.msra.mxu0 %v2079
    %2185 = vmatmul.f32.gmra.mxu0 %v1081
    %v2186 = vpop.f32.mrf.mxu0
    %v2187 = vadd.f32 %v1073, %v2186
    %2188 = vmatmul.f32.gmra.mxu0 %v1084
    %v2189 = vpop.f32.mrf.mxu0
    %v2190 = vadd.f32 %v1078, %v2189
    %2191 = vdwg.mxu0
    %2192 = vrot.lane.b32.xlu0 %v2118, 1
    %v2193 = vpop.permute.xlu0 %2192
    %2194 = vrot.lane.b32.xlu0 %v2121, 1
    %v2195 = vpop.permute.xlu0 %2194
    %2196 = vrot.lane.b32.xlu0 %v2141, 1
    %v2197 = vpop.permute.xlu0 %2196
    %2198 = vrot.lane.b32.xlu0 %v2144, 1
    %v2199 = vpop.permute.xlu0 %2198
    %2200 = vrot.lane.b32.xlu0 %v2164, 1
    %v2201 = vpop.permute.xlu0 %2200
    %2202 = vrot.lane.b32.xlu0 %v2167, 1
    %v2203 = vpop.permute.xlu0 %2202
    %2204 = vrot.lane.b32.xlu0 %v2187, 1
    %v2205 = vpop.permute.xlu0 %2204
    %2206 = vrot.lane.b32.xlu0 %v2190, 1
    %v2207 = vpop.permute.xlu0 %2206
    %v2208 = vsel %vm312, %v2201, %v2205
    %v2209 = vsel %vm312, %v2203, %v2207
    %v2210 = vsel %vm312, %v2197, %v2201
    %v2211 = vsel %vm312, %v2199, %v2203
    %v2212 = vsel %vm312, %v2193, %v2197
    %v2213 = vsel %vm312, %v2195, %v2199
    %v2214 = vsel %vm312, %v2205, %v2193
    %v2215 = vsel %vm312, %v2207, %v2195
    %v2216 = vmul.f32 %v2214, %v147
    %v2217 = vmul.f32 %v2212, %v148
    %v2218 = vmul.f32 %v2210, %v149
    %v2219 = vmul.f32 %v2208, %v150
    %v2220 = vmul.f32 %v2215, %v147
    %v2221 = vmul.f32 %v2213, %v148
    %v2222 = vmul.f32 %v2211, %v149
    %v2223 = vmul.f32 %v2209, %v150
    %2224 = vst [vmem:[#allocation2] sm:$0xff] %v2216
    %2225 = vst [vmem:[#allocation2 + $0x8] sm:$0xff] %v2217
    %2226 = vst [vmem:[#allocation2 + $0x10] sm:$0xff] %v2218
    %2227 = vst [vmem:[#allocation2 + $0x18] sm:$0xff] %v2219
    %2228 = vst [vmem:[#allocation2 + $0x20] sm:$0xff] %v2220
    %2229 = vst [vmem:[#allocation2 + $0x28] sm:$0xff] %v2221
    %2230 = vst [vmem:[#allocation2 + $0x30] sm:$0xff] %v2222
    %2231 = vst [vmem:[#allocation2 + $0x38] sm:$0xff] %v2223
    %2232 = vst [vmem:[#allocation2 + $0x40] sm:$0xff] %v2118
    %2233 = vst [vmem:[#allocation2 + $0x48] sm:$0xff] %v2141
    %2234 = vst [vmem:[#allocation2 + $0x50] sm:$0xff] %v2164
    %2235 = vst [vmem:[#allocation2 + $0x58] sm:$0xff] %v2187
    %2236 = vst [vmem:[#allocation2 + $0x60] sm:$0xff] %v2121
    %2237 = vst [vmem:[#allocation2 + $0x68] sm:$0xff] %v2144
    %2238 = vst [vmem:[#allocation2 + $0x70] sm:$0xff] %v2167
    %2239 = vst [vmem:[#allocation2 + $0x78] sm:$0xff] %v2190
    %2240 = vrot.lane.b32.xlu0 %v2118, 127
    %v2241 = vpop.permute.xlu0 %2240
    %2242 = vrot.lane.b32.xlu0 %v2121, 127
    %v2243 = vpop.permute.xlu0 %2242
    %2244 = vrot.lane.b32.xlu0 %v2141, 127
    %v2245 = vpop.permute.xlu0 %2244
    %2246 = vrot.lane.b32.xlu0 %v2144, 127
    %v2247 = vpop.permute.xlu0 %2246
    %2248 = vrot.lane.b32.xlu0 %v2164, 127
    %v2249 = vpop.permute.xlu0 %2248
    %2250 = vrot.lane.b32.xlu0 %v2167, 127
    %v2251 = vpop.permute.xlu0 %2250
    %2252 = vrot.lane.b32.xlu0 %v2187, 127
    %v2253 = vpop.permute.xlu0 %2252
    %2254 = vrot.lane.b32.xlu0 %v2190, 127
    %v2255 = vpop.permute.xlu0 %2254
    %v2256 = vsel %vm361, %v2249, %v2253
    %v2257 = vsel %vm361, %v2251, %v2255
    %v2258 = vsel %vm361, %v2245, %v2249
    %v2259 = vsel %vm361, %v2247, %v2251
    %v2260 = vsel %vm361, %v2241, %v2245
    %v2261 = vsel %vm361, %v2243, %v2247
    %v2262 = vsel %vm361, %v2253, %v2241
    %v2263 = vsel %vm361, %v2255, %v2243
    %v2264 = vmul.f32 %v2260, %v171
    %v2265 = vmul.f32 %v2258, %v172
    %v2266 = vmul.f32 %v2256, %v173
    %v2267 = vmul.f32 %v2262, %v174
    %v2268 = vmul.f32 %v2261, %v171
    %v2269 = vmul.f32 %v2259, %v172
    %v2270 = vmul.f32 %v2257, %v173
    %v2271 = vmul.f32 %v2263, %v174
    %2272 = vst [vmem:[#allocation2 + $0x80] sm:$0xff] %v2264
    %2273 = vst [vmem:[#allocation2 + $0x88] sm:$0xff] %v2265
    %2274 = vst [vmem:[#allocation2 + $0x90] sm:$0xff] %v2266
    %2275 = vst [vmem:[#allocation2 + $0x98] sm:$0xff] %v2267
    %2276 = vst [vmem:[#allocation2 + $0xa0] sm:$0xff] %v2268
    %2277 = vst [vmem:[#allocation2 + $0xa8] sm:$0xff] %v2269
    %2278 = vst [vmem:[#allocation2 + $0xb0] sm:$0xff] %v2270
    %2279 = vst [vmem:[#allocation2 + $0xb8] sm:$0xff] %v2271
    %v2280 = vld [vmem:[#allocation2] sm:$0xff]
    %v2281 = vld [vmem:[#allocation2 + $0x8] sm:$0xff]
    %v2282 = vld [vmem:[#allocation2 + $0x10] sm:$0xff]
    %v2283 = vld [vmem:[#allocation2 + $0x18] sm:$0xff]
    %v2284 = vld [vmem:[#allocation2 + $0x20] sm:$0xff]
    %v2285 = vld [vmem:[#allocation2 + $0x28] sm:$0xff]
    %v2286 = vld [vmem:[#allocation2 + $0x30] sm:$0xff]
    %v2287 = vld [vmem:[#allocation2 + $0x38] sm:$0xff]
    %v2288 = vld [vmem:[#allocation2 + $0x40] sm:$0xff]
    %v2289 = vld [vmem:[#allocation2 + $0x48] sm:$0xff]
    %v2290 = vld [vmem:[#allocation2 + $0x50] sm:$0xff]
    %v2291 = vld [vmem:[#allocation2 + $0x58] sm:$0xff]
    %v2292 = vld [vmem:[#allocation2 + $0x60] sm:$0xff]
    %v2293 = vld [vmem:[#allocation2 + $0x68] sm:$0xff]
    %v2294 = vld [vmem:[#allocation2 + $0x70] sm:$0xff]
    %v2295 = vld [vmem:[#allocation2 + $0x78] sm:$0xff]
    %v2296 = vld [vmem:[#allocation2 + $0x80] sm:$0xff]
    %v2297 = vld [vmem:[#allocation2 + $0x88] sm:$0xff]
    %v2298 = vld [vmem:[#allocation2 + $0x90] sm:$0xff]
    %v2299 = vld [vmem:[#allocation2 + $0x98] sm:$0xff]
    %v2300 = vld [vmem:[#allocation2 + $0xa0] sm:$0xff]
    %v2301 = vld [vmem:[#allocation2 + $0xa8] sm:$0xff]
    %v2302 = vld [vmem:[#allocation2 + $0xb0] sm:$0xff]
    %v2303 = vld [vmem:[#allocation2 + $0xb8] sm:$0xff]
    %2304 = vmatpush.msra.mxu0 0.0
    %2305 = vmatpush.msra.mxu0 0.0
    %2306 = vmatpush.msra.mxu0 0.0
    %2307 = vmatpush.msra.mxu0 0.0
    %2308 = vmatpush.msra.mxu0 0.0
    %2309 = vmatpush.msra.mxu0 0.0
    %2310 = vmatpush.msra.mxu0 0.0
    %2311 = vmatpush.msra.mxu0 0.0
    %2312 = vmatpush.msra.mxu0 0.0
    %2313 = vmatpush.msra.mxu0 0.0
    %2314 = vmatpush.msra.mxu0 %v2300
    %2315 = vmatpush.msra.mxu0 %v2296
    %2316 = vmatpush.msra.mxu0 %v2292
    %2317 = vmatpush.msra.mxu0 %v2288
    %2318 = vmatpush.msra.mxu0 %v2284
    %2319 = vmatpush.msra.mxu0 %v2280
    %2320 = vmatmul.f32.gmra.mxu0 %v422
    %v2321 = vpop.f32.mrf.mxu0
    %v2322 = vadd.f32 %v413, %v2321
    %2323 = vmatmul.f32.gmra.mxu0 %v425
    %v2324 = vpop.f32.mrf.mxu0
    %v2325 = vadd.f32 %v418, %v2324
    %2326 = vdwg.mxu0
    %2327 = vmatpush.msra.mxu0 0.0
    %2328 = vmatpush.msra.mxu0 0.0
    %2329 = vmatpush.msra.mxu0 0.0
    %2330 = vmatpush.msra.mxu0 0.0
    %2331 = vmatpush.msra.mxu0 0.0
    %2332 = vmatpush.msra.mxu0 0.0
    %2333 = vmatpush.msra.mxu0 0.0
    %2334 = vmatpush.msra.mxu0 0.0
    %2335 = vmatpush.msra.mxu0 0.0
    %2336 = vmatpush.msra.mxu0 0.0
    %2337 = vmatpush.msra.mxu0 %v2301
    %2338 = vmatpush.msra.mxu0 %v2297
    %2339 = vmatpush.msra.mxu0 %v2293
    %2340 = vmatpush.msra.mxu0 %v2289
    %2341 = vmatpush.msra.mxu0 %v2285
    %2342 = vmatpush.msra.mxu0 %v2281
    %2343 = vmatmul.f32.gmra.mxu0 %v422
    %v2344 = vpop.f32.mrf.mxu0
    %v2345 = vadd.f32 %v413, %v2344
    %2346 = vmatmul.f32.gmra.mxu0 %v425
    %v2347 = vpop.f32.mrf.mxu0
    %v2348 = vadd.f32 %v418, %v2347
    %2349 = vdwg.mxu0
    %2350 = vmatpush.msra.mxu0 0.0
    %2351 = vmatpush.msra.mxu0 0.0
    %2352 = vmatpush.msra.mxu0 0.0
    %2353 = vmatpush.msra.mxu0 0.0
    %2354 = vmatpush.msra.mxu0 0.0
    %2355 = vmatpush.msra.mxu0 0.0
    %2356 = vmatpush.msra.mxu0 0.0
    %2357 = vmatpush.msra.mxu0 0.0
    %2358 = vmatpush.msra.mxu0 0.0
    %2359 = vmatpush.msra.mxu0 0.0
    %2360 = vmatpush.msra.mxu0 %v2302
    %2361 = vmatpush.msra.mxu0 %v2298
    %2362 = vmatpush.msra.mxu0 %v2294
    %2363 = vmatpush.msra.mxu0 %v2290
    %2364 = vmatpush.msra.mxu0 %v2286
    %2365 = vmatpush.msra.mxu0 %v2282
    %2366 = vmatmul.f32.gmra.mxu0 %v422
    %v2367 = vpop.f32.mrf.mxu0
    %v2368 = vadd.f32 %v413, %v2367
    %2369 = vmatmul.f32.gmra.mxu0 %v425
    %v2370 = vpop.f32.mrf.mxu0
    %v2371 = vadd.f32 %v418, %v2370
    %2372 = vdwg.mxu0
    %2373 = vmatpush.msra.mxu0 0.0
    %2374 = vmatpush.msra.mxu0 0.0
    %2375 = vmatpush.msra.mxu0 0.0
    %2376 = vmatpush.msra.mxu0 0.0
    %2377 = vmatpush.msra.mxu0 0.0
    %2378 = vmatpush.msra.mxu0 0.0
    %2379 = vmatpush.msra.mxu0 0.0
    %2380 = vmatpush.msra.mxu0 0.0
    %2381 = vmatpush.msra.mxu0 0.0
    %2382 = vmatpush.msra.mxu0 0.0
    %2383 = vmatpush.msra.mxu0 %v2303
    %2384 = vmatpush.msra.mxu0 %v2299
    %2385 = vmatpush.msra.mxu0 %v2295
    %2386 = vmatpush.msra.mxu0 %v2291
    %2387 = vmatpush.msra.mxu0 %v2287
    %2388 = vmatpush.msra.mxu0 %v2283
    %2389 = vmatmul.f32.gmra.mxu0 %v422
    %v2390 = vpop.f32.mrf.mxu0
    %v2391 = vadd.f32 %v413, %v2390
    %2392 = vmatmul.f32.gmra.mxu0 %v425
    %v2393 = vpop.f32.mrf.mxu0
    %v2394 = vadd.f32 %v418, %v2393
    %2395 = vdwg.mxu0
    %v2396 = vmax.f32 %v2322, 0.0
    %v2397 = vmax.f32 %v2345, 0.0
    %v2398 = vmax.f32 %v2368, 0.0
    %v2399 = vmax.f32 %v2391, 0.0
    %v2400 = vmax.f32 %v2325, 0.0
    %v2401 = vmax.f32 %v2348, 0.0
    %v2402 = vmax.f32 %v2371, 0.0
    %v2403 = vmax.f32 %v2394, 0.0
    %v2404 = vadd.f32 %v2396, %v2397
    %2405 = vadd.xlane.f32.xlu0 %v2404
    %v2406 = vpop.xlane.xlu0 %2405
    %v2407 = vadd.f32 %v2400, %v2401
    %2408 = vadd.xlane.f32.xlu0 %v2407
    %v2409 = vpop.xlane.xlu0 %2408
    %v2410 = vmul.f32 %v2406, %v539
    %v2411 = vmul.f32 %v2409, %v539
    %v2412 = vsub.f32 %v2396, %v2410
    %v2413 = vsub.f32 %v2397, %v2410
    %v2414 = vsub.f32 %v2400, %v2411
    %v2415 = vsub.f32 %v2401, %v2411
    %v2416 = vmul.f32 %v2412, %v2412
    %v2417 = vmul.f32 %v2413, %v2413
    %v2418 = vmul.f32 %v2414, %v2414
    %v2419 = vmul.f32 %v2415, %v2415
    %v2420 = vadd.f32 %v2416, %v2417
    %2421 = vadd.xlane.f32.xlu0 %v2420
    %v2422 = vpop.xlane.xlu0 %2421
    %v2423 = vadd.f32 %v2418, %v2419
    %2424 = vadd.xlane.f32.xlu0 %v2423
    %v2425 = vpop.xlane.xlu0 %2424
    %v2426 = vmul.f32 %v2422, 0.003921569
    %v2427 = vmul.f32 %v2425, 0.003921569
    %v2428 = vrsqrt.pop %v2426
    %v2429 = vmul.f32 %v2428, %v2426
    %v2430 = vmul.f32 %v2429, %v2428
    %v2431 = vmul.f32 0.5, %v2430
    %v2432 = vsub.f32 1.5, %v2431
    %v2433 = vmul.f32 %v2428, %v2432
    %v2434 = vmul.f32 %v2426, %v2433
    %vm2435 = vcmp.eq.f32.partialorder %v2426, inf
    %v2436 = vsel %vm2435, %v2426, %v2434
    %vm2437 = vcmp.eq.f32.partialorder %v2426, 0.0
    %v2438 = vand.u32 %v2426, 2147483648
    %v2439 = vsel %vm2437, %v2438, %v2436
    %v2440 = vrsqrt.pop %v2427
    %v2441 = vmul.f32 %v2440, %v2427
    %v2442 = vmul.f32 %v2441, %v2440
    %v2443 = vmul.f32 0.5, %v2442
    %v2444 = vsub.f32 1.5, %v2443
    %v2445 = vmul.f32 %v2440, %v2444
    %v2446 = vmul.f32 %v2427, %v2445
    %vm2447 = vcmp.eq.f32.partialorder %v2427, inf
    %v2448 = vsel %vm2447, %v2427, %v2446
    %vm2449 = vcmp.eq.f32.partialorder %v2427, 0.0
    %v2450 = vand.u32 %v2427, 2147483648
    %v2451 = vsel %vm2449, %v2450, %v2448
    %v2452 = vadd.f32 %v2439, 1e-06
    %v2453 = vadd.f32 %v2451, 1e-06
    %v2454 = vrcp.pop %v2452
    %v2455 = vmul.f32 %v2452, %v2454
    %v2456 = vsub.f32 1.0, %v2455
    %v2457 = vmul.f32 %v2454, %v2456
    %v2458 = vadd.f32 %v2454, %v2457
    %vm2459 = vweird.f32 %v2452
    %vm2460 = vweird.f32 %v2454
    %vm2461 = vmor %vm2459, %vm2460
    %v2462 = vsel %vm2461, %v2454, %v2458
    %v2463 = vand.u32 2147483647, %v2452
    %vm2464 = vcmp.eq.f32.partialorder %v2463, 8.507059e+37
    %v2465 = vand.u32 %v2452, 2147483648
    %v2466 = vor.u32 1.1754944e-38, %v2465
    %v2467 = vsel %vm2464, %v2466, %v2462
    %v2468 = vmul.f32 1.0, %v2467
    %v2469 = vrcp.pop %v2453
    %v2470 = vmul.f32 %v2453, %v2469
    %v2471 = vsub.f32 1.0, %v2470
    %v2472 = vmul.f32 %v2469, %v2471
    %v2473 = vadd.f32 %v2469, %v2472
    %vm2474 = vweird.f32 %v2453
    %vm2475 = vweird.f32 %v2469
    %vm2476 = vmor %vm2474, %vm2475
    %v2477 = vsel %vm2476, %v2469, %v2473
    %v2478 = vand.u32 2147483647, %v2453
    %vm2479 = vcmp.eq.f32.partialorder %v2478, 8.507059e+37
    %v2480 = vand.u32 %v2453, 2147483648
    %v2481 = vor.u32 1.1754944e-38, %v2480
    %v2482 = vsel %vm2479, %v2481, %v2477
    %v2483 = vmul.f32 1.0, %v2482
    %v2484 = vmul.f32 %v2412, %v2468
    %v2485 = vmul.f32 %v2413, %v2468
    %v2486 = vmul.f32 %v2414, %v2483
    %v2487 = vmul.f32 %v2415, %v2483
    %v2488 = vadd.f32 %v2398, %v2399
    %2489 = vadd.xlane.f32.xlu0 %v2488
    %v2490 = vpop.xlane.xlu0 %2489
    %v2491 = vadd.f32 %v2402, %v2403
    %2492 = vadd.xlane.f32.xlu0 %v2491
    %v2493 = vpop.xlane.xlu0 %2492
    %v2494 = vmul.f32 %v2490, %v539
    %v2495 = vmul.f32 %v2493, %v539
    %v2496 = vsub.f32 %v2398, %v2494
    %v2497 = vsub.f32 %v2399, %v2494
    %v2498 = vsub.f32 %v2402, %v2495
    %v2499 = vsub.f32 %v2403, %v2495
    %v2500 = vmul.f32 %v2496, %v2496
    %v2501 = vmul.f32 %v2497, %v2497
    %v2502 = vmul.f32 %v2498, %v2498
    %v2503 = vmul.f32 %v2499, %v2499
    %v2504 = vadd.f32 %v2500, %v2501
    %2505 = vadd.xlane.f32.xlu0 %v2504
    %v2506 = vpop.xlane.xlu0 %2505
    %v2507 = vadd.f32 %v2502, %v2503
    %2508 = vadd.xlane.f32.xlu0 %v2507
    %v2509 = vpop.xlane.xlu0 %2508
    %v2510 = vmul.f32 %v2506, 0.003921569
    %v2511 = vmul.f32 %v2509, 0.003921569
    %v2512 = vrsqrt.pop %v2510
    %v2513 = vmul.f32 %v2512, %v2510
    %v2514 = vmul.f32 %v2513, %v2512
    %v2515 = vmul.f32 0.5, %v2514
    %v2516 = vsub.f32 1.5, %v2515
    %v2517 = vmul.f32 %v2512, %v2516
    %v2518 = vmul.f32 %v2510, %v2517
    %vm2519 = vcmp.eq.f32.partialorder %v2510, inf
    %v2520 = vsel %vm2519, %v2510, %v2518
    %vm2521 = vcmp.eq.f32.partialorder %v2510, 0.0
    %v2522 = vand.u32 %v2510, 2147483648
    %v2523 = vsel %vm2521, %v2522, %v2520
    %v2524 = vrsqrt.pop %v2511
    %v2525 = vmul.f32 %v2524, %v2511
    %v2526 = vmul.f32 %v2525, %v2524
    %v2527 = vmul.f32 0.5, %v2526
    %v2528 = vsub.f32 1.5, %v2527
    %v2529 = vmul.f32 %v2524, %v2528
    %v2530 = vmul.f32 %v2511, %v2529
    %vm2531 = vcmp.eq.f32.partialorder %v2511, inf
    %v2532 = vsel %vm2531, %v2511, %v2530
    %vm2533 = vcmp.eq.f32.partialorder %v2511, 0.0
    %v2534 = vand.u32 %v2511, 2147483648
    %v2535 = vsel %vm2533, %v2534, %v2532
    %v2536 = vadd.f32 %v2523, 1e-06
    %v2537 = vadd.f32 %v2535, 1e-06
    %v2538 = vrcp.pop %v2536
    %v2539 = vmul.f32 %v2536, %v2538
    %v2540 = vsub.f32 1.0, %v2539
    %v2541 = vmul.f32 %v2538, %v2540
    %v2542 = vadd.f32 %v2538, %v2541
    %vm2543 = vweird.f32 %v2536
    %vm2544 = vweird.f32 %v2538
    %vm2545 = vmor %vm2543, %vm2544
    %v2546 = vsel %vm2545, %v2538, %v2542
    %v2547 = vand.u32 2147483647, %v2536
    %vm2548 = vcmp.eq.f32.partialorder %v2547, 8.507059e+37
    %v2549 = vand.u32 %v2536, 2147483648
    %v2550 = vor.u32 1.1754944e-38, %v2549
    %v2551 = vsel %vm2548, %v2550, %v2546
    %v2552 = vmul.f32 1.0, %v2551
    %v2553 = vrcp.pop %v2537
    %v2554 = vmul.f32 %v2537, %v2553
    %v2555 = vsub.f32 1.0, %v2554
    %v2556 = vmul.f32 %v2553, %v2555
    %v2557 = vadd.f32 %v2553, %v2556
    %vm2558 = vweird.f32 %v2537
    %vm2559 = vweird.f32 %v2553
    %vm2560 = vmor %vm2558, %vm2559
    %v2561 = vsel %vm2560, %v2553, %v2557
    %v2562 = vand.u32 2147483647, %v2537
    %vm2563 = vcmp.eq.f32.partialorder %v2562, 8.507059e+37
    %v2564 = vand.u32 %v2537, 2147483648
    %v2565 = vor.u32 1.1754944e-38, %v2564
    %v2566 = vsel %vm2563, %v2565, %v2561
    %v2567 = vmul.f32 1.0, %v2566
    %v2568 = vmul.f32 %v2496, %v2552
    %v2569 = vmul.f32 %v2497, %v2552
    %v2570 = vmul.f32 %v2498, %v2567
    %v2571 = vmul.f32 %v2499, %v2567
    %v2572 = vmul.f32 %v703, %v2484
    %v2573 = vmul.f32 %v704, %v2485
    %v2574 = vmul.f32 %v705, %v2568
    %v2575 = vmul.f32 %v706, %v2569
    %v2576 = vmul.f32 %v703, %v2486
    %v2577 = vmul.f32 %v704, %v2487
    %v2578 = vmul.f32 %v705, %v2570
    %v2579 = vmul.f32 %v706, %v2571
    %v2580 = vadd.f32 %v2572, %v720
    %v2581 = vadd.f32 %v2573, %v721
    %v2582 = vadd.f32 %v2574, %v722
    %v2583 = vadd.f32 %v2575, %v723
    %v2584 = vadd.f32 %v2576, %v720
    %v2585 = vadd.f32 %v2577, %v721
    %v2586 = vadd.f32 %v2578, %v722
    %v2587 = vadd.f32 %v2579, %v723
    %2588 = vrot.lane.b32.xlu0 %v2580, 1
    %v2589 = vpop.permute.xlu0 %2588
    %2590 = vrot.lane.b32.xlu0 %v2584, 1
    %v2591 = vpop.permute.xlu0 %2590
    %2592 = vrot.lane.b32.xlu0 %v2581, 1
    %v2593 = vpop.permute.xlu0 %2592
    %2594 = vrot.lane.b32.xlu0 %v2585, 1
    %v2595 = vpop.permute.xlu0 %2594
    %2596 = vrot.lane.b32.xlu0 %v2582, 1
    %v2597 = vpop.permute.xlu0 %2596
    %2598 = vrot.lane.b32.xlu0 %v2586, 1
    %v2599 = vpop.permute.xlu0 %2598
    %2600 = vrot.lane.b32.xlu0 %v2583, 1
    %v2601 = vpop.permute.xlu0 %2600
    %2602 = vrot.lane.b32.xlu0 %v2587, 1
    %v2603 = vpop.permute.xlu0 %2602
    %v2604 = vsel %vm312, %v2597, %v2601
    %v2605 = vsel %vm312, %v2599, %v2603
    %v2606 = vsel %vm312, %v2593, %v2597
    %v2607 = vsel %vm312, %v2595, %v2599
    %v2608 = vsel %vm312, %v2589, %v2593
    %v2609 = vsel %vm312, %v2591, %v2595
    %v2610 = vsel %vm312, %v2601, %v2589
    %v2611 = vsel %vm312, %v2603, %v2591
    %v2612 = vmul.f32 %v2610, %v147
    %v2613 = vmul.f32 %v2608, %v148
    %v2614 = vmul.f32 %v2606, %v149
    %v2615 = vmul.f32 %v2604, %v150
    %v2616 = vmul.f32 %v2611, %v147
    %v2617 = vmul.f32 %v2609, %v148
    %v2618 = vmul.f32 %v2607, %v149
    %v2619 = vmul.f32 %v2605, %v150
    %2620 = vst [vmem:[#allocation2] sm:$0xff] %v2612
    %2621 = vst [vmem:[#allocation2 + $0x8] sm:$0xff] %v2613
    %2622 = vst [vmem:[#allocation2 + $0x10] sm:$0xff] %v2614
    %2623 = vst [vmem:[#allocation2 + $0x18] sm:$0xff] %v2615
    %2624 = vst [vmem:[#allocation2 + $0x20] sm:$0xff] %v2616
    %2625 = vst [vmem:[#allocation2 + $0x28] sm:$0xff] %v2617
    %2626 = vst [vmem:[#allocation2 + $0x30] sm:$0xff] %v2618
    %2627 = vst [vmem:[#allocation2 + $0x38] sm:$0xff] %v2619
    %2628 = vst [vmem:[#allocation2 + $0x40] sm:$0xff] %v2580
    %2629 = vst [vmem:[#allocation2 + $0x48] sm:$0xff] %v2581
    %2630 = vst [vmem:[#allocation2 + $0x50] sm:$0xff] %v2582
    %2631 = vst [vmem:[#allocation2 + $0x58] sm:$0xff] %v2583
    %2632 = vst [vmem:[#allocation2 + $0x60] sm:$0xff] %v2584
    %2633 = vst [vmem:[#allocation2 + $0x68] sm:$0xff] %v2585
    %2634 = vst [vmem:[#allocation2 + $0x70] sm:$0xff] %v2586
    %2635 = vst [vmem:[#allocation2 + $0x78] sm:$0xff] %v2587
    %2636 = vrot.lane.b32.xlu0 %v2580, 127
    %v2637 = vpop.permute.xlu0 %2636
    %2638 = vrot.lane.b32.xlu0 %v2584, 127
    %v2639 = vpop.permute.xlu0 %2638
    %2640 = vrot.lane.b32.xlu0 %v2581, 127
    %v2641 = vpop.permute.xlu0 %2640
    %2642 = vrot.lane.b32.xlu0 %v2585, 127
    %v2643 = vpop.permute.xlu0 %2642
    %2644 = vrot.lane.b32.xlu0 %v2582, 127
    %v2645 = vpop.permute.xlu0 %2644
    %2646 = vrot.lane.b32.xlu0 %v2586, 127
    %v2647 = vpop.permute.xlu0 %2646
    %2648 = vrot.lane.b32.xlu0 %v2583, 127
    %v2649 = vpop.permute.xlu0 %2648
    %2650 = vrot.lane.b32.xlu0 %v2587, 127
    %v2651 = vpop.permute.xlu0 %2650
    %v2652 = vsel %vm361, %v2645, %v2649
    %v2653 = vsel %vm361, %v2647, %v2651
    %v2654 = vsel %vm361, %v2641, %v2645
    %v2655 = vsel %vm361, %v2643, %v2647
    %v2656 = vsel %vm361, %v2637, %v2641
    %v2657 = vsel %vm361, %v2639, %v2643
    %v2658 = vsel %vm361, %v2649, %v2637
    %v2659 = vsel %vm361, %v2651, %v2639
    %v2660 = vmul.f32 %v2656, %v171
    %v2661 = vmul.f32 %v2654, %v172
    %v2662 = vmul.f32 %v2652, %v173
    %v2663 = vmul.f32 %v2658, %v174
    %v2664 = vmul.f32 %v2657, %v171
    %v2665 = vmul.f32 %v2655, %v172
    %v2666 = vmul.f32 %v2653, %v173
    %v2667 = vmul.f32 %v2659, %v174
    %2668 = vst [vmem:[#allocation2 + $0x80] sm:$0xff] %v2660
    %2669 = vst [vmem:[#allocation2 + $0x88] sm:$0xff] %v2661
    %2670 = vst [vmem:[#allocation2 + $0x90] sm:$0xff] %v2662
    %2671 = vst [vmem:[#allocation2 + $0x98] sm:$0xff] %v2663
    %2672 = vst [vmem:[#allocation2 + $0xa0] sm:$0xff] %v2664
    %2673 = vst [vmem:[#allocation2 + $0xa8] sm:$0xff] %v2665
    %2674 = vst [vmem:[#allocation2 + $0xb0] sm:$0xff] %v2666
    %2675 = vst [vmem:[#allocation2 + $0xb8] sm:$0xff] %v2667
    %v2676 = vld [vmem:[#allocation2] sm:$0xff]
    %v2677 = vld [vmem:[#allocation2 + $0x8] sm:$0xff]
    %v2678 = vld [vmem:[#allocation2 + $0x10] sm:$0xff]
    %v2679 = vld [vmem:[#allocation2 + $0x18] sm:$0xff]
    %v2680 = vld [vmem:[#allocation2 + $0x20] sm:$0xff]
    %v2681 = vld [vmem:[#allocation2 + $0x28] sm:$0xff]
    %v2682 = vld [vmem:[#allocation2 + $0x30] sm:$0xff]
    %v2683 = vld [vmem:[#allocation2 + $0x38] sm:$0xff]
    %v2684 = vld [vmem:[#allocation2 + $0x40] sm:$0xff]
    %v2685 = vld [vmem:[#allocation2 + $0x48] sm:$0xff]
    %v2686 = vld [vmem:[#allocation2 + $0x50] sm:$0xff]
    %v2687 = vld [vmem:[#allocation2 + $0x58] sm:$0xff]
    %v2688 = vld [vmem:[#allocation2 + $0x60] sm:$0xff]
    %v2689 = vld [vmem:[#allocation2 + $0x68] sm:$0xff]
    %v2690 = vld [vmem:[#allocation2 + $0x70] sm:$0xff]
    %v2691 = vld [vmem:[#allocation2 + $0x78] sm:$0xff]
    %v2692 = vld [vmem:[#allocation2 + $0x80] sm:$0xff]
    %v2693 = vld [vmem:[#allocation2 + $0x88] sm:$0xff]
    %v2694 = vld [vmem:[#allocation2 + $0x90] sm:$0xff]
    %v2695 = vld [vmem:[#allocation2 + $0x98] sm:$0xff]
    %v2696 = vld [vmem:[#allocation2 + $0xa0] sm:$0xff]
    %v2697 = vld [vmem:[#allocation2 + $0xa8] sm:$0xff]
    %v2698 = vld [vmem:[#allocation2 + $0xb0] sm:$0xff]
    %v2699 = vld [vmem:[#allocation2 + $0xb8] sm:$0xff]
    %2700 = vmatpush.msra.mxu0 0.0
    %2701 = vmatpush.msra.mxu0 0.0
    %2702 = vmatpush.msra.mxu0 0.0
    %2703 = vmatpush.msra.mxu0 0.0
    %2704 = vmatpush.msra.mxu0 0.0
    %2705 = vmatpush.msra.mxu0 0.0
    %2706 = vmatpush.msra.mxu0 0.0
    %2707 = vmatpush.msra.mxu0 0.0
    %2708 = vmatpush.msra.mxu0 0.0
    %2709 = vmatpush.msra.mxu0 0.0
    %2710 = vmatpush.msra.mxu0 %v2696
    %2711 = vmatpush.msra.mxu0 %v2692
    %2712 = vmatpush.msra.mxu0 %v2688
    %2713 = vmatpush.msra.mxu0 %v2684
    %2714 = vmatpush.msra.mxu0 %v2680
    %2715 = vmatpush.msra.mxu0 %v2676
    %2716 = vmatmul.f32.gmra.mxu0 %v859
    %v2717 = vpop.f32.mrf.mxu0
    %v2718 = vadd.f32 %v851, %v2717
    %2719 = vmatmul.f32.gmra.mxu0 %v862
    %v2720 = vpop.f32.mrf.mxu0
    %v2721 = vadd.f32 %v856, %v2720
    %2722 = vdwg.mxu0
    %2723 = vmatpush.msra.mxu0 0.0
    %2724 = vmatpush.msra.mxu0 0.0
    %2725 = vmatpush.msra.mxu0 0.0
    %2726 = vmatpush.msra.mxu0 0.0
    %2727 = vmatpush.msra.mxu0 0.0
    %2728 = vmatpush.msra.mxu0 0.0
    %2729 = vmatpush.msra.mxu0 0.0
    %2730 = vmatpush.msra.mxu0 0.0
    %2731 = vmatpush.msra.mxu0 0.0
    %2732 = vmatpush.msra.mxu0 0.0
    %2733 = vmatpush.msra.mxu0 %v2697
    %2734 = vmatpush.msra.mxu0 %v2693
    %2735 = vmatpush.msra.mxu0 %v2689
    %2736 = vmatpush.msra.mxu0 %v2685
    %2737 = vmatpush.msra.mxu0 %v2681
    %2738 = vmatpush.msra.mxu0 %v2677
    %2739 = vmatmul.f32.gmra.mxu0 %v859
    %v2740 = vpop.f32.mrf.mxu0
    %v2741 = vadd.f32 %v851, %v2740
    %2742 = vmatmul.f32.gmra.mxu0 %v862
    %v2743 = vpop.f32.mrf.mxu0
    %v2744 = vadd.f32 %v856, %v2743
    %2745 = vdwg.mxu0
    %2746 = vmatpush.msra.mxu0 0.0
    %2747 = vmatpush.msra.mxu0 0.0
    %2748 = vmatpush.msra.mxu0 0.0
    %2749 = vmatpush.msra.mxu0 0.0
    %2750 = vmatpush.msra.mxu0 0.0
    %2751 = vmatpush.msra.mxu0 0.0
    %2752 = vmatpush.msra.mxu0 0.0
    %2753 = vmatpush.msra.mxu0 0.0
    %2754 = vmatpush.msra.mxu0 0.0
    %2755 = vmatpush.msra.mxu0 0.0
    %2756 = vmatpush.msra.mxu0 %v2698
    %2757 = vmatpush.msra.mxu0 %v2694
    %2758 = vmatpush.msra.mxu0 %v2690
    %2759 = vmatpush.msra.mxu0 %v2686
    %2760 = vmatpush.msra.mxu0 %v2682
    %2761 = vmatpush.msra.mxu0 %v2678
    %2762 = vmatmul.f32.gmra.mxu0 %v859
    %v2763 = vpop.f32.mrf.mxu0
    %v2764 = vadd.f32 %v851, %v2763
    %2765 = vmatmul.f32.gmra.mxu0 %v862
    %v2766 = vpop.f32.mrf.mxu0
    %v2767 = vadd.f32 %v856, %v2766
    %2768 = vdwg.mxu0
    %2769 = vmatpush.msra.mxu0 0.0
    %2770 = vmatpush.msra.mxu0 0.0
    %2771 = vmatpush.msra.mxu0 0.0
    %2772 = vmatpush.msra.mxu0 0.0
    %2773 = vmatpush.msra.mxu0 0.0
    %2774 = vmatpush.msra.mxu0 0.0
    %2775 = vmatpush.msra.mxu0 0.0
    %2776 = vmatpush.msra.mxu0 0.0
    %2777 = vmatpush.msra.mxu0 0.0
    %2778 = vmatpush.msra.mxu0 0.0
    %2779 = vmatpush.msra.mxu0 %v2699
    %2780 = vmatpush.msra.mxu0 %v2695
    %2781 = vmatpush.msra.mxu0 %v2691
    %2782 = vmatpush.msra.mxu0 %v2687
    %2783 = vmatpush.msra.mxu0 %v2683
    %2784 = vmatpush.msra.mxu0 %v2679
    %2785 = vmatmul.f32.gmra.mxu0 %v859
    %v2786 = vpop.f32.mrf.mxu0
    %v2787 = vadd.f32 %v851, %v2786
    %2788 = vmatmul.f32.gmra.mxu0 %v862
    %v2789 = vpop.f32.mrf.mxu0
    %v2790 = vadd.f32 %v856, %v2789
    %2791 = vdwg.mxu0
    %2792 = vrot.lane.b32.xlu0 %v2718, 2
    %v2793 = vpop.permute.xlu0 %2792
    %2794 = vrot.lane.b32.xlu0 %v2721, 2
    %v2795 = vpop.permute.xlu0 %2794
    %2796 = vrot.lane.b32.xlu0 %v2741, 2
    %v2797 = vpop.permute.xlu0 %2796
    %2798 = vrot.lane.b32.xlu0 %v2744, 2
    %v2799 = vpop.permute.xlu0 %2798
    %2800 = vrot.lane.b32.xlu0 %v2764, 2
    %v2801 = vpop.permute.xlu0 %2800
    %2802 = vrot.lane.b32.xlu0 %v2767, 2
    %v2803 = vpop.permute.xlu0 %2802
    %2804 = vrot.lane.b32.xlu0 %v2787, 2
    %v2805 = vpop.permute.xlu0 %2804
    %2806 = vrot.lane.b32.xlu0 %v2790, 2
    %v2807 = vpop.permute.xlu0 %2806
    %v2808 = vsel %vm972, %v2801, %v2805
    %v2809 = vsel %vm972, %v2803, %v2807
    %v2810 = vsel %vm972, %v2797, %v2801
    %v2811 = vsel %vm972, %v2799, %v2803
    %v2812 = vsel %vm972, %v2793, %v2797
    %v2813 = vsel %vm972, %v2795, %v2799
    %v2814 = vsel %vm972, %v2805, %v2793
    %v2815 = vsel %vm972, %v2807, %v2795
    %v2816 = vmul.f32 %v2814, %v159
    %v2817 = vmul.f32 %v2812, %v160
    %v2818 = vmul.f32 %v2810, %v161
    %v2819 = vmul.f32 %v2808, %v162
    %v2820 = vmul.f32 %v2815, %v159
    %v2821 = vmul.f32 %v2813, %v160
    %v2822 = vmul.f32 %v2811, %v161
    %v2823 = vmul.f32 %v2809, %v162
    %2824 = vst [vmem:[#allocation2] sm:$0xff] %v2816
    %2825 = vst [vmem:[#allocation2 + $0x8] sm:$0xff] %v2817
    %2826 = vst [vmem:[#allocation2 + $0x10] sm:$0xff] %v2818
    %2827 = vst [vmem:[#allocation2 + $0x18] sm:$0xff] %v2819
    %2828 = vst [vmem:[#allocation2 + $0x20] sm:$0xff] %v2820
    %2829 = vst [vmem:[#allocation2 + $0x28] sm:$0xff] %v2821
    %2830 = vst [vmem:[#allocation2 + $0x30] sm:$0xff] %v2822
    %2831 = vst [vmem:[#allocation2 + $0x38] sm:$0xff] %v2823
    %2832 = vst [vmem:[#allocation2 + $0x40] sm:$0xff] %v2718
    %2833 = vst [vmem:[#allocation2 + $0x48] sm:$0xff] %v2741
    %2834 = vst [vmem:[#allocation2 + $0x50] sm:$0xff] %v2764
    %2835 = vst [vmem:[#allocation2 + $0x58] sm:$0xff] %v2787
    %2836 = vst [vmem:[#allocation2 + $0x60] sm:$0xff] %v2721
    %2837 = vst [vmem:[#allocation2 + $0x68] sm:$0xff] %v2744
    %2838 = vst [vmem:[#allocation2 + $0x70] sm:$0xff] %v2767
    %2839 = vst [vmem:[#allocation2 + $0x78] sm:$0xff] %v2790
    %2840 = vrot.lane.b32.xlu0 %v2718, 126
    %v2841 = vpop.permute.xlu0 %2840
    %2842 = vrot.lane.b32.xlu0 %v2721, 126
    %v2843 = vpop.permute.xlu0 %2842
    %2844 = vrot.lane.b32.xlu0 %v2741, 126
    %v2845 = vpop.permute.xlu0 %2844
    %2846 = vrot.lane.b32.xlu0 %v2744, 126
    %v2847 = vpop.permute.xlu0 %2846
    %2848 = vrot.lane.b32.xlu0 %v2764, 126
    %v2849 = vpop.permute.xlu0 %2848
    %2850 = vrot.lane.b32.xlu0 %v2767, 126
    %v2851 = vpop.permute.xlu0 %2850
    %2852 = vrot.lane.b32.xlu0 %v2787, 126
    %v2853 = vpop.permute.xlu0 %2852
    %2854 = vrot.lane.b32.xlu0 %v2790, 126
    %v2855 = vpop.permute.xlu0 %2854
    %v2856 = vsel %vm1021, %v2849, %v2853
    %v2857 = vsel %vm1021, %v2851, %v2855
    %v2858 = vsel %vm1021, %v2845, %v2849
    %v2859 = vsel %vm1021, %v2847, %v2851
    %v2860 = vsel %vm1021, %v2841, %v2845
    %v2861 = vsel %vm1021, %v2843, %v2847
    %v2862 = vsel %vm1021, %v2853, %v2841
    %v2863 = vsel %vm1021, %v2855, %v2843
    %v2864 = vmul.f32 %v2860, %v183
    %v2865 = vmul.f32 %v2858, %v184
    %v2866 = vmul.f32 %v2856, %v185
    %v2867 = vmul.f32 %v2862, %v186
    %v2868 = vmul.f32 %v2861, %v183
    %v2869 = vmul.f32 %v2859, %v184
    %v2870 = vmul.f32 %v2857, %v185
    %v2871 = vmul.f32 %v2863, %v186
    %2872 = vst [vmem:[#allocation2 + $0x80] sm:$0xff] %v2864
    %2873 = vst [vmem:[#allocation2 + $0x88] sm:$0xff] %v2865
    %2874 = vst [vmem:[#allocation2 + $0x90] sm:$0xff] %v2866
    %2875 = vst [vmem:[#allocation2 + $0x98] sm:$0xff] %v2867
    %2876 = vst [vmem:[#allocation2 + $0xa0] sm:$0xff] %v2868
    %2877 = vst [vmem:[#allocation2 + $0xa8] sm:$0xff] %v2869
    %2878 = vst [vmem:[#allocation2 + $0xb0] sm:$0xff] %v2870
    %2879 = vst [vmem:[#allocation2 + $0xb8] sm:$0xff] %v2871
    %v2880 = vld [vmem:[#allocation2] sm:$0xff]
    %v2881 = vld [vmem:[#allocation2 + $0x8] sm:$0xff]
    %v2882 = vld [vmem:[#allocation2 + $0x10] sm:$0xff]
    %v2883 = vld [vmem:[#allocation2 + $0x18] sm:$0xff]
    %v2884 = vld [vmem:[#allocation2 + $0x20] sm:$0xff]
    %v2885 = vld [vmem:[#allocation2 + $0x28] sm:$0xff]
    %v2886 = vld [vmem:[#allocation2 + $0x30] sm:$0xff]
    %v2887 = vld [vmem:[#allocation2 + $0x38] sm:$0xff]
    %v2888 = vld [vmem:[#allocation2 + $0x40] sm:$0xff]
    %v2889 = vld [vmem:[#allocation2 + $0x48] sm:$0xff]
    %v2890 = vld [vmem:[#allocation2 + $0x50] sm:$0xff]
    %v2891 = vld [vmem:[#allocation2 + $0x58] sm:$0xff]
    %v2892 = vld [vmem:[#allocation2 + $0x60] sm:$0xff]
    %v2893 = vld [vmem:[#allocation2 + $0x68] sm:$0xff]
    %v2894 = vld [vmem:[#allocation2 + $0x70] sm:$0xff]
    %v2895 = vld [vmem:[#allocation2 + $0x78] sm:$0xff]
    %v2896 = vld [vmem:[#allocation2 + $0x80] sm:$0xff]
    %v2897 = vld [vmem:[#allocation2 + $0x88] sm:$0xff]
    %v2898 = vld [vmem:[#allocation2 + $0x90] sm:$0xff]
    %v2899 = vld [vmem:[#allocation2 + $0x98] sm:$0xff]
    %v2900 = vld [vmem:[#allocation2 + $0xa0] sm:$0xff]
    %v2901 = vld [vmem:[#allocation2 + $0xa8] sm:$0xff]
    %v2902 = vld [vmem:[#allocation2 + $0xb0] sm:$0xff]
    %v2903 = vld [vmem:[#allocation2 + $0xb8] sm:$0xff]
    %2904 = vmatpush.msra.mxu0 0.0
    %2905 = vmatpush.msra.mxu0 0.0
    %2906 = vmatpush.msra.mxu0 0.0
    %2907 = vmatpush.msra.mxu0 0.0
    %2908 = vmatpush.msra.mxu0 0.0
    %2909 = vmatpush.msra.mxu0 0.0
    %2910 = vmatpush.msra.mxu0 0.0
    %2911 = vmatpush.msra.mxu0 0.0
    %2912 = vmatpush.msra.mxu0 0.0
    %2913 = vmatpush.msra.mxu0 0.0
    %2914 = vmatpush.msra.mxu0 %v2900
    %2915 = vmatpush.msra.mxu0 %v2896
    %2916 = vmatpush.msra.mxu0 %v2892
    %2917 = vmatpush.msra.mxu0 %v2888
    %2918 = vmatpush.msra.mxu0 %v2884
    %2919 = vmatpush.msra.mxu0 %v2880
    %2920 = vmatmul.f32.gmra.mxu0 %v1081
    %v2921 = vpop.f32.mrf.mxu0
    %v2922 = vadd.f32 %v1073, %v2921
    %2923 = vmatmul.f32.gmra.mxu0 %v1084
    %v2924 = vpop.f32.mrf.mxu0
    %v2925 = vadd.f32 %v1078, %v2924
    %2926 = vdwg.mxu0
    %2927 = vmatpush.msra.mxu0 0.0
    %2928 = vmatpush.msra.mxu0 0.0
    %2929 = vmatpush.msra.mxu0 0.0
    %2930 = vmatpush.msra.mxu0 0.0
    %2931 = vmatpush.msra.mxu0 0.0
    %2932 = vmatpush.msra.mxu0 0.0
    %2933 = vmatpush.msra.mxu0 0.0
    %2934 = vmatpush.msra.mxu0 0.0
    %2935 = vmatpush.msra.mxu0 0.0
    %2936 = vmatpush.msra.mxu0 0.0
    %2937 = vmatpush.msra.mxu0 %v2901
    %2938 = vmatpush.msra.mxu0 %v2897
    %2939 = vmatpush.msra.mxu0 %v2893
    %2940 = vmatpush.msra.mxu0 %v2889
    %2941 = vmatpush.msra.mxu0 %v2885
    %2942 = vmatpush.msra.mxu0 %v2881
    %2943 = vmatmul.f32.gmra.mxu0 %v1081
    %v2944 = vpop.f32.mrf.mxu0
    %v2945 = vadd.f32 %v1073, %v2944
    %2946 = vmatmul.f32.gmra.mxu0 %v1084
    %v2947 = vpop.f32.mrf.mxu0
    %v2948 = vadd.f32 %v1078, %v2947
    %2949 = vdwg.mxu0
    %2950 = vmatpush.msra.mxu0 0.0
    %2951 = vmatpush.msra.mxu0 0.0
    %2952 = vmatpush.msra.mxu0 0.0
    %2953 = vmatpush.msra.mxu0 0.0
    %2954 = vmatpush.msra.mxu0 0.0
    %2955 = vmatpush.msra.mxu0 0.0
    %2956 = vmatpush.msra.mxu0 0.0
    %2957 = vmatpush.msra.mxu0 0.0
    %2958 = vmatpush.msra.mxu0 0.0
    %2959 = vmatpush.msra.mxu0 0.0
    %2960 = vmatpush.msra.mxu0 %v2902
    %2961 = vmatpush.msra.mxu0 %v2898
    %2962 = vmatpush.msra.mxu0 %v2894
    %2963 = vmatpush.msra.mxu0 %v2890
    %2964 = vmatpush.msra.mxu0 %v2886
    %2965 = vmatpush.msra.mxu0 %v2882
    %2966 = vmatmul.f32.gmra.mxu0 %v1081
    %v2967 = vpop.f32.mrf.mxu0
    %v2968 = vadd.f32 %v1073, %v2967
    %2969 = vmatmul.f32.gmra.mxu0 %v1084
    %v2970 = vpop.f32.mrf.mxu0
    %v2971 = vadd.f32 %v1078, %v2970
    %2972 = vdwg.mxu0
    %2973 = vmatpush.msra.mxu0 0.0
    %2974 = vmatpush.msra.mxu0 0.0
    %2975 = vmatpush.msra.mxu0 0.0
    %2976 = vmatpush.msra.mxu0 0.0
    %2977 = vmatpush.msra.mxu0 0.0
    %2978 = vmatpush.msra.mxu0 0.0
    %2979 = vmatpush.msra.mxu0 0.0
    %2980 = vmatpush.msra.mxu0 0.0
    %2981 = vmatpush.msra.mxu0 0.0
    %2982 = vmatpush.msra.mxu0 0.0
    %2983 = vmatpush.msra.mxu0 %v2903
    %2984 = vmatpush.msra.mxu0 %v2899
    %2985 = vmatpush.msra.mxu0 %v2895
    %2986 = vmatpush.msra.mxu0 %v2891
    %2987 = vmatpush.msra.mxu0 %v2887
    %2988 = vmatpush.msra.mxu0 %v2883
    %2989 = vmatmul.f32.gmra.mxu0 %v1081
    %v2990 = vpop.f32.mrf.mxu0
    %v2991 = vadd.f32 %v1073, %v2990
    %2992 = vmatmul.f32.gmra.mxu0 %v1084
    %v2993 = vpop.f32.mrf.mxu0
    %v2994 = vadd.f32 %v1078, %v2993
    %2995 = vdwg.mxu0
    %2996 = vrot.lane.b32.xlu0 %v2922, 1
    %v2997 = vpop.permute.xlu0 %2996
    %2998 = vrot.lane.b32.xlu0 %v2925, 1
    %v2999 = vpop.permute.xlu0 %2998
    %3000 = vrot.lane.b32.xlu0 %v2945, 1
    %v3001 = vpop.permute.xlu0 %3000
    %3002 = vrot.lane.b32.xlu0 %v2948, 1
    %v3003 = vpop.permute.xlu0 %3002
    %3004 = vrot.lane.b32.xlu0 %v2968, 1
    %v3005 = vpop.permute.xlu0 %3004
    %3006 = vrot.lane.b32.xlu0 %v2971, 1
    %v3007 = vpop.permute.xlu0 %3006
    %3008 = vrot.lane.b32.xlu0 %v2991, 1
    %v3009 = vpop.permute.xlu0 %3008
    %3010 = vrot.lane.b32.xlu0 %v2994, 1
    %v3011 = vpop.permute.xlu0 %3010
    %v3012 = vsel %vm312, %v3005, %v3009
    %v3013 = vsel %vm312, %v3007, %v3011
    %v3014 = vsel %vm312, %v3001, %v3005
    %v3015 = vsel %vm312, %v3003, %v3007
    %v3016 = vsel %vm312, %v2997, %v3001
    %v3017 = vsel %vm312, %v2999, %v3003
    %v3018 = vsel %vm312, %v3009, %v2997
    %v3019 = vsel %vm312, %v3011, %v2999
    %v3020 = vmul.f32 %v3018, %v147
    %v3021 = vmul.f32 %v3016, %v148
    %v3022 = vmul.f32 %v3014, %v149
    %v3023 = vmul.f32 %v3012, %v150
    %v3024 = vmul.f32 %v3019, %v147
    %v3025 = vmul.f32 %v3017, %v148
    %v3026 = vmul.f32 %v3015, %v149
    %v3027 = vmul.f32 %v3013, %v150
    %3028 = vst [vmem:[#allocation2] sm:$0xff] %v3020
    %3029 = vst [vmem:[#allocation2 + $0x8] sm:$0xff] %v3021
    %3030 = vst [vmem:[#allocation2 + $0x10] sm:$0xff] %v3022
    %3031 = vst [vmem:[#allocation2 + $0x18] sm:$0xff] %v3023
    %3032 = vst [vmem:[#allocation2 + $0x20] sm:$0xff] %v3024
    %3033 = vst [vmem:[#allocation2 + $0x28] sm:$0xff] %v3025
    %3034 = vst [vmem:[#allocation2 + $0x30] sm:$0xff] %v3026
    %3035 = vst [vmem:[#allocation2 + $0x38] sm:$0xff] %v3027
    %3036 = vst [vmem:[#allocation2 + $0x40] sm:$0xff] %v2922
    %3037 = vst [vmem:[#allocation2 + $0x48] sm:$0xff] %v2945
    %3038 = vst [vmem:[#allocation2 + $0x50] sm:$0xff] %v2968
    %3039 = vst [vmem:[#allocation2 + $0x58] sm:$0xff] %v2991
    %3040 = vst [vmem:[#allocation2 + $0x60] sm:$0xff] %v2925
    %3041 = vst [vmem:[#allocation2 + $0x68] sm:$0xff] %v2948
    %3042 = vst [vmem:[#allocation2 + $0x70] sm:$0xff] %v2971
    %3043 = vst [vmem:[#allocation2 + $0x78] sm:$0xff] %v2994
    %3044 = vrot.lane.b32.xlu0 %v2922, 127
    %v3045 = vpop.permute.xlu0 %3044
    %3046 = vrot.lane.b32.xlu0 %v2925, 127
    %v3047 = vpop.permute.xlu0 %3046
    %3048 = vrot.lane.b32.xlu0 %v2945, 127
    %v3049 = vpop.permute.xlu0 %3048
    %3050 = vrot.lane.b32.xlu0 %v2948, 127
    %v3051 = vpop.permute.xlu0 %3050
    %3052 = vrot.lane.b32.xlu0 %v2968, 127
    %v3053 = vpop.permute.xlu0 %3052
    %3054 = vrot.lane.b32.xlu0 %v2971, 127
    %v3055 = vpop.permute.xlu0 %3054
    %3056 = vrot.lane.b32.xlu0 %v2991, 127
    %v3057 = vpop.permute.xlu0 %3056
    %3058 = vrot.lane.b32.xlu0 %v2994, 127
    %v3059 = vpop.permute.xlu0 %3058
    %v3060 = vsel %vm361, %v3053, %v3057
    %v3061 = vsel %vm361, %v3055, %v3059
    %v3062 = vsel %vm361, %v3049, %v3053
    %v3063 = vsel %vm361, %v3051, %v3055
    %v3064 = vsel %vm361, %v3045, %v3049
    %v3065 = vsel %vm361, %v3047, %v3051
    %v3066 = vsel %vm361, %v3057, %v3045
    %v3067 = vsel %vm361, %v3059, %v3047
    %v3068 = vmul.f32 %v3064, %v171
    %v3069 = vmul.f32 %v3062, %v172
    %v3070 = vmul.f32 %v3060, %v173
    %v3071 = vmul.f32 %v3066, %v174
    %v3072 = vmul.f32 %v3065, %v171
    %v3073 = vmul.f32 %v3063, %v172
    %v3074 = vmul.f32 %v3061, %v173
    %v3075 = vmul.f32 %v3067, %v174
    %3076 = vst [vmem:[#allocation2 + $0x80] sm:$0xff] %v3068
    %3077 = vst [vmem:[#allocation2 + $0x88] sm:$0xff] %v3069
    %3078 = vst [vmem:[#allocation2 + $0x90] sm:$0xff] %v3070
    %3079 = vst [vmem:[#allocation2 + $0x98] sm:$0xff] %v3071
    %3080 = vst [vmem:[#allocation2 + $0xa0] sm:$0xff] %v3072
    %3081 = vst [vmem:[#allocation2 + $0xa8] sm:$0xff] %v3073
    %3082 = vst [vmem:[#allocation2 + $0xb0] sm:$0xff] %v3074
    %3083 = vst [vmem:[#allocation2 + $0xb8] sm:$0xff] %v3075
    %v3084 = vld [vmem:[#allocation2] sm:$0xff]
    %v3085 = vld [vmem:[#allocation2 + $0x8] sm:$0xff]
    %v3086 = vld [vmem:[#allocation2 + $0x10] sm:$0xff]
    %v3087 = vld [vmem:[#allocation2 + $0x18] sm:$0xff]
    %v3088 = vld [vmem:[#allocation2 + $0x20] sm:$0xff]
    %v3089 = vld [vmem:[#allocation2 + $0x28] sm:$0xff]
    %v3090 = vld [vmem:[#allocation2 + $0x30] sm:$0xff]
    %v3091 = vld [vmem:[#allocation2 + $0x38] sm:$0xff]
    %v3092 = vld [vmem:[#allocation2 + $0x40] sm:$0xff]
    %v3093 = vld [vmem:[#allocation2 + $0x48] sm:$0xff]
    %v3094 = vld [vmem:[#allocation2 + $0x50] sm:$0xff]
    %v3095 = vld [vmem:[#allocation2 + $0x58] sm:$0xff]
    %v3096 = vld [vmem:[#allocation2 + $0x60] sm:$0xff]
    %v3097 = vld [vmem:[#allocation2 + $0x68] sm:$0xff]
    %v3098 = vld [vmem:[#allocation2 + $0x70] sm:$0xff]
    %v3099 = vld [vmem:[#allocation2 + $0x78] sm:$0xff]
    %v3100 = vld [vmem:[#allocation2 + $0x80] sm:$0xff]
    %v3101 = vld [vmem:[#allocation2 + $0x88] sm:$0xff]
    %v3102 = vld [vmem:[#allocation2 + $0x90] sm:$0xff]
    %v3103 = vld [vmem:[#allocation2 + $0x98] sm:$0xff]
    %v3104 = vld [vmem:[#allocation2 + $0xa0] sm:$0xff]
    %v3105 = vld [vmem:[#allocation2 + $0xa8] sm:$0xff]
    %v3106 = vld [vmem:[#allocation2 + $0xb0] sm:$0xff]
    %v3107 = vld [vmem:[#allocation2 + $0xb8] sm:$0xff]
    %3108 = vmatpush.msra.mxu0 0.0
    %3109 = vmatpush.msra.mxu0 0.0
    %3110 = vmatpush.msra.mxu0 0.0
    %3111 = vmatpush.msra.mxu0 0.0
    %3112 = vmatpush.msra.mxu0 0.0
    %3113 = vmatpush.msra.mxu0 0.0
    %3114 = vmatpush.msra.mxu0 0.0
    %3115 = vmatpush.msra.mxu0 0.0
    %3116 = vmatpush.msra.mxu0 0.0
    %3117 = vmatpush.msra.mxu0 0.0
    %3118 = vmatpush.msra.mxu0 %v3104
    %3119 = vmatpush.msra.mxu0 %v3100
    %3120 = vmatpush.msra.mxu0 %v3096
    %3121 = vmatpush.msra.mxu0 %v3092
    %3122 = vmatpush.msra.mxu0 %v3088
    %3123 = vmatpush.msra.mxu0 %v3084
    %3124 = vmatmul.f32.gmra.mxu0 %v422
    %v3125 = vpop.f32.mrf.mxu0
    %v3126 = vadd.f32 %v413, %v3125
    %3127 = vmatmul.f32.gmra.mxu0 %v425
    %v3128 = vpop.f32.mrf.mxu0
    %v3129 = vadd.f32 %v418, %v3128
    %3130 = vdwg.mxu0
    %3131 = vmatpush.msra.mxu0 0.0
    %3132 = vmatpush.msra.mxu0 0.0
    %3133 = vmatpush.msra.mxu0 0.0
    %3134 = vmatpush.msra.mxu0 0.0
    %3135 = vmatpush.msra.mxu0 0.0
    %3136 = vmatpush.msra.mxu0 0.0
    %3137 = vmatpush.msra.mxu0 0.0
    %3138 = vmatpush.msra.mxu0 0.0
    %3139 = vmatpush.msra.mxu0 0.0
    %3140 = vmatpush.msra.mxu0 0.0
    %3141 = vmatpush.msra.mxu0 %v3105
    %3142 = vmatpush.msra.mxu0 %v3101
    %3143 = vmatpush.msra.mxu0 %v3097
    %3144 = vmatpush.msra.mxu0 %v3093
    %3145 = vmatpush.msra.mxu0 %v3089
    %3146 = vmatpush.msra.mxu0 %v3085
    %3147 = vmatmul.f32.gmra.mxu0 %v422
    %v3148 = vpop.f32.mrf.mxu0
    %v3149 = vadd.f32 %v413, %v3148
    %3150 = vmatmul.f32.gmra.mxu0 %v425
    %v3151 = vpop.f32.mrf.mxu0
    %v3152 = vadd.f32 %v418, %v3151
    %3153 = vdwg.mxu0
    %3154 = vmatpush.msra.mxu0 0.0
    %3155 = vmatpush.msra.mxu0 0.0
    %3156 = vmatpush.msra.mxu0 0.0
    %3157 = vmatpush.msra.mxu0 0.0
    %3158 = vmatpush.msra.mxu0 0.0
    %3159 = vmatpush.msra.mxu0 0.0
    %3160 = vmatpush.msra.mxu0 0.0
    %3161 = vmatpush.msra.mxu0 0.0
    %3162 = vmatpush.msra.mxu0 0.0
    %3163 = vmatpush.msra.mxu0 0.0
    %3164 = vmatpush.msra.mxu0 %v3106
    %3165 = vmatpush.msra.mxu0 %v3102
    %3166 = vmatpush.msra.mxu0 %v3098
    %3167 = vmatpush.msra.mxu0 %v3094
    %3168 = vmatpush.msra.mxu0 %v3090
    %3169 = vmatpush.msra.mxu0 %v3086
    %3170 = vmatmul.f32.gmra.mxu0 %v422
    %v3171 = vpop.f32.mrf.mxu0
    %v3172 = vadd.f32 %v413, %v3171
    %3173 = vmatmul.f32.gmra.mxu0 %v425
    %v3174 = vpop.f32.mrf.mxu0
    %v3175 = vadd.f32 %v418, %v3174
    %3176 = vdwg.mxu0
    %3177 = vmatpush.msra.mxu0 0.0
    %3178 = vmatpush.msra.mxu0 0.0
    %3179 = vmatpush.msra.mxu0 0.0
    %3180 = vmatpush.msra.mxu0 0.0
    %3181 = vmatpush.msra.mxu0 0.0
    %3182 = vmatpush.msra.mxu0 0.0
    %3183 = vmatpush.msra.mxu0 0.0
    %3184 = vmatpush.msra.mxu0 0.0
    %3185 = vmatpush.msra.mxu0 0.0
    %3186 = vmatpush.msra.mxu0 0.0
    %3187 = vmatpush.msra.mxu0 %v3107
    %3188 = vmatpush.msra.mxu0 %v3103
    %3189 = vmatpush.msra.mxu0 %v3099
    %3190 = vmatpush.msra.mxu0 %v3095
    %3191 = vmatpush.msra.mxu0 %v3091
    %3192 = vmatpush.msra.mxu0 %v3087
    %3193 = vmatmul.f32.gmra.mxu0 %v422
    %v3194 = vpop.f32.mrf.mxu0
    %v3195 = vadd.f32 %v413, %v3194
    %3196 = vmatmul.f32.gmra.mxu0 %v425
    %v3197 = vpop.f32.mrf.mxu0
    %v3198 = vadd.f32 %v418, %v3197
    %3199 = vdwg.mxu0
    %v3200 = vmax.f32 %v3126, 0.0
    %v3201 = vmax.f32 %v3149, 0.0
    %v3202 = vmax.f32 %v3172, 0.0
    %v3203 = vmax.f32 %v3195, 0.0
    %v3204 = vmax.f32 %v3129, 0.0
    %v3205 = vmax.f32 %v3152, 0.0
    %v3206 = vmax.f32 %v3175, 0.0
    %v3207 = vmax.f32 %v3198, 0.0
    %v3208 = vadd.f32 %v3200, %v3201
    %3209 = vadd.xlane.f32.xlu0 %v3208
    %v3210 = vpop.xlane.xlu0 %3209
    %v3211 = vadd.f32 %v3204, %v3205
    %3212 = vadd.xlane.f32.xlu0 %v3211
    %v3213 = vpop.xlane.xlu0 %3212
    %v3214 = vmul.f32 %v3210, %v539
    %v3215 = vmul.f32 %v3213, %v539
    %v3216 = vsub.f32 %v3200, %v3214
    %v3217 = vsub.f32 %v3201, %v3214
    %v3218 = vsub.f32 %v3204, %v3215
    %v3219 = vsub.f32 %v3205, %v3215
    %v3220 = vmul.f32 %v3216, %v3216
    %v3221 = vmul.f32 %v3217, %v3217
    %v3222 = vmul.f32 %v3218, %v3218
    %v3223 = vmul.f32 %v3219, %v3219
    %v3224 = vadd.f32 %v3220, %v3221
    %3225 = vadd.xlane.f32.xlu0 %v3224
    %v3226 = vpop.xlane.xlu0 %3225
    %v3227 = vadd.f32 %v3222, %v3223
    %3228 = vadd.xlane.f32.xlu0 %v3227
    %v3229 = vpop.xlane.xlu0 %3228
    %v3230 = vmul.f32 %v3226, 0.003921569
    %v3231 = vmul.f32 %v3229, 0.003921569
    %v3232 = vrsqrt.pop %v3230
    %v3233 = vmul.f32 %v3232, %v3230
    %v3234 = vmul.f32 %v3233, %v3232
    %v3235 = vmul.f32 0.5, %v3234
    %v3236 = vsub.f32 1.5, %v3235
    %v3237 = vmul.f32 %v3232, %v3236
    %v3238 = vmul.f32 %v3230, %v3237
    %vm3239 = vcmp.eq.f32.partialorder %v3230, inf
    %v3240 = vsel %vm3239, %v3230, %v3238
    %vm3241 = vcmp.eq.f32.partialorder %v3230, 0.0
    %v3242 = vand.u32 %v3230, 2147483648
    %v3243 = vsel %vm3241, %v3242, %v3240
    %v3244 = vrsqrt.pop %v3231
    %v3245 = vmul.f32 %v3244, %v3231
    %v3246 = vmul.f32 %v3245, %v3244
    %v3247 = vmul.f32 0.5, %v3246
    %v3248 = vsub.f32 1.5, %v3247
    %v3249 = vmul.f32 %v3244, %v3248
    %v3250 = vmul.f32 %v3231, %v3249
    %vm3251 = vcmp.eq.f32.partialorder %v3231, inf
    %v3252 = vsel %vm3251, %v3231, %v3250
    %vm3253 = vcmp.eq.f32.partialorder %v3231, 0.0
    %v3254 = vand.u32 %v3231, 2147483648
    %v3255 = vsel %vm3253, %v3254, %v3252
    %v3256 = vadd.f32 %v3243, 1e-06
    %v3257 = vadd.f32 %v3255, 1e-06
    %v3258 = vrcp.pop %v3256
    %v3259 = vmul.f32 %v3256, %v3258
    %v3260 = vsub.f32 1.0, %v3259
    %v3261 = vmul.f32 %v3258, %v3260
    %v3262 = vadd.f32 %v3258, %v3261
    %vm3263 = vweird.f32 %v3256
    %vm3264 = vweird.f32 %v3258
    %vm3265 = vmor %vm3263, %vm3264
    %v3266 = vsel %vm3265, %v3258, %v3262
    %v3267 = vand.u32 2147483647, %v3256
    %vm3268 = vcmp.eq.f32.partialorder %v3267, 8.507059e+37
    %v3269 = vand.u32 %v3256, 2147483648
    %v3270 = vor.u32 1.1754944e-38, %v3269
    %v3271 = vsel %vm3268, %v3270, %v3266
    %v3272 = vmul.f32 1.0, %v3271
    %v3273 = vrcp.pop %v3257
    %v3274 = vmul.f32 %v3257, %v3273
    %v3275 = vsub.f32 1.0, %v3274
    %v3276 = vmul.f32 %v3273, %v3275
    %v3277 = vadd.f32 %v3273, %v3276
    %vm3278 = vweird.f32 %v3257
    %vm3279 = vweird.f32 %v3273
    %vm3280 = vmor %vm3278, %vm3279
    %v3281 = vsel %vm3280, %v3273, %v3277
    %v3282 = vand.u32 2147483647, %v3257
    %vm3283 = vcmp.eq.f32.partialorder %v3282, 8.507059e+37
    %v3284 = vand.u32 %v3257, 2147483648
    %v3285 = vor.u32 1.1754944e-38, %v3284
    %v3286 = vsel %vm3283, %v3285, %v3281
    %v3287 = vmul.f32 1.0, %v3286
    %v3288 = vmul.f32 %v3216, %v3272
    %v3289 = vmul.f32 %v3217, %v3272
    %v3290 = vmul.f32 %v3218, %v3287
    %v3291 = vmul.f32 %v3219, %v3287
    %v3292 = vadd.f32 %v3202, %v3203
    %3293 = vadd.xlane.f32.xlu0 %v3292
    %v3294 = vpop.xlane.xlu0 %3293
    %v3295 = vadd.f32 %v3206, %v3207
    %3296 = vadd.xlane.f32.xlu0 %v3295
    %v3297 = vpop.xlane.xlu0 %3296
    %v3298 = vmul.f32 %v3294, %v539
    %v3299 = vmul.f32 %v3297, %v539
    %v3300 = vsub.f32 %v3202, %v3298
    %v3301 = vsub.f32 %v3203, %v3298
    %v3302 = vsub.f32 %v3206, %v3299
    %v3303 = vsub.f32 %v3207, %v3299
    %v3304 = vmul.f32 %v3300, %v3300
    %v3305 = vmul.f32 %v3301, %v3301
    %v3306 = vmul.f32 %v3302, %v3302
    %v3307 = vmul.f32 %v3303, %v3303
    %v3308 = vadd.f32 %v3304, %v3305
    %3309 = vadd.xlane.f32.xlu0 %v3308
    %v3310 = vpop.xlane.xlu0 %3309
    %v3311 = vadd.f32 %v3306, %v3307
    %3312 = vadd.xlane.f32.xlu0 %v3311
    %v3313 = vpop.xlane.xlu0 %3312
    %v3314 = vmul.f32 %v3310, 0.003921569
    %v3315 = vmul.f32 %v3313, 0.003921569
    %v3316 = vrsqrt.pop %v3314
    %v3317 = vmul.f32 %v3316, %v3314
    %v3318 = vmul.f32 %v3317, %v3316
    %v3319 = vmul.f32 0.5, %v3318
    %v3320 = vsub.f32 1.5, %v3319
    %v3321 = vmul.f32 %v3316, %v3320
    %v3322 = vmul.f32 %v3314, %v3321
    %vm3323 = vcmp.eq.f32.partialorder %v3314, inf
    %v3324 = vsel %vm3323, %v3314, %v3322
    %vm3325 = vcmp.eq.f32.partialorder %v3314, 0.0
    %v3326 = vand.u32 %v3314, 2147483648
    %v3327 = vsel %vm3325, %v3326, %v3324
    %v3328 = vrsqrt.pop %v3315
    %v3329 = vmul.f32 %v3328, %v3315
    %v3330 = vmul.f32 %v3329, %v3328
    %v3331 = vmul.f32 0.5, %v3330
    %v3332 = vsub.f32 1.5, %v3331
    %v3333 = vmul.f32 %v3328, %v3332
    %v3334 = vmul.f32 %v3315, %v3333
    %vm3335 = vcmp.eq.f32.partialorder %v3315, inf
    %v3336 = vsel %vm3335, %v3315, %v3334
    %vm3337 = vcmp.eq.f32.partialorder %v3315, 0.0
    %v3338 = vand.u32 %v3315, 2147483648
    %v3339 = vsel %vm3337, %v3338, %v3336
    %v3340 = vadd.f32 %v3327, 1e-06
    %v3341 = vadd.f32 %v3339, 1e-06
    %v3342 = vrcp.pop %v3340
    %v3343 = vmul.f32 %v3340, %v3342
    %v3344 = vsub.f32 1.0, %v3343
    %v3345 = vmul.f32 %v3342, %v3344
    %v3346 = vadd.f32 %v3342, %v3345
    %vm3347 = vweird.f32 %v3340
    %vm3348 = vweird.f32 %v3342
    %vm3349 = vmor %vm3347, %vm3348
    %v3350 = vsel %vm3349, %v3342, %v3346
    %v3351 = vand.u32 2147483647, %v3340
    %vm3352 = vcmp.eq.f32.partialorder %v3351, 8.507059e+37
    %v3353 = vand.u32 %v3340, 2147483648
    %v3354 = vor.u32 1.1754944e-38, %v3353
    %v3355 = vsel %vm3352, %v3354, %v3350
    %v3356 = vmul.f32 1.0, %v3355
    %v3357 = vrcp.pop %v3341
    %v3358 = vmul.f32 %v3341, %v3357
    %v3359 = vsub.f32 1.0, %v3358
    %v3360 = vmul.f32 %v3357, %v3359
    %v3361 = vadd.f32 %v3357, %v3360
    %vm3362 = vweird.f32 %v3341
    %vm3363 = vweird.f32 %v3357
    %vm3364 = vmor %vm3362, %vm3363
    %v3365 = vsel %vm3364, %v3357, %v3361
    %v3366 = vand.u32 2147483647, %v3341
    %vm3367 = vcmp.eq.f32.partialorder %v3366, 8.507059e+37
    %v3368 = vand.u32 %v3341, 2147483648
    %v3369 = vor.u32 1.1754944e-38, %v3368
    %v3370 = vsel %vm3367, %v3369, %v3365
    %v3371 = vmul.f32 1.0, %v3370
    %v3372 = vmul.f32 %v3300, %v3356
    %v3373 = vmul.f32 %v3301, %v3356
    %v3374 = vmul.f32 %v3302, %v3371
    %v3375 = vmul.f32 %v3303, %v3371
    %v3376 = vmul.f32 %v703, %v3288
    %v3377 = vmul.f32 %v704, %v3289
    %v3378 = vmul.f32 %v705, %v3372
    %v3379 = vmul.f32 %v706, %v3373
    %v3380 = vmul.f32 %v703, %v3290
    %v3381 = vmul.f32 %v704, %v3291
    %v3382 = vmul.f32 %v705, %v3374
    %v3383 = vmul.f32 %v706, %v3375
    %v3384 = vadd.f32 %v3376, %v720
    %v3385 = vadd.f32 %v3377, %v721
    %v3386 = vadd.f32 %v3378, %v722
    %v3387 = vadd.f32 %v3379, %v723
    %v3388 = vadd.f32 %v3380, %v720
    %v3389 = vadd.f32 %v3381, %v721
    %v3390 = vadd.f32 %v3382, %v722
    %v3391 = vadd.f32 %v3383, %v723
    %3392 = vrot.lane.b32.xlu0 %v3384, 1
    %v3393 = vpop.permute.xlu0 %3392
    %3394 = vrot.lane.b32.xlu0 %v3388, 1
    %v3395 = vpop.permute.xlu0 %3394
    %3396 = vrot.lane.b32.xlu0 %v3385, 1
    %v3397 = vpop.permute.xlu0 %3396
    %3398 = vrot.lane.b32.xlu0 %v3389, 1
    %v3399 = vpop.permute.xlu0 %3398
    %3400 = vrot.lane.b32.xlu0 %v3386, 1
    %v3401 = vpop.permute.xlu0 %3400
    %3402 = vrot.lane.b32.xlu0 %v3390, 1
    %v3403 = vpop.permute.xlu0 %3402
    %3404 = vrot.lane.b32.xlu0 %v3387, 1
    %v3405 = vpop.permute.xlu0 %3404
    %3406 = vrot.lane.b32.xlu0 %v3391, 1
    %v3407 = vpop.permute.xlu0 %3406
    %v3408 = vsel %vm312, %v3401, %v3405
    %v3409 = vsel %vm312, %v3403, %v3407
    %v3410 = vsel %vm312, %v3397, %v3401
    %v3411 = vsel %vm312, %v3399, %v3403
    %v3412 = vsel %vm312, %v3393, %v3397
    %v3413 = vsel %vm312, %v3395, %v3399
    %v3414 = vsel %vm312, %v3405, %v3393
    %v3415 = vsel %vm312, %v3407, %v3395
    %v3416 = vmul.f32 %v3414, %v147
    %v3417 = vmul.f32 %v3412, %v148
    %v3418 = vmul.f32 %v3410, %v149
    %v3419 = vmul.f32 %v3408, %v150
    %v3420 = vmul.f32 %v3415, %v147
    %v3421 = vmul.f32 %v3413, %v148
    %v3422 = vmul.f32 %v3411, %v149
    %v3423 = vmul.f32 %v3409, %v150
    %3424 = vst [vmem:[#allocation2] sm:$0xff] %v3416
    %3425 = vst [vmem:[#allocation2 + $0x8] sm:$0xff] %v3417
    %3426 = vst [vmem:[#allocation2 + $0x10] sm:$0xff] %v3418
    %3427 = vst [vmem:[#allocation2 + $0x18] sm:$0xff] %v3419
    %3428 = vst [vmem:[#allocation2 + $0x20] sm:$0xff] %v3420
    %3429 = vst [vmem:[#allocation2 + $0x28] sm:$0xff] %v3421
    %3430 = vst [vmem:[#allocation2 + $0x30] sm:$0xff] %v3422
    %3431 = vst [vmem:[#allocation2 + $0x38] sm:$0xff] %v3423
    %3432 = vst [vmem:[#allocation2 + $0x40] sm:$0xff] %v3384
    %3433 = vst [vmem:[#allocation2 + $0x48] sm:$0xff] %v3385
    %3434 = vst [vmem:[#allocation2 + $0x50] sm:$0xff] %v3386
    %3435 = vst [vmem:[#allocation2 + $0x58] sm:$0xff] %v3387
    %3436 = vst [vmem:[#allocation2 + $0x60] sm:$0xff] %v3388
    %3437 = vst [vmem:[#allocation2 + $0x68] sm:$0xff] %v3389
    %3438 = vst [vmem:[#allocation2 + $0x70] sm:$0xff] %v3390
    %3439 = vst [vmem:[#allocation2 + $0x78] sm:$0xff] %v3391
    %3440 = vrot.lane.b32.xlu0 %v3384, 127
    %v3441 = vpop.permute.xlu0 %3440
    %3442 = vrot.lane.b32.xlu0 %v3388, 127
    %v3443 = vpop.permute.xlu0 %3442
    %3444 = vrot.lane.b32.xlu0 %v3385, 127
    %v3445 = vpop.permute.xlu0 %3444
    %3446 = vrot.lane.b32.xlu0 %v3389, 127
    %v3447 = vpop.permute.xlu0 %3446
    %3448 = vrot.lane.b32.xlu0 %v3386, 127
    %v3449 = vpop.permute.xlu0 %3448
    %3450 = vrot.lane.b32.xlu0 %v3390, 127
    %v3451 = vpop.permute.xlu0 %3450
    %3452 = vrot.lane.b32.xlu0 %v3387, 127
    %v3453 = vpop.permute.xlu0 %3452
    %3454 = vrot.lane.b32.xlu0 %v3391, 127
    %v3455 = vpop.permute.xlu0 %3454
    %v3456 = vsel %vm361, %v3449, %v3453
    %v3457 = vsel %vm361, %v3451, %v3455
    %v3458 = vsel %vm361, %v3445, %v3449
    %v3459 = vsel %vm361, %v3447, %v3451
    %v3460 = vsel %vm361, %v3441, %v3445
    %v3461 = vsel %vm361, %v3443, %v3447
    %v3462 = vsel %vm361, %v3453, %v3441
    %v3463 = vsel %vm361, %v3455, %v3443
    %v3464 = vmul.f32 %v3460, %v171
    %v3465 = vmul.f32 %v3458, %v172
    %v3466 = vmul.f32 %v3456, %v173
    %v3467 = vmul.f32 %v3462, %v174
    %v3468 = vmul.f32 %v3461, %v171
    %v3469 = vmul.f32 %v3459, %v172
    %v3470 = vmul.f32 %v3457, %v173
    %v3471 = vmul.f32 %v3463, %v174
    %3472 = vst [vmem:[#allocation2 + $0x80] sm:$0xff] %v3464
    %3473 = vst [vmem:[#allocation2 + $0x88] sm:$0xff] %v3465
    %3474 = vst [vmem:[#allocation2 + $0x90] sm:$0xff] %v3466
    %3475 = vst [vmem:[#allocation2 + $0x98] sm:$0xff] %v3467
    %3476 = vst [vmem:[#allocation2 + $0xa0] sm:$0xff] %v3468
    %3477 = vst [vmem:[#allocation2 + $0xa8] sm:$0xff] %v3469
    %3478 = vst [vmem:[#allocation2 + $0xb0] sm:$0xff] %v3470
    %3479 = vst [vmem:[#allocation2 + $0xb8] sm:$0xff] %v3471
    %v3480 = vld [vmem:[#allocation2] sm:$0xff]
    %v3481 = vld [vmem:[#allocation2 + $0x8] sm:$0xff]
    %v3482 = vld [vmem:[#allocation2 + $0x10] sm:$0xff]
    %v3483 = vld [vmem:[#allocation2 + $0x18] sm:$0xff]
    %v3484 = vld [vmem:[#allocation2 + $0x20] sm:$0xff]
    %v3485 = vld [vmem:[#allocation2 + $0x28] sm:$0xff]
    %v3486 = vld [vmem:[#allocation2 + $0x30] sm:$0xff]
    %v3487 = vld [vmem:[#allocation2 + $0x38] sm:$0xff]
    %v3488 = vld [vmem:[#allocation2 + $0x40] sm:$0xff]
    %v3489 = vld [vmem:[#allocation2 + $0x48] sm:$0xff]
    %v3490 = vld [vmem:[#allocation2 + $0x50] sm:$0xff]
    %v3491 = vld [vmem:[#allocation2 + $0x58] sm:$0xff]
    %v3492 = vld [vmem:[#allocation2 + $0x60] sm:$0xff]
    %v3493 = vld [vmem:[#allocation2 + $0x68] sm:$0xff]
    %v3494 = vld [vmem:[#allocation2 + $0x70] sm:$0xff]
    %v3495 = vld [vmem:[#allocation2 + $0x78] sm:$0xff]
    %v3496 = vld [vmem:[#allocation2 + $0x80] sm:$0xff]
    %v3497 = vld [vmem:[#allocation2 + $0x88] sm:$0xff]
    %v3498 = vld [vmem:[#allocation2 + $0x90] sm:$0xff]
    %v3499 = vld [vmem:[#allocation2 + $0x98] sm:$0xff]
    %v3500 = vld [vmem:[#allocation2 + $0xa0] sm:$0xff]
    %v3501 = vld [vmem:[#allocation2 + $0xa8] sm:$0xff]
    %v3502 = vld [vmem:[#allocation2 + $0xb0] sm:$0xff]
    %v3503 = vld [vmem:[#allocation2 + $0xb8] sm:$0xff]
    %3504 = vmatpush.msra.mxu0 0.0
    %3505 = vmatpush.msra.mxu0 0.0
    %3506 = vmatpush.msra.mxu0 0.0
    %3507 = vmatpush.msra.mxu0 0.0
    %3508 = vmatpush.msra.mxu0 0.0
    %3509 = vmatpush.msra.mxu0 0.0
    %3510 = vmatpush.msra.mxu0 0.0
    %3511 = vmatpush.msra.mxu0 0.0
    %3512 = vmatpush.msra.mxu0 0.0
    %3513 = vmatpush.msra.mxu0 0.0
    %3514 = vmatpush.msra.mxu0 %v3500
    %3515 = vmatpush.msra.mxu0 %v3496
    %3516 = vmatpush.msra.mxu0 %v3492
    %3517 = vmatpush.msra.mxu0 %v3488
    %3518 = vmatpush.msra.mxu0 %v3484
    %3519 = vmatpush.msra.mxu0 %v3480
    %3520 = vmatmul.f32.gmra.mxu0 %v859
    %v3521 = vpop.f32.mrf.mxu0
    %v3522 = vadd.f32 %v851, %v3521
    %3523 = vmatmul.f32.gmra.mxu0 %v862
    %v3524 = vpop.f32.mrf.mxu0
    %v3525 = vadd.f32 %v856, %v3524
    %3526 = vdwg.mxu0
    %3527 = vmatpush.msra.mxu0 0.0
    %3528 = vmatpush.msra.mxu0 0.0
    %3529 = vmatpush.msra.mxu0 0.0
    %3530 = vmatpush.msra.mxu0 0.0
    %3531 = vmatpush.msra.mxu0 0.0
    %3532 = vmatpush.msra.mxu0 0.0
    %3533 = vmatpush.msra.mxu0 0.0
    %3534 = vmatpush.msra.mxu0 0.0
    %3535 = vmatpush.msra.mxu0 0.0
    %3536 = vmatpush.msra.mxu0 0.0
    %3537 = vmatpush.msra.mxu0 %v3501
    %3538 = vmatpush.msra.mxu0 %v3497
    %3539 = vmatpush.msra.mxu0 %v3493
    %3540 = vmatpush.msra.mxu0 %v3489
    %3541 = vmatpush.msra.mxu0 %v3485
    %3542 = vmatpush.msra.mxu0 %v3481
    %3543 = vmatmul.f32.gmra.mxu0 %v859
    %v3544 = vpop.f32.mrf.mxu0
    %v3545 = vadd.f32 %v851, %v3544
    %3546 = vmatmul.f32.gmra.mxu0 %v862
    %v3547 = vpop.f32.mrf.mxu0
    %v3548 = vadd.f32 %v856, %v3547
    %3549 = vdwg.mxu0
    %3550 = vmatpush.msra.mxu0 0.0
    %3551 = vmatpush.msra.mxu0 0.0
    %3552 = vmatpush.msra.mxu0 0.0
    %3553 = vmatpush.msra.mxu0 0.0
    %3554 = vmatpush.msra.mxu0 0.0
    %3555 = vmatpush.msra.mxu0 0.0
    %3556 = vmatpush.msra.mxu0 0.0
    %3557 = vmatpush.msra.mxu0 0.0
    %3558 = vmatpush.msra.mxu0 0.0
    %3559 = vmatpush.msra.mxu0 0.0
    %3560 = vmatpush.msra.mxu0 %v3502
    %3561 = vmatpush.msra.mxu0 %v3498
    %3562 = vmatpush.msra.mxu0 %v3494
    %3563 = vmatpush.msra.mxu0 %v3490
    %3564 = vmatpush.msra.mxu0 %v3486
    %3565 = vmatpush.msra.mxu0 %v3482
    %3566 = vmatmul.f32.gmra.mxu0 %v859
    %v3567 = vpop.f32.mrf.mxu0
    %v3568 = vadd.f32 %v851, %v3567
    %3569 = vmatmul.f32.gmra.mxu0 %v862
    %v3570 = vpop.f32.mrf.mxu0
    %v3571 = vadd.f32 %v856, %v3570
    %3572 = vdwg.mxu0
    %3573 = vmatpush.msra.mxu0 0.0
    %3574 = vmatpush.msra.mxu0 0.0
    %3575 = vmatpush.msra.mxu0 0.0
    %3576 = vmatpush.msra.mxu0 0.0
    %3577 = vmatpush.msra.mxu0 0.0
    %3578 = vmatpush.msra.mxu0 0.0
    %3579 = vmatpush.msra.mxu0 0.0
    %3580 = vmatpush.msra.mxu0 0.0
    %3581 = vmatpush.msra.mxu0 0.0
    %3582 = vmatpush.msra.mxu0 0.0
    %3583 = vmatpush.msra.mxu0 %v3503
    %3584 = vmatpush.msra.mxu0 %v3499
    %3585 = vmatpush.msra.mxu0 %v3495
    %3586 = vmatpush.msra.mxu0 %v3491
    %3587 = vmatpush.msra.mxu0 %v3487
    %3588 = vmatpush.msra.mxu0 %v3483
    %3589 = vmatmul.f32.gmra.mxu0 %v859
    %v3590 = vpop.f32.mrf.mxu0
    %v3591 = vadd.f32 %v851, %v3590
    %3592 = vmatmul.f32.gmra.mxu0 %v862
    %v3593 = vpop.f32.mrf.mxu0
    %v3594 = vadd.f32 %v856, %v3593
    %3595 = vdwg.mxu0
    %3596 = vrot.lane.b32.xlu0 %v3522, 2
    %v3597 = vpop.permute.xlu0 %3596
    %3598 = vrot.lane.b32.xlu0 %v3525, 2
    %v3599 = vpop.permute.xlu0 %3598
    %3600 = vrot.lane.b32.xlu0 %v3545, 2
    %v3601 = vpop.permute.xlu0 %3600
    %3602 = vrot.lane.b32.xlu0 %v3548, 2
    %v3603 = vpop.permute.xlu0 %3602
    %3604 = vrot.lane.b32.xlu0 %v3568, 2
    %v3605 = vpop.permute.xlu0 %3604
    %3606 = vrot.lane.b32.xlu0 %v3571, 2
    %v3607 = vpop.permute.xlu0 %3606
    %3608 = vrot.lane.b32.xlu0 %v3591, 2
    %v3609 = vpop.permute.xlu0 %3608
    %3610 = vrot.lane.b32.xlu0 %v3594, 2
    %v3611 = vpop.permute.xlu0 %3610
    %v3612 = vsel %vm972, %v3605, %v3609
    %v3613 = vsel %vm972, %v3607, %v3611
    %v3614 = vsel %vm972, %v3601, %v3605
    %v3615 = vsel %vm972, %v3603, %v3607
    %v3616 = vsel %vm972, %v3597, %v3601
    %v3617 = vsel %vm972, %v3599, %v3603
    %v3618 = vsel %vm972, %v3609, %v3597
    %v3619 = vsel %vm972, %v3611, %v3599
    %v3620 = vmul.f32 %v3618, %v159
    %v3621 = vmul.f32 %v3616, %v160
    %v3622 = vmul.f32 %v3614, %v161
    %v3623 = vmul.f32 %v3612, %v162
    %v3624 = vmul.f32 %v3619, %v159
    %v3625 = vmul.f32 %v3617, %v160
    %v3626 = vmul.f32 %v3615, %v161
    %v3627 = vmul.f32 %v3613, %v162
    %3628 = vst [vmem:[#allocation2] sm:$0xff] %v3620
    %3629 = vst [vmem:[#allocation2 + $0x8] sm:$0xff] %v3621
    %3630 = vst [vmem:[#allocation2 + $0x10] sm:$0xff] %v3622
    %3631 = vst [vmem:[#allocation2 + $0x18] sm:$0xff] %v3623
    %3632 = vst [vmem:[#allocation2 + $0x20] sm:$0xff] %v3624
    %3633 = vst [vmem:[#allocation2 + $0x28] sm:$0xff] %v3625
    %3634 = vst [vmem:[#allocation2 + $0x30] sm:$0xff] %v3626
    %3635 = vst [vmem:[#allocation2 + $0x38] sm:$0xff] %v3627
    %3636 = vst [vmem:[#allocation2 + $0x40] sm:$0xff] %v3522
    %3637 = vst [vmem:[#allocation2 + $0x48] sm:$0xff] %v3545
    %3638 = vst [vmem:[#allocation2 + $0x50] sm:$0xff] %v3568
    %3639 = vst [vmem:[#allocation2 + $0x58] sm:$0xff] %v3591
    %3640 = vst [vmem:[#allocation2 + $0x60] sm:$0xff] %v3525
    %3641 = vst [vmem:[#allocation2 + $0x68] sm:$0xff] %v3548
    %3642 = vst [vmem:[#allocation2 + $0x70] sm:$0xff] %v3571
    %3643 = vst [vmem:[#allocation2 + $0x78] sm:$0xff] %v3594
    %3644 = vrot.lane.b32.xlu0 %v3522, 126
    %v3645 = vpop.permute.xlu0 %3644
    %3646 = vrot.lane.b32.xlu0 %v3525, 126
    %v3647 = vpop.permute.xlu0 %3646
    %3648 = vrot.lane.b32.xlu0 %v3545, 126
    %v3649 = vpop.permute.xlu0 %3648
    %3650 = vrot.lane.b32.xlu0 %v3548, 126
    %v3651 = vpop.permute.xlu0 %3650
    %3652 = vrot.lane.b32.xlu0 %v3568, 126
    %v3653 = vpop.permute.xlu0 %3652
    %3654 = vrot.lane.b32.xlu0 %v3571, 126
    %v3655 = vpop.permute.xlu0 %3654
    %3656 = vrot.lane.b32.xlu0 %v3591, 126
    %v3657 = vpop.permute.xlu0 %3656
    %3658 = vrot.lane.b32.xlu0 %v3594, 126
    %v3659 = vpop.permute.xlu0 %3658
    %v3660 = vsel %vm1021, %v3653, %v3657
    %v3661 = vsel %vm1021, %v3655, %v3659
    %v3662 = vsel %vm1021, %v3649, %v3653
    %v3663 = vsel %vm1021, %v3651, %v3655
    %v3664 = vsel %vm1021, %v3645, %v3649
    %v3665 = vsel %vm1021, %v3647, %v3651
    %v3666 = vsel %vm1021, %v3657, %v3645
    %v3667 = vsel %vm1021, %v3659, %v3647
    %v3668 = vmul.f32 %v3664, %v183
    %v3669 = vmul.f32 %v3662, %v184
    %v3670 = vmul.f32 %v3660, %v185
    %v3671 = vmul.f32 %v3666, %v186
    %v3672 = vmul.f32 %v3665, %v183
    %v3673 = vmul.f32 %v3663, %v184
    %v3674 = vmul.f32 %v3661, %v185
    %v3675 = vmul.f32 %v3667, %v186
    %3676 = vst [vmem:[#allocation2 + $0x80] sm:$0xff] %v3668
    %3677 = vst [vmem:[#allocation2 + $0x88] sm:$0xff] %v3669
    %3678 = vst [vmem:[#allocation2 + $0x90] sm:$0xff] %v3670
    %3679 = vst [vmem:[#allocation2 + $0x98] sm:$0xff] %v3671
    %3680 = vst [vmem:[#allocation2 + $0xa0] sm:$0xff] %v3672
    %3681 = vst [vmem:[#allocation2 + $0xa8] sm:$0xff] %v3673
    %3682 = vst [vmem:[#allocation2 + $0xb0] sm:$0xff] %v3674
    %3683 = vst [vmem:[#allocation2 + $0xb8] sm:$0xff] %v3675
    %v3684 = vld [vmem:[#allocation2] sm:$0xff]
    %v3685 = vld [vmem:[#allocation2 + $0x8] sm:$0xff]
    %v3686 = vld [vmem:[#allocation2 + $0x10] sm:$0xff]
    %v3687 = vld [vmem:[#allocation2 + $0x18] sm:$0xff]
    %v3688 = vld [vmem:[#allocation2 + $0x20] sm:$0xff]
    %v3689 = vld [vmem:[#allocation2 + $0x28] sm:$0xff]
    %v3690 = vld [vmem:[#allocation2 + $0x30] sm:$0xff]
    %v3691 = vld [vmem:[#allocation2 + $0x38] sm:$0xff]
    %v3692 = vld [vmem:[#allocation2 + $0x40] sm:$0xff]
    %v3693 = vld [vmem:[#allocation2 + $0x48] sm:$0xff]
    %v3694 = vld [vmem:[#allocation2 + $0x50] sm:$0xff]
    %v3695 = vld [vmem:[#allocation2 + $0x58] sm:$0xff]
    %v3696 = vld [vmem:[#allocation2 + $0x60] sm:$0xff]
    %v3697 = vld [vmem:[#allocation2 + $0x68] sm:$0xff]
    %v3698 = vld [vmem:[#allocation2 + $0x70] sm:$0xff]
    %v3699 = vld [vmem:[#allocation2 + $0x78] sm:$0xff]
    %v3700 = vld [vmem:[#allocation2 + $0x80] sm:$0xff]
    %v3701 = vld [vmem:[#allocation2 + $0x88] sm:$0xff]
    %v3702 = vld [vmem:[#allocation2 + $0x90] sm:$0xff]
    %v3703 = vld [vmem:[#allocation2 + $0x98] sm:$0xff]
    %v3704 = vld [vmem:[#allocation2 + $0xa0] sm:$0xff]
    %v3705 = vld [vmem:[#allocation2 + $0xa8] sm:$0xff]
    %v3706 = vld [vmem:[#allocation2 + $0xb0] sm:$0xff]
    %v3707 = vld [vmem:[#allocation2 + $0xb8] sm:$0xff]
    %3708 = vmatpush.msra.mxu0 0.0
    %3709 = vmatpush.msra.mxu0 0.0
    %3710 = vmatpush.msra.mxu0 0.0
    %3711 = vmatpush.msra.mxu0 0.0
    %3712 = vmatpush.msra.mxu0 0.0
    %3713 = vmatpush.msra.mxu0 0.0
    %3714 = vmatpush.msra.mxu0 0.0
    %3715 = vmatpush.msra.mxu0 0.0
    %3716 = vmatpush.msra.mxu0 0.0
    %3717 = vmatpush.msra.mxu0 0.0
    %3718 = vmatpush.msra.mxu0 %v3704
    %3719 = vmatpush.msra.mxu0 %v3700
    %3720 = vmatpush.msra.mxu0 %v3696
    %3721 = vmatpush.msra.mxu0 %v3692
    %3722 = vmatpush.msra.mxu0 %v3688
    %3723 = vmatpush.msra.mxu0 %v3684
    %3724 = vmatmul.f32.gmra.mxu0 %v1081
    %v3725 = vpop.f32.mrf.mxu0
    %v3726 = vadd.f32 %v1073, %v3725
    %3727 = vmatmul.f32.gmra.mxu0 %v1084
    %v3728 = vpop.f32.mrf.mxu0
    %v3729 = vadd.f32 %v1078, %v3728
    %3730 = vdwg.mxu0
    %3731 = vmatpush.msra.mxu0 0.0
    %3732 = vmatpush.msra.mxu0 0.0
    %3733 = vmatpush.msra.mxu0 0.0
    %3734 = vmatpush.msra.mxu0 0.0
    %3735 = vmatpush.msra.mxu0 0.0
    %3736 = vmatpush.msra.mxu0 0.0
    %3737 = vmatpush.msra.mxu0 0.0
    %3738 = vmatpush.msra.mxu0 0.0
    %3739 = vmatpush.msra.mxu0 0.0
    %3740 = vmatpush.msra.mxu0 0.0
    %3741 = vmatpush.msra.mxu0 %v3705
    %3742 = vmatpush.msra.mxu0 %v3701
    %3743 = vmatpush.msra.mxu0 %v3697
    %3744 = vmatpush.msra.mxu0 %v3693
    %3745 = vmatpush.msra.mxu0 %v3689
    %3746 = vmatpush.msra.mxu0 %v3685
    %3747 = vmatmul.f32.gmra.mxu0 %v1081
    %v3748 = vpop.f32.mrf.mxu0
    %v3749 = vadd.f32 %v1073, %v3748
    %3750 = vmatmul.f32.gmra.mxu0 %v1084
    %v3751 = vpop.f32.mrf.mxu0
    %v3752 = vadd.f32 %v1078, %v3751
    %3753 = vdwg.mxu0
    %3754 = vmatpush.msra.mxu0 0.0
    %3755 = vmatpush.msra.mxu0 0.0
    %3756 = vmatpush.msra.mxu0 0.0
    %3757 = vmatpush.msra.mxu0 0.0
    %3758 = vmatpush.msra.mxu0 0.0
    %3759 = vmatpush.msra.mxu0 0.0
    %3760 = vmatpush.msra.mxu0 0.0
    %3761 = vmatpush.msra.mxu0 0.0
    %3762 = vmatpush.msra.mxu0 0.0
    %3763 = vmatpush.msra.mxu0 0.0
    %3764 = vmatpush.msra.mxu0 %v3706
    %3765 = vmatpush.msra.mxu0 %v3702
    %3766 = vmatpush.msra.mxu0 %v3698
    %3767 = vmatpush.msra.mxu0 %v3694
    %3768 = vmatpush.msra.mxu0 %v3690
    %3769 = vmatpush.msra.mxu0 %v3686
    %3770 = vmatmul.f32.gmra.mxu0 %v1081
    %v3771 = vpop.f32.mrf.mxu0
    %v3772 = vadd.f32 %v1073, %v3771
    %3773 = vmatmul.f32.gmra.mxu0 %v1084
    %v3774 = vpop.f32.mrf.mxu0
    %v3775 = vadd.f32 %v1078, %v3774
    %3776 = vdwg.mxu0
    %3777 = vmatpush.msra.mxu0 0.0
    %3778 = vmatpush.msra.mxu0 0.0
    %3779 = vmatpush.msra.mxu0 0.0
    %3780 = vmatpush.msra.mxu0 0.0
    %3781 = vmatpush.msra.mxu0 0.0
    %3782 = vmatpush.msra.mxu0 0.0
    %3783 = vmatpush.msra.mxu0 0.0
    %3784 = vmatpush.msra.mxu0 0.0
    %3785 = vmatpush.msra.mxu0 0.0
    %3786 = vmatpush.msra.mxu0 0.0
    %3787 = vmatpush.msra.mxu0 %v3707
    %3788 = vmatpush.msra.mxu0 %v3703
    %3789 = vmatpush.msra.mxu0 %v3699
    %3790 = vmatpush.msra.mxu0 %v3695
    %3791 = vmatpush.msra.mxu0 %v3691
    %3792 = vmatpush.msra.mxu0 %v3687
    %3793 = vmatmul.f32.gmra.mxu0 %v1081
    %v3794 = vpop.f32.mrf.mxu0
    %v3795 = vadd.f32 %v1073, %v3794
    %3796 = vmatmul.f32.gmra.mxu0 %v1084
    %v3797 = vpop.f32.mrf.mxu0
    %v3798 = vadd.f32 %v1078, %v3797
    %3799 = vdwg.mxu0
    %3800 = vst [vmem:[#allocation11] sm:$0xff] %v3726
    %3801 = vst [vmem:[#allocation11 + $0x8] sm:$0xff] %v3749
    %3802 = vst [vmem:[#allocation11 + $0x10] sm:$0xff] %v3772
    %3803 = vst [vmem:[#allocation11 + $0x18] sm:$0xff] %v3795
    %3804 = vst [vmem:[#allocation11 + $0x20] sm:$0xff] %v3729
    %3805 = vst [vmem:[#allocation11 + $0x28] sm:$0xff] %v3752
    %3806 = vst [vmem:[#allocation11 + $0x30] sm:$0xff] %v3775
    %3807 = vst [vmem:[#allocation11 + $0x38] sm:$0xff] %v3798
    // Predicated region
    $region54: #{tpu_custom_call.1} parent=1 // pred_check
      _
    $region55: #{tpu_custom_call.1} parent=1 // pred_check_branch
      %3809 = sbr.rel (0) target = $region57
    $region56: #{tpu_custom_call.1} parent=1 // pred_region
      %3811 = vsyncadd [#allocation5], 0
      %s3812 = sshll.u32 [#allocation11], 4
      %s3813 = int_to_ptr.vmem [resolvable:$true] %s3812
      %s3814 = sshll.u32 %s9, 4
      %s3815 = int_to_ptr.hbm [resolvable:$true] %s3814
      %3820 = dma.vmem_to_hbm [thread:$0]  %s3813, 1024, %s3815, [#allocation5], 512, 512, 32
    $region57: #{tpu_custom_call.1} parent=1 // pred_fallthru
      _
    // Predicated region
    $region58: #{tpu_custom_call.1} parent=1 // pred_check
      _
    $region59: #{tpu_custom_call.1} parent=1 // pred_check_branch
      %3822 = sbr.rel (0) target = $region61
    $region60: #{tpu_custom_call.1} parent=1 // pred_region
      %3824 = dma.done [#allocation5], 1024
    $region61: #{tpu_custom_call.1} parent=1 // pred_fallthru
      _
    %3825 = vsyncpa [#allocation4], 1
    %3826 = vsyncpa [#allocation7], 1
    %3827 = vsyncpa [#allocation10], 1
    %3828 = vsyncpa [#allocation5], 1

</llo_original>
